<compile_context>
chip_gen: v6e
topology: v6e:2x2x1
jax: 0.10.0
libtpu: 0.0.40
codegen_flags: <defaults>
</compile_context>

<pallas_src>
import jax
import jax.numpy as jnp
from jax import lax
from jax.experimental import pallas as pl
from jax.experimental.pallas import tpu as pltpu

EPS = 1e-5
LANE = 128
MATMUL_DTYPE = jnp.bfloat16   # MXU input dtype (f32 accumulation everywhere)
ACT_DTYPE = jnp.bfloat16      # inter-stage activation storage dtype


# ---------------------------------------------------------------------------
# small helpers
def _round_up(n, m):
    return ((n + m - 1) // m) * m


def _pad_axis(x, axis, target):
    if x.shape[axis] == target:
        return x
    pads = [(0, 0)] * x.ndim
    pads[axis] = (0, target - x.shape[axis])
    return jnp.pad(x, pads)


def _pick_row_tile(m, max_tile=1024, min_steps=4):
    # Largest lane/sublane-friendly row tile; prefer >=4 grid steps so v7x's
    # two TensorCores each get >=2 pipelined steps.  Never fall back to TM=M
    # for awkward M: pick the largest divisor <= max_tile instead.
    for steps_req in (min_steps, 2, 1):
        for cand in (1024, 512, 256, 128, 64, 32, 16, 8):
            if cand <= max_tile and m % cand == 0 and m // cand >= steps_req:
                return cand
    best = 1
    d = 2
    while d * d <= m:
        if m % d == 0:
            for v in (d, m // d):
                if v <= max_tile and v > best:
                    best = v
        d += 1
    return best


def _pick_pixel_tile(hw, n, max_tile=1024, min_steps=4):
    # Tile of the per-image pixel axis (the lane axis of the NCHW blocks in
    # stages 1/4): multiple of 128 for lane-dense DMA and dividing H*W.
    for steps_req in (min_steps, 2, 1):
        cand = (max_tile // LANE) * LANE
        while cand >= LANE:
            if hw % cand == 0 and n * (hw // cand) >= steps_req:
                return cand
            cand -= LANE
    return hw   # block equals the full pixel dim (still legal, just 1 tile)


def _pick_strip_rows(h, w, n, max_rows=1024, min_steps=4):
    # Spatial strip height for stage 2 (conv 3x3): strip rows*W <= max_rows,
    # strip row count a multiple of 8 (sublane-aligned blocks), enough steps.
    for steps_req in (min_steps, 2, 1):
        for th in range(h, 0, -1):
            if (h % th == 0 and th * w <= max_rows and (th * w) % 8 == 0
                    and n * (h // th) >= steps_req):
                return th
    return h


def _partial_stats(h):
    # per-tile partial (sum, sum of squares) over rows -> (1, 2, C), from f32.
    s = jnp.sum(h, axis=0, keepdims=True)
    ss = jnp.sum(h * h, axis=0, keepdims=True)
    return jnp.concatenate([s, ss], axis=0)[None, :, :]


def _scale_shift(stats, count, gamma, beta):
    # Combine per-tile partial sums into exact batch statistics, then fold
    # gamma/beta into a per-channel affine (scale, shift).  Tiny, runs in JAX.
    # Note: E[x^2]-E[x]^2 is well conditioned here (post-conv activations are
    # near zero-mean, so mean^2 << E[x^2]); clamped at 0 for safety.
    s = jnp.sum(stats[:, 0, :], axis=0)
    ss = jnp.sum(stats[:, 1, :], axis=0)
    mean = s / count
    var = jnp.maximum(ss / count - mean * mean, 0.0)
    scale = gamma * lax.rsqrt(var + EPS)               # (1, C)
    shift = beta - mean * scale                        # (1, C)
    return scale, shift


# ---------------------------------------------------------------------------
# kernels
def _conv1x1_stats_kernel(x_ref, w_ref, h_ref, stats_ref):
    # x_ref: (1, Cin_p, TS) f32 NCHW slab; w_ref: (Cin_p, P_p) bf16.
    # The channels-last layout change rides an in-kernel XLU transpose (stage
    # is memory-bound, so the transpose hides under DMA).
    xt = jnp.transpose(x_ref[0], (1, 0)).astype(MATMUL_DTYPE)      # (TS, Cin_p)
    h = jnp.dot(xt, w_ref[...], preferred_element_type=jnp.float32)
    stats_ref[...] = _partial_stats(h)                 # exact f32 partial stats
    h_ref[...] = h.astype(h_ref.dtype)                 # bf16 store (half HBM)


def _bn_relu_conv3x3_stats_kernel(h1c_ref, h1t_ref, h1b_ref, scale_ref,
                                  shift_ref, w2_ref, h2_ref, stats_ref,
                                  pad_ref):
    # BN1(affine) + ReLU + conv2 (3x3, pad=1) on one spatial strip of one
    # image, as 9 accumulating MXU dots (no K=9*P im2col slab).
    W = h1t_ref.shape[0]
    P = h1t_ref.shape[1]
    TH = h1c_ref.shape[0] // W
    s = pl.program_id(1)
    last = pl.num_programs(1) - 1
    scale = scale_ref[...]
    shift = shift_ref[...]

    def bn_relu(v):
        return jnp.maximum(v.astype(jnp.float32) * scale + shift, 0.0)

    center = bn_relu(h1c_ref[...]).reshape(TH, W, P)
    # Halo rows are zeroed at image boundaries (conv2 zero-pads AFTER BN+ReLU).
    top = bn_relu(h1t_ref[...]) * jnp.where(s == 0, 0.0, 1.0)
    bot = bn_relu(h1b_ref[...]) * jnp.where(s == last, 0.0, 1.0)

    # Fill the small per-strip padded scratch (fully rewritten every step, so
    # the grid stays megacore-safe).
    zcol = jnp.zeros((TH + 2, 1, P), jnp.float32)
    pad_ref[:, 0:1, :] = zcol
    pad_ref[:, W + 1:W + 2, :] = zcol
    pad_ref[0:1, 1:W + 1, :] = top.reshape(1, W, P)
    pad_ref[TH + 1:TH + 2, 1:W + 1, :] = bot.reshape(1, W, P)
    pad_ref[1:TH + 1, 1:W + 1, :] = center

    acc = jnp.zeros((TH * W, P), jnp.float32)
    for dh in range(3):
        for dw in range(3):
            win = pad_ref[dh:dh + TH, dw:dw + W, :].reshape(TH * W, P)
            acc = acc + jnp.dot(win.astype(MATMUL_DTYPE),
                                w2_ref[dh * 3 + dw],
                                preferred_element_type=jnp.float32)

    stats_ref[...] = _partial_stats(acc)
    h2_ref[...] = acc.astype(h2_ref.dtype)


def _bn_relu_conv1x1_stats_kernel(h_ref, scale_ref, shift_ref, w_ref,
                                  o_ref, stats_ref):
    # BN2(affine) + ReLU + conv3 (1x1 as matmul) + partial BN3 stats.
    a = jnp.maximum(h_ref[...].astype(jnp.float32) * scale_ref[...]
                    + shift_ref[...], 0.0)
    h = jnp.dot(a.astype(MATMUL_DTYPE), w_ref[...],
                preferred_element_type=jnp.float32)
    stats_ref[...] = _partial_stats(h)
    o_ref[...] = h.astype(o_ref.dtype)


def _bn_add_relu_kernel(h_ref, x_ref, scale_ref, shift_ref, o_ref):
    # BN3(affine) + residual add (exact f32 residual) + ReLU, emitted directly
    # back into the NCHW layout via an in-kernel transpose.
    y = h_ref[...].astype(jnp.float32) * scale_ref[...] + shift_ref[...]
    yt = jnp.transpose(y, (1, 0))                                   # (C4_p, TS)
    o_ref[0] = jnp.maximum(yt + x_ref[0], 0.0)


# ---------------------------------------------------------------------------
# wrapper
def _bottleneck_forward(x_nchw, params):
    (w1, g1, b1, w2, g2, b2, w3, g3, b3) = params
    N, Cin, H, W = x_nchw.shape
    P = w1.shape[1]
    C4 = w3.shape[1]
    assert Cin == C4, "downsample=None requires inplanes == planes * 4"

    Cin_p = _round_up(Cin, LANE)
    P_p = _round_up(P, LANE)
    C4_p = _round_up(C4, LANE)
    HW = H * W
    M = N * HW
    fp32 = jnp.float32

    TS = _pick_pixel_tile(HW, N)         # pixel tile for stages 1 / 4
    npt = HW // TS
    TH = _pick_strip_rows(H, W, N)       # spatial strip height for stage 2
    n_strips = H // TH
    TM = _pick_row_tile(M)               # row tile for stage 3
    nt = M // TM

    # ---- weights / BN params: pad to lane-dense widths, weights pre-cast ---
    w1_p = _pad_axis(_pad_axis(w1.astype(fp32), 0, Cin_p), 1, P_p).astype(MATMUL_DTYPE)
    w2_p = _pad_axis(_pad_axis(w2.astype(fp32), 1, P_p), 2, P_p).astype(MATMUL_DTYPE)  # (9,P_p,P_p)
    w3_p = _pad_axis(_pad_axis(w3.astype(fp32), 0, P_p), 1, C4_p).astype(MATMUL_DTYPE)
    g1_p = _pad_axis(g1.astype(fp32), 1, P_p)
    b1_p = _pad_axis(b1.astype(fp32), 1, P_p)
    g2_p = _pad_axis(g2.astype(fp32), 1, P_p)
    b2_p = _pad_axis(b2.astype(fp32), 1, P_p)
    g3_p = _pad_axis(g3.astype(fp32), 1, C4_p)
    b3_p = _pad_axis(b3.astype(fp32), 1, C4_p)

    # Keep x in its PyTorch NCHW layout (no external transpose round trips).
    # Channel pad is a no-op at real ResNet widths (Cin already 128-aligned).
    x_p = _pad_axis(x_nchw.astype(fp32), 1, Cin_p).reshape(N, Cin_p, HW)

    par1 = pltpu.CompilerParams(dimension_semantics=("parallel",))
    par2 = pltpu.CompilerParams(dimension_semantics=("parallel", "parallel"))

    # ---- stage 1: conv1 (1x1) + partial BN1 stats ---------------------------
    h1, st1 = pl.pallas_call(
        _conv1x1_stats_kernel,
        out_shape=(jax.ShapeDtypeStruct((M, P_p), ACT_DTYPE),
                   jax.ShapeDtypeStruct((N * npt, 2, P_p), fp32)),
        grid=(N, npt),
        in_specs=[pl.BlockSpec((1, Cin_p, TS), lambda n, s: (n, 0, s)),
                  pl.BlockSpec((Cin_p, P_p), lambda n, s: (0, 0))],
        out_specs=(pl.BlockSpec((TS, P_p), lambda n, s: (n * npt + s, 0)),
                   pl.BlockSpec((1, 2, P_p), lambda n, s: (n * npt + s, 0, 0))),
        compiler_params=par2,
        cost_estimate=pl.CostEstimate(
            flops=2 * M * Cin_p * P_p, transcendentals=0,
            bytes_accessed=4 * M * Cin_p + 2 * M * P_p + 2 * Cin_p * P_p),
    )(x_p, w1_p)
    scale1, shift1 = _scale_shift(st1, float(M), g1_p, b1_p)

    # ---- stage 2: BN1 + ReLU + conv2 (3x3, strip-tiled) + partial BN2 stats -
    # h1 is passed three times: the strip itself plus a 1-row halo above/below
    # (clamped at the image boundary and zeroed in-kernel).
    # NOTE: halo blocks assume W % 8 == 0 (true for the test and 56x56 stages).
    h2, st2 = pl.pallas_call(
        _bn_relu_conv3x3_stats_kernel,
        out_shape=(jax.ShapeDtypeStruct((M, P_p), ACT_DTYPE),
                   jax.ShapeDtypeStruct((N * n_strips, 2, P_p), fp32)),
        grid=(N, n_strips),
        in_specs=[
            pl.BlockSpec((TH * W, P_p), lambda n, s: (n * n_strips + s, 0)),
            pl.BlockSpec((W, P_p),
                         lambda n, s: (n * H + jnp.maximum(s * TH - 1, 0), 0)),
            pl.BlockSpec((W, P_p),
                         lambda n, s: (n * H + jnp.minimum((s + 1) * TH, H - 1), 0)),
            pl.BlockSpec((1, P_p), lambda n, s: (0, 0)),
            pl.BlockSpec((1, P_p), lambda n, s: (0, 0)),
            pl.BlockSpec((9, P_p, P_p), lambda n, s: (0, 0, 0)),
        ],
        out_specs=(pl.BlockSpec((TH * W, P_p), lambda n, s: (n * n_strips + s, 0)),
                   pl.BlockSpec((1, 2, P_p), lambda n, s: (n * n_strips + s, 0, 0))),
        scratch_shapes=[pltpu.VMEM((TH + 2, W + 2, P_p), fp32)],
        compiler_params=par2,
        cost_estimate=pl.CostEstimate(
            flops=2 * M * 9 * P_p * P_p, transcendentals=0,
            bytes_accessed=2 * (2 * M * P_p + 9 * P_p * P_p)),
    )(h1, h1, h1, scale1, shift1, w2_p)
    scale2, shift2 = _scale_shift(st2, float(M), g2_p, b2_p)

    # ---- stage 3: BN2 + ReLU + conv3 (1x1) + partial BN3 stats --------------
    h3, st3 = pl.pallas_call(
        _bn_relu_conv1x1_stats_kernel,
        out_shape=(jax.ShapeDtypeStruct((M, C4_p), ACT_DTYPE),
                   jax.ShapeDtypeStruct((nt, 2, C4_p), fp32)),
        grid=(nt,),
        in_specs=[pl.BlockSpec((TM, P_p), lambda i: (i, 0)),
                  pl.BlockSpec((1, P_p), lambda i: (0, 0)),
                  pl.BlockSpec((1, P_p), lambda i: (0, 0)),
                  pl.BlockSpec((P_p, C4_p), lambda i: (0, 0))],
        out_specs=(pl.BlockSpec((TM, C4_p), lambda i: (i, 0)),
                   pl.BlockSpec((1, 2, C4_p), lambda i: (i, 0, 0))),
        compiler_params=par1,
        cost_estimate=pl.CostEstimate(
            flops=2 * M * P_p * C4_p, transcendentals=0,
            bytes_accessed=2 * (M * P_p + P_p * C4_p + M * C4_p)),
    )(h2, scale2, shift2, w3_p)
    scale3, shift3 = _scale_shift(st3, float(M), g3_p, b3_p)

    # ---- stage 4: BN3 + residual add + ReLU, written back in NCHW -----------
    out_p = pl.pallas_call(
        _bn_add_relu_kernel,
        out_shape=jax.ShapeDtypeStruct((N, C4_p, HW), fp32),
        grid=(N, npt),
        in_specs=[pl.BlockSpec((TS, C4_p), lambda n, s: (n * npt + s, 0)),
                  pl.BlockSpec((1, C4_p, TS), lambda n, s: (n, 0, s)),
                  pl.BlockSpec((1, C4_p), lambda n, s: (0, 0)),
                  pl.BlockSpec((1, C4_p), lambda n, s: (0, 0))],
        out_specs=pl.BlockSpec((1, C4_p, TS), lambda n, s: (n, 0, s)),
        compiler_params=par2,
    )(h3, x_p, scale3, shift3)

    return out_p[:, :C4, :].reshape(N, C4, H, W)


bottleneck_pallas = jax.jit(_bottleneck_forward)


# ---------------------------------------------------------------------------
# References for the correctness check.
def bottleneck_ref_f32(x_nchw, params):
    # Original module semantics, all-f32.
    (w1, g1, b1, w2, g2, b2, w3, g3, b3) = params
    P = w1.shape[1]
    x = jnp.transpose(x_nchw, (0, 2, 3, 1)).astype(jnp.float32)

    def bn(y, g, b):
        mean = jnp.mean(y, axis=(0, 1, 2), keepdims=True)
        var = jnp.mean((y - mean) ** 2, axis=(0, 1, 2), keepdims=True)
        return (y - mean) * (g * lax.rsqrt(var + EPS)) + b

    h = jnp.einsum('nhwc,cd->nhwd', x, w1)
    h = jnp.maximum(bn(h, g1, b1), 0.0)
    h = lax.conv_general_dilated(h, w2.reshape(3, 3, P, P), (1, 1), 'SAME',
                                 dimension_numbers=('NHWC', 'HWIO', 'NHWC'))
    h = jnp.maximum(bn(h, g2, b2), 0.0)
    h = jnp.einsum('nhwc,cd->nhwd', h, w3)
    h = bn(h, g3, b3)
    out = jnp.maximum(h + x, 0.0)
    return jnp.transpose(out, (0, 3, 1, 2))


def bottleneck_ref_matched(x_nchw, params):
    # Mirrors the kernel's precision policy (bf16 MXU inputs / f32 accumulate,
    # bf16 intermediate storage, f32 batch stats taken pre-downcast, exact f32
    # residual) so the comparison isolates kernel-structure errors from the
    # intended low-precision policy.
    (w1, g1, b1, w2, g2, b2, w3, g3, b3) = params
    P = w1.shape[1]
    bf16, f32 = jnp.bfloat16, jnp.float32
    x = jnp.transpose(x_nchw, (0, 2, 3, 1)).astype(f32)

    def bn_affine(y, g, b):
        mean = jnp.mean(y, axis=(0, 1, 2), keepdims=True)
        var = jnp.maximum(jnp.mean(y * y, axis=(0, 1, 2), keepdims=True)
                          - mean * mean, 0.0)
        scale = g * lax.rsqrt(var + EPS)
        return scale, b - mean * scale

    h1 = jnp.einsum('nhwc,cd->nhwd', x.astype(bf16), w1.astype(bf16),
                    preferred_element_type=f32)
    sc1, sh1 = bn_affine(h1, g1, b1)
    a1 = jnp.maximum(h1.astype(bf16).astype(f32) * sc1 + sh1, 0.0)
    h2 = lax.conv_general_dilated(
        a1.astype(bf16), w2.reshape(3, 3, P, P).astype(bf16), (1, 1), 'SAME',
        dimension_numbers=('NHWC', 'HWIO', 'NHWC'), preferred_element_type=f32)
    sc2, sh2 = bn_affine(h2, g2, b2)
    a2 = jnp.maximum(h2.astype(bf16).astype(f32) * sc2 + sh2, 0.0)
    h3 = jnp.einsum('nhwc,cd->nhwd', a2.astype(bf16), w3.astype(bf16),
                    preferred_element_type=f32)
    sc3, sh3 = bn_affine(h3, g3, b3)
    out = jnp.maximum(h3.astype(bf16).astype(f32) * sc3 + sh3 + x, 0.0)
    return jnp.transpose(out, (0, 3, 1, 2))


def make_params(key, inplanes, planes):
    ks = jax.random.split(key, 9)
    Cin, P, Cout = inplanes, planes, planes * 4
    # Conv weights stored directly in matmul layout:
    #   w1: (Cin, P)    <- PyTorch conv1.weight (P, Cin, 1, 1) transposed
    #   w2: (9, P, P)   <- PyTorch conv2.weight (P, P, 3, 3) as [kh*3+kw, cin, cout]
    #   w3: (P, Cout)   <- PyTorch conv3.weight (Cout, P, 1, 1) transposed
    w1 = 0.2 * jax.random.normal(ks[0], (Cin, P), jnp.float32)
    w2 = 0.2 * jax.random.normal(ks[1], (9, P, P), jnp.float32)
    w3 = 0.2 * jax.random.normal(ks[2], (P, Cout), jnp.float32)
    g1 = 1.0 + 0.1 * jax.random.normal(ks[3], (1, P), jnp.float32)
    b1 = 0.1 * jax.random.normal(ks[4], (1, P), jnp.float32)
    g2 = 1.0 + 0.1 * jax.random.normal(ks[5], (1, P), jnp.float32)
    b2 = 0.1 * jax.random.normal(ks[6], (1, P), jnp.float32)
    g3 = 1.0 + 0.1 * jax.random.normal(ks[7], (1, Cout), jnp.float32)
    b3 = 0.1 * jax.random.normal(ks[8], (1, Cout), jnp.float32)
    return (w1, g1, b1, w2, g2, b2, w3, g3, b3)


if __name__ == "__main__":
    # Small shapes: batch=2, planes=4 -> inplanes = planes*4 = 16, spatial 16x16.
    N, planes, H, W = 2, 4, 16, 16
    inplanes = planes * 4

    key = jax.random.PRNGKey(0)
    kx, kp = jax.random.split(key)
    x = jax.random.normal(kx, (N, inplanes, H, W), jnp.float32)   # NCHW like PyTorch
    params = make_params(kp, inplanes, planes)

    out = jax.block_until_ready(bottleneck_pallas(x, params))
    assert out.shape == (N, inplanes, H, W)
    assert bool(jnp.all(jnp.isfinite(out)))

    # Tight check against a reference that uses the same precision policy
    # (validates the kernel structure: tiling, halos, BN stats, residual).
    ref_m = bottleneck_ref_matched(x, params)
    err_m = float(jnp.max(jnp.abs(out - ref_m)))
    assert err_m < 4e-2, f"mismatch vs matched-precision reference: {err_m}"

    # Looser sanity check against the pure-f32 module semantics: bf16 MXU
    # inputs at these tiny channel counts (fan-in 4/36) give a few-percent
    # relative deviation after BN normalization; real ResNet widths are far
    # better conditioned.
    ref_f = bottleneck_ref_f32(x, params)
    err_f_max = float(jnp.max(jnp.abs(out - ref_f)))
    err_f_mean = float(jnp.mean(jnp.abs(out - ref_f)))
    assert err_f_max < 2.5e-1 and err_f_mean < 4e-2, \
        f"drifted from f32 reference: max={err_f_max} mean={err_f_mean}"

    print("KERNEL_OK")
</pallas_src>

<mosaic_0001>
module attributes {stable_mosaic.version = 11 : i64} {
  func.func @_conv1x1_stats_kernel(%arg0: i32, %arg1: i32, %arg2: memref<1x128x128xf32, #tpu.memory_space<vmem>>, %arg3: memref<128x128xbf16, #tpu.memory_space<vmem>>, %arg4: memref<128x128xbf16, #tpu.memory_space<vmem>>, %arg5: memref<1x2x128xf32, #tpu.memory_space<vmem>>) attributes {dimension_semantics = [#tpu.dimension_semantics<parallel>, #tpu.dimension_semantics<parallel>], iteration_bounds = array<i64: 2, 2>, scalar_prefetch = 0 : i64, scratch_operands = 0 : i64, tpu.core_type = #tpu.core_type<tc>, window_params = [{transform_indices = @transform_0, window_bounds = array<i64: 1, 128, 128>}, {pipeline_mode = #tpu.pipeline_mode<synchronous>, transform_indices = @transform_1, window_bounds = array<i64: 128, 128>}, {transform_indices = @transform_2, window_bounds = array<i64: 128, 128>}, {transform_indices = @transform_3, window_bounds = array<i64: 1, 2, 128>}]} {
    %c0 = arith.constant 0 : index
    %c0_0 = arith.constant 0 : index
    %c0_1 = arith.constant 0 : index
    %0 = vector.load %arg2[%c0, %c0_0, %c0_1] : memref<1x128x128xf32, #tpu.memory_space<vmem>>, vector<1x128x128xf32>
    %1 = vector.shape_cast %0 : vector<1x128x128xf32> to vector<128x128xf32>
    %2 = tpu.transpose %1, [1, 0] : vector<128x128xf32> -> vector<128x128xf32>
    %3 = arith.truncf %2 : vector<128x128xf32> to vector<128x128xbf16>
    %c0_2 = arith.constant 0 : index
    %c0_3 = arith.constant 0 : index
    %4 = vector.load %arg3[%c0_2, %c0_3] : memref<128x128xbf16, #tpu.memory_space<vmem>>, vector<128x128xbf16>
    %cst = arith.constant dense<0.000000e+00> : vector<128x128xf32>
    %5 = tpu.matmul %3, %4, %cst {dimension_numbers = #tpu.dot_dimension_numbers<[1], [0], [0], [1], [0, 0, 1, 1], [], []>} : vector<128x128xbf16>, vector<128x128xbf16>, vector<128x128xf32> -> vector<128x128xf32>
    %cst_4 = arith.constant dense<0.000000e+00> : vector<128xf32>
    %6 = vector.multi_reduction <add>, %5, %cst_4 [0] : vector<128x128xf32> to vector<128xf32>
    %7 = vector.shape_cast %6 : vector<128xf32> to vector<1x128xf32>
    %8 = arith.mulf %5, %5 : vector<128x128xf32>
    %cst_5 = arith.constant dense<0.000000e+00> : vector<128xf32>
    %9 = vector.multi_reduction <add>, %8, %cst_5 [0] : vector<128x128xf32> to vector<128xf32>
    %10 = vector.shape_cast %9 : vector<128xf32> to vector<1x128xf32>
    %11 = tpu.concatenate %7, %10 in 0 : vector<1x128xf32>, vector<1x128xf32> -> vector<2x128xf32>
    %12 = vector.shape_cast %11 : vector<2x128xf32> to vector<1x2x128xf32>
    %c0_6 = arith.constant 0 : index
    %c0_7 = arith.constant 0 : index
    %c0_8 = arith.constant 0 : index
    %13 = vector.load %arg5[%c0_6, %c0_7, %c0_8] : memref<1x2x128xf32, #tpu.memory_space<vmem>>, vector<1x2x128xf32>
    tpu.vector_store %arg5[%c0_6, %c0_7, %c0_8], %12 {strides = array<i32>} : memref<1x2x128xf32, #tpu.memory_space<vmem>>, vector<1x2x128xf32>,
    %14 = arith.truncf %5 : vector<128x128xf32> to vector<128x128xbf16>
    %c0_9 = arith.constant 0 : index
    %c0_10 = arith.constant 0 : index
    %15 = vector.load %arg4[%c0_9, %c0_10] : memref<128x128xbf16, #tpu.memory_space<vmem>>, vector<128x128xbf16>
    tpu.vector_store %arg4[%c0_9, %c0_10], %14 {strides = array<i32>} : memref<128x128xbf16, #tpu.memory_space<vmem>>, vector<128x128xbf16>,
    return
  }
  func.func @transform_0(%arg0: i32, %arg1: i32) -> (i32, i32, i32) {
    %c0_i32 = arith.constant 0 : i32
    %c0_i32_0 = arith.constant 0 : i32
    return %arg0, %c0_i32, %arg1 : i32, i32, i32
  }
  func.func @transform_1(%arg0: i32, %arg1: i32) -> (i32, i32) {
    %c0_i32 = arith.constant 0 : i32
    %c0_i32_0 = arith.constant 0 : i32
    %c0_i32_1 = arith.constant 0 : i32
    return %c0_i32, %c0_i32_0 : i32, i32
  }
  func.func @transform_2(%arg0: i32, %arg1: i32) -> (i32, i32) {
    %c2_i32 = arith.constant 2 : i32
    %0 = arith.muli %arg0, %c2_i32 : i32
    %1 = arith.addi %0, %arg1 : i32
    %c0_i32 = arith.constant 0 : i32
    %c0_i32_0 = arith.constant 0 : i32
    return %1, %c0_i32 : i32, i32
  }
  func.func @transform_3(%arg0: i32, %arg1: i32) -> (i32, i32, i32) {
    %c2_i32 = arith.constant 2 : i32
    %0 = arith.muli %arg0, %c2_i32 : i32
    %1 = arith.addi %0, %arg1 : i32
    %c0_i32 = arith.constant 0 : i32
    %c0_i32_0 = arith.constant 0 : i32
    %c0_i32_1 = arith.constant 0 : i32
    return %1, %c0_i32, %c0_i32_0 : i32, i32, i32
  }
}

module attributes {stable_mosaic.version = 11 : i64} {
  func.func @_bn_relu_conv3x3_stats_kernel(%arg0: i32, %arg1: i32, %arg2: memref<128x128xbf16, #tpu.memory_space<vmem>>, %arg3: memref<16x128xbf16, #tpu.memory_space<vmem>>, %arg4: memref<16x128xbf16, #tpu.memory_space<vmem>>, %arg5: memref<1x128xf32, #tpu.memory_space<vmem>>, %arg6: memref<1x128xf32, #tpu.memory_space<vmem>>, %arg7: memref<9x128x128xbf16, #tpu.memory_space<vmem>>, %arg8: memref<128x128xbf16, #tpu.memory_space<vmem>>, %arg9: memref<1x2x128xf32, #tpu.memory_space<vmem>>, %arg10: memref<10x18x128xf32, #tpu.memory_space<vmem>>) attributes {dimension_semantics = [#tpu.dimension_semantics<parallel>, #tpu.dimension_semantics<parallel>], iteration_bounds = array<i64: 2, 2>, scalar_prefetch = 0 : i64, scratch_operands = 1 : i64, tpu.core_type = #tpu.core_type<tc>, window_params = [{transform_indices = @transform_0, window_bounds = array<i64: 128, 128>}, {transform_indices = @transform_1, window_bounds = array<i64: 16, 128>}, {transform_indices = @transform_2, window_bounds = array<i64: 16, 128>}, {pipeline_mode = #tpu.pipeline_mode<synchronous>, transform_indices = @transform_3, window_bounds = array<i64: 1, 128>}, {pipeline_mode = #tpu.pipeline_mode<synchronous>, transform_indices = @transform_4, window_bounds = array<i64: 1, 128>}, {pipeline_mode = #tpu.pipeline_mode<synchronous>, transform_indices = @transform_5, window_bounds = array<i64: 9, 128, 128>}, {transform_indices = @transform_6, window_bounds = array<i64: 128, 128>}, {transform_indices = @transform_7, window_bounds = array<i64: 1, 2, 128>}]} {
    %c0 = arith.constant 0 : index
    %c0_0 = arith.constant 0 : index
    %0 = vector.load %arg5[%c0, %c0_0] : memref<1x128xf32, #tpu.memory_space<vmem>>, vector<1x128xf32>
    %c0_1 = arith.constant 0 : index
    %c0_2 = arith.constant 0 : index
    %1 = vector.load %arg6[%c0_1, %c0_2] : memref<1x128xf32, #tpu.memory_space<vmem>>, vector<1x128xf32>
    %c0_3 = arith.constant 0 : index
    %c0_4 = arith.constant 0 : index
    %2 = vector.load %arg2[%c0_3, %c0_4] : memref<128x128xbf16, #tpu.memory_space<vmem>>, vector<128x128xbf16>
    %3 = arith.extf %2 : vector<128x128xbf16> to vector<128x128xf32>
    %4 = vector.broadcast %0 : vector<1x128xf32> to vector<128x128xf32>
    %5 = arith.mulf %3, %4 : vector<128x128xf32>
    %6 = vector.broadcast %1 : vector<1x128xf32> to vector<128x128xf32>
    %7 = arith.addf %5, %6 : vector<128x128xf32>
    %cst = arith.constant 0.000000e+00 : f32
    %8 = vector.broadcast %cst : f32 to vector<128x128xf32>
    %9 = arith.maximumf %7, %8 : vector<128x128xf32>
    %10 = vector.shape_cast %9 : vector<128x128xf32> to vector<8x16x128xf32>
    %c0_5 = arith.constant 0 : index
    %c0_6 = arith.constant 0 : index
    %11 = vector.load %arg3[%c0_5, %c0_6] : memref<16x128xbf16, #tpu.memory_space<vmem>>, vector<16x128xbf16>
    %12 = arith.extf %11 : vector<16x128xbf16> to vector<16x128xf32>
    %13 = vector.broadcast %0 : vector<1x128xf32> to vector<16x128xf32>
    %14 = arith.mulf %12, %13 : vector<16x128xf32>
    %15 = vector.broadcast %1 : vector<1x128xf32> to vector<16x128xf32>
    %16 = arith.addf %14, %15 : vector<16x128xf32>
    %cst_7 = arith.constant 0.000000e+00 : f32
    %17 = vector.broadcast %cst_7 : f32 to vector<16x128xf32>
    %18 = arith.maximumf %16, %17 : vector<16x128xf32>
    %c0_i32 = arith.constant 0 : i32
    %19 = arith.cmpi eq, %arg1, %c0_i32 : i32
    %cst_8 = arith.constant 0.000000e+00 : f32
    %cst_9 = arith.constant 1.000000e+00 : f32
    %20 = arith.select %19, %cst_8, %cst_9 : f32
    %21 = vector.broadcast %20 : f32 to vector<16x128xf32>
    %22 = arith.mulf %18, %21 : vector<16x128xf32>
    %c0_10 = arith.constant 0 : index
    %c0_11 = arith.constant 0 : index
    %23 = vector.load %arg4[%c0_10, %c0_11] : memref<16x128xbf16, #tpu.memory_space<vmem>>, vector<16x128xbf16>
    %24 = arith.extf %23 : vector<16x128xbf16> to vector<16x128xf32>
    %25 = vector.broadcast %0 : vector<1x128xf32> to vector<16x128xf32>
    %26 = arith.mulf %24, %25 : vector<16x128xf32>
    %27 = vector.broadcast %1 : vector<1x128xf32> to vector<16x128xf32>
    %28 = arith.addf %26, %27 : vector<16x128xf32>
    %cst_12 = arith.constant 0.000000e+00 : f32
    %29 = vector.broadcast %cst_12 : f32 to vector<16x128xf32>
    %30 = arith.maximumf %28, %29 : vector<16x128xf32>
    %c1_i32 = arith.constant 1 : i32
    %31 = arith.cmpi eq, %arg1, %c1_i32 : i32
    %cst_13 = arith.constant 0.000000e+00 : f32
    %cst_14 = arith.constant 1.000000e+00 : f32
    %32 = arith.select %31, %cst_13, %cst_14 : f32
    %33 = vector.broadcast %32 : f32 to vector<16x128xf32>
    %34 = arith.mulf %30, %33 : vector<16x128xf32>
    %cst_15 = arith.constant 0.000000e+00 : f32
    %35 = vector.broadcast %cst_15 : f32 to vector<10x1x128xf32>
    %c0_16 = arith.constant 0 : index
    %c0_17 = arith.constant 0 : index
    %c0_18 = arith.constant 0 : index
    %36 = vector.load %arg10[%c0_16, %c0_17, %c0_18] : memref<10x18x128xf32, #tpu.memory_space<vmem>>, vector<10x1x128xf32>
    tpu.vector_store %arg10[%c0_16, %c0_17, %c0_18], %35 {strides = array<i32>} : memref<10x18x128xf32, #tpu.memory_space<vmem>>, vector<10x1x128xf32>,
    %c0_19 = arith.constant 0 : index
    %c17 = arith.constant 17 : index
    %c0_20 = arith.constant 0 : index
    %37 = vector.load %arg10[%c0_19, %c17, %c0_20] : memref<10x18x128xf32, #tpu.memory_space<vmem>>, vector<10x1x128xf32>
    tpu.vector_store %arg10[%c0_19, %c17, %c0_20], %35 {strides = array<i32>} : memref<10x18x128xf32, #tpu.memory_space<vmem>>, vector<10x1x128xf32>,
    %38 = vector.shape_cast %22 : vector<16x128xf32> to vector<1x16x128xf32>
    %c0_21 = arith.constant 0 : index
    %c1 = arith.constant 1 : index
    %c0_22 = arith.constant 0 : index
    %39 = vector.load %arg10[%c0_21, %c1, %c0_22] : memref<10x18x128xf32, #tpu.memory_space<vmem>>, vector<1x16x128xf32>
    tpu.vector_store %arg10[%c0_21, %c1, %c0_22], %38 {strides = array<i32>} : memref<10x18x128xf32, #tpu.memory_space<vmem>>, vector<1x16x128xf32>,
    %40 = vector.shape_cast %34 : vector<16x128xf32> to vector<1x16x128xf32>
    %c9 = arith.constant 9 : index
    %c1_23 = arith.constant 1 : index
    %c0_24 = arith.constant 0 : index
    %41 = vector.load %arg10[%c9, %c1_23, %c0_24] : memref<10x18x128xf32, #tpu.memory_space<vmem>>, vector<1x16x128xf32>
    tpu.vector_store %arg10[%c9, %c1_23, %c0_24], %40 {strides = array<i32>} : memref<10x18x128xf32, #tpu.memory_space<vmem>>, vector<1x16x128xf32>,
    %c1_25 = arith.constant 1 : index
    %c1_26 = arith.constant 1 : index
    %c0_27 = arith.constant 0 : index
    %42 = vector.load %arg10[%c1_25, %c1_26, %c0_27] : memref<10x18x128xf32, #tpu.memory_space<vmem>>, vector<8x16x128xf32>
    tpu.vector_store %arg10[%c1_25, %c1_26, %c0_27], %10 {strides = array<i32>} : memref<10x18x128xf32, #tpu.memory_space<vmem>>, vector<8x16x128xf32>,
    %cst_28 = arith.constant 0.000000e+00 : f32
    %43 = vector.broadcast %cst_28 : f32 to vector<128x128xf32>
    %c0_29 = arith.constant 0 : index
    %c0_30 = arith.constant 0 : index
    %c0_31 = arith.constant 0 : index
    %44 = vector.load %arg10[%c0_29, %c0_30, %c0_31] : memref<10x18x128xf32, #tpu.memory_space<vmem>>, vector<8x16x128xf32>
    %45 = vector.shape_cast %44 : vector<8x16x128xf32> to vector<128x128xf32>
    %46 = arith.truncf %45 : vector<128x128xf32> to vector<128x128xbf16>
    %c0_32 = arith.constant 0 : index
    %c0_33 = arith.constant 0 : index
    %c0_34 = arith.constant 0 : index
    %47 = vector.load %arg7[%c0_32, %c0_33, %c0_34] : memref<9x128x128xbf16, #tpu.memory_space<vmem>>, vector<1x128x128xbf16>
    %48 = vector.shape_cast %47 : vector<1x128x128xbf16> to vector<128x128xbf16>
    %cst_35 = arith.constant dense<0.000000e+00> : vector<128x128xf32>
    %49 = tpu.matmul %46, %48, %cst_35 {dimension_numbers = #tpu.dot_dimension_numbers<[1], [0], [0], [1], [0, 0, 1, 1], [], []>} : vector<128x128xbf16>, vector<128x128xbf16>, vector<128x128xf32> -> vector<128x128xf32>
    %50 = arith.addf %43, %49 : vector<128x128xf32>
    %c0_36 = arith.constant 0 : index
    %c1_37 = arith.constant 1 : index
    %c0_38 = arith.constant 0 : index
    %51 = vector.load %arg10[%c0_36, %c1_37, %c0_38] : memref<10x18x128xf32, #tpu.memory_space<vmem>>, vector<8x16x128xf32>
    %52 = vector.shape_cast %51 : vector<8x16x128xf32> to vector<128x128xf32>
    %53 = arith.truncf %52 : vector<128x128xf32> to vector<128x128xbf16>
    %c1_39 = arith.constant 1 : index
    %c0_40 = arith.constant 0 : index
    %c0_41 = arith.constant 0 : index
    %54 = vector.load %arg7[%c1_39, %c0_40, %c0_41] : memref<9x128x128xbf16, #tpu.memory_space<vmem>>, vector<1x128x128xbf16>
    %55 = vector.shape_cast %54 : vector<1x128x128xbf16> to vector<128x128xbf16>
    %cst_42 = arith.constant dense<0.000000e+00> : vector<128x128xf32>
    %56 = tpu.matmul %53, %55, %cst_42 {dimension_numbers = #tpu.dot_dimension_numbers<[1], [0], [0], [1], [0, 0, 1, 1], [], []>} : vector<128x128xbf16>, vector<128x128xbf16>, vector<128x128xf32> -> vector<128x128xf32>
    %57 = arith.addf %50, %56 : vector<128x128xf32>
    %c0_43 = arith.constant 0 : index
    %c2 = arith.constant 2 : index
    %c0_44 = arith.constant 0 : index
    %58 = vector.load %arg10[%c0_43, %c2, %c0_44] : memref<10x18x128xf32, #tpu.memory_space<vmem>>, vector<8x16x128xf32>
    %59 = vector.shape_cast %58 : vector<8x16x128xf32> to vector<128x128xf32>
    %60 = arith.truncf %59 : vector<128x128xf32> to vector<128x128xbf16>
    %c2_45 = arith.constant 2 : index
    %c0_46 = arith.constant 0 : index
    %c0_47 = arith.constant 0 : index
    %61 = vector.load %arg7[%c2_45, %c0_46, %c0_47] : memref<9x128x128xbf16, #tpu.memory_space<vmem>>, vector<1x128x128xbf16>
    %62 = vector.shape_cast %61 : vector<1x128x128xbf16> to vector<128x128xbf16>
    %cst_48 = arith.constant dense<0.000000e+00> : vector<128x128xf32>
    %63 = tpu.matmul %60, %62, %cst_48 {dimension_numbers = #tpu.dot_dimension_numbers<[1], [0], [0], [1], [0, 0, 1, 1], [], []>} : vector<128x128xbf16>, vector<128x128xbf16>, vector<128x128xf32> -> vector<128x128xf32>
    %64 = arith.addf %57, %63 : vector<128x128xf32>
    %c1_49 = arith.constant 1 : index
    %c0_50 = arith.constant 0 : index
    %c0_51 = arith.constant 0 : index
    %65 = vector.load %arg10[%c1_49, %c0_50, %c0_51] : memref<10x18x128xf32, #tpu.memory_space<vmem>>, vector<8x16x128xf32>
    %66 = vector.shape_cast %65 : vector<8x16x128xf32> to vector<128x128xf32>
    %67 = arith.truncf %66 : vector<128x128xf32> to vector<128x128xbf16>
    %c3 = arith.constant 3 : index
    %c0_52 = arith.constant 0 : index
    %c0_53 = arith.constant 0 : index
    %68 = vector.load %arg7[%c3, %c0_52, %c0_53] : memref<9x128x128xbf16, #tpu.memory_space<vmem>>, vector<1x128x128xbf16>
    %69 = vector.shape_cast %68 : vector<1x128x128xbf16> to vector<128x128xbf16>
    %cst_54 = arith.constant dense<0.000000e+00> : vector<128x128xf32>
    %70 = tpu.matmul %67, %69, %cst_54 {dimension_numbers = #tpu.dot_dimension_numbers<[1], [0], [0], [1], [0, 0, 1, 1], [], []>} : vector<128x128xbf16>, vector<128x128xbf16>, vector<128x128xf32> -> vector<128x128xf32>
    %71 = arith.addf %64, %70 : vector<128x128xf32>
    %c1_55 = arith.constant 1 : index
    %c1_56 = arith.constant 1 : index
    %c0_57 = arith.constant 0 : index
    %72 = vector.load %arg10[%c1_55, %c1_56, %c0_57] : memref<10x18x128xf32, #tpu.memory_space<vmem>>, vector<8x16x128xf32>
    %73 = vector.shape_cast %72 : vector<8x16x128xf32> to vector<128x128xf32>
    %74 = arith.truncf %73 : vector<128x128xf32> to vector<128x128xbf16>
    %c4 = arith.constant 4 : index
    %c0_58 = arith.constant 0 : index
    %c0_59 = arith.constant 0 : index
    %75 = vector.load %arg7[%c4, %c0_58, %c0_59] : memref<9x128x128xbf16, #tpu.memory_space<vmem>>, vector<1x128x128xbf16>
    %76 = vector.shape_cast %75 : vector<1x128x128xbf16> to vector<128x128xbf16>
    %cst_60 = arith.constant dense<0.000000e+00> : vector<128x128xf32>
    %77 = tpu.matmul %74, %76, %cst_60 {dimension_numbers = #tpu.dot_dimension_numbers<[1], [0], [0], [1], [0, 0, 1, 1], [], []>} : vector<128x128xbf16>, vector<128x128xbf16>, vector<128x128xf32> -> vector<128x128xf32>
    %78 = arith.addf %71, %77 : vector<128x128xf32>
    %c1_61 = arith.constant 1 : index
    %c2_62 = arith.constant 2 : index
    %c0_63 = arith.constant 0 : index
    %79 = vector.load %arg10[%c1_61, %c2_62, %c0_63] : memref<10x18x128xf32, #tpu.memory_space<vmem>>, vector<8x16x128xf32>
    %80 = vector.shape_cast %79 : vector<8x16x128xf32> to vector<128x128xf32>
    %81 = arith.truncf %80 : vector<128x128xf32> to vector<128x128xbf16>
    %c5 = arith.constant 5 : index
    %c0_64 = arith.constant 0 : index
    %c0_65 = arith.constant 0 : index
    %82 = vector.load %arg7[%c5, %c0_64, %c0_65] : memref<9x128x128xbf16, #tpu.memory_space<vmem>>, vector<1x128x128xbf16>
    %83 = vector.shape_cast %82 : vector<1x128x128xbf16> to vector<128x128xbf16>
    %cst_66 = arith.constant dense<0.000000e+00> : vector<128x128xf32>
    %84 = tpu.matmul %81, %83, %cst_66 {dimension_numbers = #tpu.dot_dimension_numbers<[1], [0], [0], [1], [0, 0, 1, 1], [], []>} : vector<128x128xbf16>, vector<128x128xbf16>, vector<128x128xf32> -> vector<128x128xf32>
    %85 = arith.addf %78, %84 : vector<128x128xf32>
    %c2_67 = arith.constant 2 : index
    %c0_68 = arith.constant 0 : index
    %c0_69 = arith.constant 0 : index
    %86 = vector.load %arg10[%c2_67, %c0_68, %c0_69] : memref<10x18x128xf32, #tpu.memory_space<vmem>>, vector<8x16x128xf32>
    %87 = vector.shape_cast %86 : vector<8x16x128xf32> to vector<128x128xf32>
    %88 = arith.truncf %87 : vector<128x128xf32> to vector<128x128xbf16>
    %c6 = arith.constant 6 : index
    %c0_70 = arith.constant 0 : index
    %c0_71 = arith.constant 0 : index
    %89 = vector.load %arg7[%c6, %c0_70, %c0_71] : memref<9x128x128xbf16, #tpu.memory_space<vmem>>, vector<1x128x128xbf16>
    %90 = vector.shape_cast %89 : vector<1x128x128xbf16> to vector<128x128xbf16>
    %cst_72 = arith.constant dense<0.000000e+00> : vector<128x128xf32>
    %91 = tpu.matmul %88, %90, %cst_72 {dimension_numbers = #tpu.dot_dimension_numbers<[1], [0], [0], [1], [0, 0, 1, 1], [], []>} : vector<128x128xbf16>, vector<128x128xbf16>, vector<128x128xf32> -> vector<128x128xf32>
    %92 = arith.addf %85, %91 : vector<128x128xf32>
    %c2_73 = arith.constant 2 : index
    %c1_74 = arith.constant 1 : index
    %c0_75 = arith.constant 0 : index
    %93 = vector.load %arg10[%c2_73, %c1_74, %c0_75] : memref<10x18x128xf32, #tpu.memory_space<vmem>>, vector<8x16x128xf32>
    %94 = vector.shape_cast %93 : vector<8x16x128xf32> to vector<128x128xf32>
    %95 = arith.truncf %94 : vector<128x128xf32> to vector<128x128xbf16>
    %c7 = arith.constant 7 : index
    %c0_76 = arith.constant 0 : index
    %c0_77 = arith.constant 0 : index
    %96 = vector.load %arg7[%c7, %c0_76, %c0_77] : memref<9x128x128xbf16, #tpu.memory_space<vmem>>, vector<1x128x128xbf16>
    %97 = vector.shape_cast %96 : vector<1x128x128xbf16> to vector<128x128xbf16>
    %cst_78 = arith.constant dense<0.000000e+00> : vector<128x128xf32>
    %98 = tpu.matmul %95, %97, %cst_78 {dimension_numbers = #tpu.dot_dimension_numbers<[1], [0], [0], [1], [0, 0, 1, 1], [], []>} : vector<128x128xbf16>, vector<128x128xbf16>, vector<128x128xf32> -> vector<128x128xf32>
    %99 = arith.addf %92, %98 : vector<128x128xf32>
    %c2_79 = arith.constant 2 : index
    %c2_80 = arith.constant 2 : index
    %c0_81 = arith.constant 0 : index
    %100 = vector.load %arg10[%c2_79, %c2_80, %c0_81] : memref<10x18x128xf32, #tpu.memory_space<vmem>>, vector<8x16x128xf32>
    %101 = vector.shape_cast %100 : vector<8x16x128xf32> to vector<128x128xf32>
    %102 = arith.truncf %101 : vector<128x128xf32> to vector<128x128xbf16>
    %c8 = arith.constant 8 : index
    %c0_82 = arith.constant 0 : index
    %c0_83 = arith.constant 0 : index
    %103 = vector.load %arg7[%c8, %c0_82, %c0_83] : memref<9x128x128xbf16, #tpu.memory_space<vmem>>, vector<1x128x128xbf16>
    %104 = vector.shape_cast %103 : vector<1x128x128xbf16> to vector<128x128xbf16>
    %cst_84 = arith.constant dense<0.000000e+00> : vector<128x128xf32>
    %105 = tpu.matmul %102, %104, %cst_84 {dimension_numbers = #tpu.dot_dimension_numbers<[1], [0], [0], [1], [0, 0, 1, 1], [], []>} : vector<128x128xbf16>, vector<128x128xbf16>, vector<128x128xf32> -> vector<128x128xf32>
    %106 = arith.addf %99, %105 : vector<128x128xf32>
    %cst_85 = arith.constant dense<0.000000e+00> : vector<128xf32>
    %107 = vector.multi_reduction <add>, %106, %cst_85 [0] : vector<128x128xf32> to vector<128xf32>
    %108 = vector.shape_cast %107 : vector<128xf32> to vector<1x128xf32>
    %109 = arith.mulf %106, %106 : vector<128x128xf32>
    %cst_86 = arith.constant dense<0.000000e+00> : vector<128xf32>
    %110 = vector.multi_reduction <add>, %109, %cst_86 [0] : vector<128x128xf32> to vector<128xf32>
    %111 = vector.shape_cast %110 : vector<128xf32> to vector<1x128xf32>
    %112 = tpu.concatenate %108, %111 in 0 : vector<1x128xf32>, vector<1x128xf32> -> vector<2x128xf32>
    %113 = vector.shape_cast %112 : vector<2x128xf32> to vector<1x2x128xf32>
    %c0_87 = arith.constant 0 : index
    %c0_88 = arith.constant 0 : index
    %c0_89 = arith.constant 0 : index
    %114 = vector.load %arg9[%c0_87, %c0_88, %c0_89] : memref<1x2x128xf32, #tpu.memory_space<vmem>>, vector<1x2x128xf32>
    tpu.vector_store %arg9[%c0_87, %c0_88, %c0_89], %113 {strides = array<i32>} : memref<1x2x128xf32, #tpu.memory_space<vmem>>, vector<1x2x128xf32>,
    %115 = arith.truncf %106 : vector<128x128xf32> to vector<128x128xbf16>
    %c0_90 = arith.constant 0 : index
    %c0_91 = arith.constant 0 : index
    %116 = vector.load %arg8[%c0_90, %c0_91] : memref<128x128xbf16, #tpu.memory_space<vmem>>, vector<128x128xbf16>
    tpu.vector_store %arg8[%c0_90, %c0_91], %115 {strides = array<i32>} : memref<128x128xbf16, #tpu.memory_space<vmem>>, vector<128x128xbf16>,
    return
  }
  func.func @transform_0(%arg0: i32, %arg1: i32) -> (i32, i32) {
    %c2_i32 = arith.constant 2 : i32
    %0 = arith.muli %arg0, %c2_i32 : i32
    %1 = arith.addi %0, %arg1 : i32
    %c0_i32 = arith.constant 0 : i32
    %c0_i32_0 = arith.constant 0 : i32
    return %1, %c0_i32 : i32, i32
  }
  func.func @transform_1(%arg0: i32, %arg1: i32) -> (i32, i32) {
    %c16_i32 = arith.constant 16 : i32
    %0 = arith.muli %arg0, %c16_i32 : i32
    %c8_i32 = arith.constant 8 : i32
    %1 = arith.muli %arg1, %c8_i32 : i32
    %c1_i32 = arith.constant 1 : i32
    %2 = arith.subi %1, %c1_i32 : i32
    %c0_i32 = arith.constant 0 : i32
    %3 = arith.maxsi %2, %c0_i32 : i32
    %4 = arith.addi %0, %3 : i32
    %c0_i32_0 = arith.constant 0 : i32
    %c0_i32_1 = arith.constant 0 : i32
    return %4, %c0_i32_0 : i32, i32
  }
  func.func @transform_2(%arg0: i32, %arg1: i32) -> (i32, i32) {
    %c16_i32 = arith.constant 16 : i32
    %0 = arith.muli %arg0, %c16_i32 : i32
    %c1_i32 = arith.constant 1 : i32
    %1 = arith.addi %arg1, %c1_i32 : i32
    %c8_i32 = arith.constant 8 : i32
    %2 = arith.muli %1, %c8_i32 : i32
    %c15_i32 = arith.constant 15 : i32
    %3 = arith.minsi %2, %c15_i32 : i32
    %4 = arith.addi %0, %3 : i32
    %c0_i32 = arith.constant 0 : i32
    %c0_i32_0 = arith.constant 0 : i32
    return %4, %c0_i32 : i32, i32
  }
  func.func @transform_3(%arg0: i32, %arg1: i32) -> (i32, i32) {
    %c0_i32 = arith.constant 0 : i32
    %c0_i32_0 = arith.constant 0 : i32
    %c0_i32_1 = arith.constant 0 : i32
    return %c0_i32, %c0_i32_0 : i32, i32
  }
  func.func @transform_4(%arg0: i32, %arg1: i32) -> (i32, i32) {
    %c0_i32 = arith.constant 0 : i32
    %c0_i32_0 = arith.constant 0 : i32
    %c0_i32_1 = arith.constant 0 : i32
    return %c0_i32, %c0_i32_0 : i32, i32
  }
  func.func @transform_5(%arg0: i32, %arg1: i32) -> (i32, i32, i32) {
    %c0_i32 = arith.constant 0 : i32
    %c0_i32_0 = arith.constant 0 : i32
    %c0_i32_1 = arith.constant 0 : i32
    %c0_i32_2 = arith.constant 0 : i32
    return %c0_i32, %c0_i32_0, %c0_i32_1 : i32, i32, i32
  }
  func.func @transform_6(%arg0: i32, %arg1: i32) -> (i32, i32) {
    %c2_i32 = arith.constant 2 : i32
    %0 = arith.muli %arg0, %c2_i32 : i32
    %1 = arith.addi %0, %arg1 : i32
    %c0_i32 = arith.constant 0 : i32
    %c0_i32_0 = arith.constant 0 : i32
    return %1, %c0_i32 : i32, i32
  }
  func.func @transform_7(%arg0: i32, %arg1: i32) -> (i32, i32, i32) {
    %c2_i32 = arith.constant 2 : i32
    %0 = arith.muli %arg0, %c2_i32 : i32
    %1 = arith.addi %0, %arg1 : i32
    %c0_i32 = arith.constant 0 : i32
    %c0_i32_0 = arith.constant 0 : i32
    %c0_i32_1 = arith.constant 0 : i32
    return %1, %c0_i32, %c0_i32_0 : i32, i32, i32
  }
}

module attributes {stable_mosaic.version = 11 : i64} {
  func.func @_bn_relu_conv1x1_stats_kernel(%arg0: i32, %arg1: memref<128x128xbf16, #tpu.memory_space<vmem>>, %arg2: memref<1x128xf32, #tpu.memory_space<vmem>>, %arg3: memref<1x128xf32, #tpu.memory_space<vmem>>, %arg4: memref<128x128xbf16, #tpu.memory_space<vmem>>, %arg5: memref<128x128xbf16, #tpu.memory_space<vmem>>, %arg6: memref<1x2x128xf32, #tpu.memory_space<vmem>>) attributes {dimension_semantics = [#tpu.dimension_semantics<parallel>], iteration_bounds = array<i64: 4>, scalar_prefetch = 0 : i64, scratch_operands = 0 : i64, tpu.core_type = #tpu.core_type<tc>, window_params = [{transform_indices = @transform_0, window_bounds = array<i64: 128, 128>}, {pipeline_mode = #tpu.pipeline_mode<synchronous>, transform_indices = @transform_1, window_bounds = array<i64: 1, 128>}, {pipeline_mode = #tpu.pipeline_mode<synchronous>, transform_indices = @transform_2, window_bounds = array<i64: 1, 128>}, {pipeline_mode = #tpu.pipeline_mode<synchronous>, transform_indices = @transform_3, window_bounds = array<i64: 128, 128>}, {transform_indices = @transform_4, window_bounds = array<i64: 128, 128>}, {transform_indices = @transform_5, window_bounds = array<i64: 1, 2, 128>}]} {
    %c0 = arith.constant 0 : index
    %c0_0 = arith.constant 0 : index
    %0 = vector.load %arg1[%c0, %c0_0] : memref<128x128xbf16, #tpu.memory_space<vmem>>, vector<128x128xbf16>
    %1 = arith.extf %0 : vector<128x128xbf16> to vector<128x128xf32>
    %c0_1 = arith.constant 0 : index
    %c0_2 = arith.constant 0 : index
    %2 = vector.load %arg2[%c0_1, %c0_2] : memref<1x128xf32, #tpu.memory_space<vmem>>, vector<1x128xf32>
    %3 = vector.broadcast %2 : vector<1x128xf32> to vector<128x128xf32>
    %4 = arith.mulf %1, %3 : vector<128x128xf32>
    %c0_3 = arith.constant 0 : index
    %c0_4 = arith.constant 0 : index
    %5 = vector.load %arg3[%c0_3, %c0_4] : memref<1x128xf32, #tpu.memory_space<vmem>>, vector<1x128xf32>
    %6 = vector.broadcast %5 : vector<1x128xf32> to vector<128x128xf32>
    %7 = arith.addf %4, %6 : vector<128x128xf32>
    %cst = arith.constant 0.000000e+00 : f32
    %8 = vector.broadcast %cst : f32 to vector<128x128xf32>
    %9 = arith.maximumf %7, %8 : vector<128x128xf32>
    %10 = arith.truncf %9 : vector<128x128xf32> to vector<128x128xbf16>
    %c0_5 = arith.constant 0 : index
    %c0_6 = arith.constant 0 : index
    %11 = vector.load %arg4[%c0_5, %c0_6] : memref<128x128xbf16, #tpu.memory_space<vmem>>, vector<128x128xbf16>
    %cst_7 = arith.constant dense<0.000000e+00> : vector<128x128xf32>
    %12 = tpu.matmul %10, %11, %cst_7 {dimension_numbers = #tpu.dot_dimension_numbers<[1], [0], [0], [1], [0, 0, 1, 1], [], []>} : vector<128x128xbf16>, vector<128x128xbf16>, vector<128x128xf32> -> vector<128x128xf32>
    %cst_8 = arith.constant dense<0.000000e+00> : vector<128xf32>
    %13 = vector.multi_reduction <add>, %12, %cst_8 [0] : vector<128x128xf32> to vector<128xf32>
    %14 = vector.shape_cast %13 : vector<128xf32> to vector<1x128xf32>
    %15 = arith.mulf %12, %12 : vector<128x128xf32>
    %cst_9 = arith.constant dense<0.000000e+00> : vector<128xf32>
    %16 = vector.multi_reduction <add>, %15, %cst_9 [0] : vector<128x128xf32> to vector<128xf32>
    %17 = vector.shape_cast %16 : vector<128xf32> to vector<1x128xf32>
    %18 = tpu.concatenate %14, %17 in 0 : vector<1x128xf32>, vector<1x128xf32> -> vector<2x128xf32>
    %19 = vector.shape_cast %18 : vector<2x128xf32> to vector<1x2x128xf32>
    %c0_10 = arith.constant 0 : index
    %c0_11 = arith.constant 0 : index
    %c0_12 = arith.constant 0 : index
    %20 = vector.load %arg6[%c0_10, %c0_11, %c0_12] : memref<1x2x128xf32, #tpu.memory_space<vmem>>, vector<1x2x128xf32>
    tpu.vector_store %arg6[%c0_10, %c0_11, %c0_12], %19 {strides = array<i32>} : memref<1x2x128xf32, #tpu.memory_space<vmem>>, vector<1x2x128xf32>,
    %21 = arith.truncf %12 : vector<128x128xf32> to vector<128x128xbf16>
    %c0_13 = arith.constant 0 : index
    %c0_14 = arith.constant 0 : index
    %22 = vector.load %arg5[%c0_13, %c0_14] : memref<128x128xbf16, #tpu.memory_space<vmem>>, vector<128x128xbf16>
    tpu.vector_store %arg5[%c0_13, %c0_14], %21 {strides = array<i32>} : memref<128x128xbf16, #tpu.memory_space<vmem>>, vector<128x128xbf16>,
    return
  }
  func.func @transform_0(%arg0: i32) -> (i32, i32) {
    %c0_i32 = arith.constant 0 : i32
    %c0_i32_0 = arith.constant 0 : i32
    return %arg0, %c0_i32 : i32, i32
  }
  func.func @transform_1(%arg0: i32) -> (i32, i32) {
    %c0_i32 = arith.constant 0 : i32
    %c0_i32_0 = arith.constant 0 : i32
    %c0_i32_1 = arith.constant 0 : i32
    return %c0_i32, %c0_i32_0 : i32, i32
  }
  func.func @transform_2(%arg0: i32) -> (i32, i32) {
    %c0_i32 = arith.constant 0 : i32
    %c0_i32_0 = arith.constant 0 : i32
    %c0_i32_1 = arith.constant 0 : i32
    return %c0_i32, %c0_i32_0 : i32, i32
  }
  func.func @transform_3(%arg0: i32) -> (i32, i32) {
    %c0_i32 = arith.constant 0 : i32
    %c0_i32_0 = arith.constant 0 : i32
    %c0_i32_1 = arith.constant 0 : i32
    return %c0_i32, %c0_i32_0 : i32, i32
  }
  func.func @transform_4(%arg0: i32) -> (i32, i32) {
    %c0_i32 = arith.constant 0 : i32
    %c0_i32_0 = arith.constant 0 : i32
    return %arg0, %c0_i32 : i32, i32
  }
  func.func @transform_5(%arg0: i32) -> (i32, i32, i32) {
    %c0_i32 = arith.constant 0 : i32
    %c0_i32_0 = arith.constant 0 : i32
    %c0_i32_1 = arith.constant 0 : i32
    return %arg0, %c0_i32, %c0_i32_0 : i32, i32, i32
  }
}

module attributes {stable_mosaic.version = 11 : i64} {
  func.func @_bn_add_relu_kernel(%arg0: i32, %arg1: i32, %arg2: memref<128x128xbf16, #tpu.memory_space<vmem>>, %arg3: memref<1x128x128xf32, #tpu.memory_space<vmem>>, %arg4: memref<1x128xf32, #tpu.memory_space<vmem>>, %arg5: memref<1x128xf32, #tpu.memory_space<vmem>>, %arg6: memref<1x128x128xf32, #tpu.memory_space<vmem>>) attributes {dimension_semantics = [#tpu.dimension_semantics<parallel>, #tpu.dimension_semantics<parallel>], iteration_bounds = array<i64: 2, 2>, scalar_prefetch = 0 : i64, scratch_operands = 0 : i64, tpu.core_type = #tpu.core_type<tc>, window_params = [{transform_indices = @transform_0, window_bounds = array<i64: 128, 128>}, {transform_indices = @transform_1, window_bounds = array<i64: 1, 128, 128>}, {pipeline_mode = #tpu.pipeline_mode<synchronous>, transform_indices = @transform_2, window_bounds = array<i64: 1, 128>}, {pipeline_mode = #tpu.pipeline_mode<synchronous>, transform_indices = @transform_3, window_bounds = array<i64: 1, 128>}, {transform_indices = @transform_4, window_bounds = array<i64: 1, 128, 128>}]} {
    %c0 = arith.constant 0 : index
    %c0_0 = arith.constant 0 : index
    %0 = vector.load %arg2[%c0, %c0_0] : memref<128x128xbf16, #tpu.memory_space<vmem>>, vector<128x128xbf16>
    %1 = arith.extf %0 : vector<128x128xbf16> to vector<128x128xf32>
    %c0_1 = arith.constant 0 : index
    %c0_2 = arith.constant 0 : index
    %2 = vector.load %arg4[%c0_1, %c0_2] : memref<1x128xf32, #tpu.memory_space<vmem>>, vector<1x128xf32>
    %3 = vector.broadcast %2 : vector<1x128xf32> to vector<128x128xf32>
    %4 = arith.mulf %1, %3 : vector<128x128xf32>
    %c0_3 = arith.constant 0 : index
    %c0_4 = arith.constant 0 : index
    %5 = vector.load %arg5[%c0_3, %c0_4] : memref<1x128xf32, #tpu.memory_space<vmem>>, vector<1x128xf32>
    %6 = vector.broadcast %5 : vector<1x128xf32> to vector<128x128xf32>
    %7 = arith.addf %4, %6 : vector<128x128xf32>
    %8 = tpu.transpose %7, [1, 0] : vector<128x128xf32> -> vector<128x128xf32>
    %c0_5 = arith.constant 0 : index
    %c0_6 = arith.constant 0 : index
    %c0_7 = arith.constant 0 : index
    %9 = vector.load %arg3[%c0_5, %c0_6, %c0_7] : memref<1x128x128xf32, #tpu.memory_space<vmem>>, vector<1x128x128xf32>
    %10 = vector.shape_cast %9 : vector<1x128x128xf32> to vector<128x128xf32>
    %11 = arith.addf %8, %10 : vector<128x128xf32>
    %cst = arith.constant 0.000000e+00 : f32
    %12 = vector.broadcast %cst : f32 to vector<128x128xf32>
    %13 = arith.maximumf %11, %12 : vector<128x128xf32>
    %c0_8 = arith.constant 0 : index
    %c0_9 = arith.constant 0 : index
    %c0_10 = arith.constant 0 : index
    %14 = vector.load %arg6[%c0_8, %c0_9, %c0_10] : memref<1x128x128xf32, #tpu.memory_space<vmem>>, vector<1x128x128xf32>
    %15 = vector.shape_cast %14 : vector<1x128x128xf32> to vector<128x128xf32>
    %16 = vector.shape_cast %13 : vector<128x128xf32> to vector<1x128x128xf32>
    tpu.vector_store %arg6[%c0_8, %c0_9, %c0_10], %16 {strides = array<i32>} : memref<1x128x128xf32, #tpu.memory_space<vmem>>, vector<1x128x128xf32>,
    return
  }
  func.func @transform_0(%arg0: i32, %arg1: i32) -> (i32, i32) {
    %c2_i32 = arith.constant 2 : i32
    %0 = arith.muli %arg0, %c2_i32 : i32
    %1 = arith.addi %0, %arg1 : i32
    %c0_i32 = arith.constant 0 : i32
    %c0_i32_0 = arith.constant 0 : i32
    return %1, %c0_i32 : i32, i32
  }
  func.func @transform_1(%arg0: i32, %arg1: i32) -> (i32, i32, i32) {
    %c0_i32 = arith.constant 0 : i32
    %c0_i32_0 = arith.constant 0 : i32
    return %arg0, %c0_i32, %arg1 : i32, i32, i32
  }
  func.func @transform_2(%arg0: i32, %arg1: i32) -> (i32, i32) {
    %c0_i32 = arith.constant 0 : i32
    %c0_i32_0 = arith.constant 0 : i32
    %c0_i32_1 = arith.constant 0 : i32
    return %c0_i32, %c0_i32_0 : i32, i32
  }
  func.func @transform_3(%arg0: i32, %arg1: i32) -> (i32, i32) {
    %c0_i32 = arith.constant 0 : i32
    %c0_i32_0 = arith.constant 0 : i32
    %c0_i32_1 = arith.constant 0 : i32
    return %c0_i32, %c0_i32_0 : i32, i32
  }
  func.func @transform_4(%arg0: i32, %arg1: i32) -> (i32, i32, i32) {
    %c0_i32 = arith.constant 0 : i32
    %c0_i32_0 = arith.constant 0 : i32
    return %arg0, %c0_i32, %arg1 : i32, i32, i32
  }
}

</mosaic_0001>

<llo_original>
// kernel: _bottleneck_forward.4
$region0: #{_bottleneck_forward.4}
  #allocation0 [shape = 'u32[]', space=smem, size = 0x4, offset = 0x4, fixed_abs, tag = 'smem constant byte address 0x4 - core index']
  #allocation1 [shape = 'u32[144,128]{1,0:T(1,128)}', space=vmem, size = 0x12000, scoped, tag = 'internal scratch']
  %s0 = inlined_call_operand.vmem [shape: f32[2,128,256], index: 0, kind: input, shape index: {}]
  %s1 = inlined_call_operand.vmem [shape: bf16[128,128], index: 1, kind: input, shape index: {}]
  %s2 = inlined_call_operand.vmem [shape: bf16[512,128], index: 2, kind: output, shape index: {0}]
  %s3 = inlined_call_operand.vmem [shape: f32[4,2,128], index: 3, kind: output, shape index: {1}]
  %4 = xla_tuple %s2, %s3
  %s5 = sld [smem:[#allocation0]]
  $region87: #{_bottleneck_forward.4} parent=0
    _
  %s7 = ssub.s32 1, %s5
  %s8 = scalar_select 0, %s7, %s5
  $region1: #{_bottleneck_forward.4} parent=0
    #allocation2 [shape = 'u8[131072]{0}', space=vmem, size = 0x20000, scoped, tag = 'input window, operand 0']
    loop: start=0, step=1, limit=6
    $region2: #{_bottleneck_forward.4} parent=1 // loop_pre_header
      _
    $region3: #{_bottleneck_forward.4} parent=1 // loop_header
      %s10 = sphi 0, %s14
      %p11 = scmp.ge.s32.totalorder %s10, 6
      %s17 = sphi 0, %s29
      %s18 = sphi 0, %s25
      %s19 = sphi 0, %s17
      %s20 = sphi 0, %s18
      %s21 = sphi 0, %s19
      %s22 = sphi 0, %s20
      %s34 = sphi 0, %s36
      %s37 = sphi 0, %s34
      %s38 = sphi 0, %s37
      %s54 = sphi 0, %s38
      %s58 = sphi 0, %s58
      %s60 = sphi 0, %s58
      %s61 = sphi 0, %s60
      %s75 = sphi 0, %s61
      %s85 = sphi 0, %s87
      %s88 = sphi 0, %s85
      %s89 = sphi 0, %s88
      %s105 = sphi 0, %s89
      %s115 = sphi 0, %s117
      %s118 = sphi 0, %s115
      %s119 = sphi 0, %s118
      %s135 = sphi 0, %s119
    $region4: #{_bottleneck_forward.4} parent=1 // loop_header_branch
      %13 = sbr.rel (%p11) target = $region8
    $region5: #{_bottleneck_forward.4} parent=1 // loop_body
      %s15 = ssub.s32 %s10, 1
      %s16 = ssub.s32 %s10, 2
      %s23 = sadd.s32 1, %s18
      %p24 = scmp.ge.s32.totalorder %s23, 2
      %s25 = scalar_select %p24, 0, %s23
      %s26 = sadd.s32 1, %s17
      %s27 = scalar_select %p24, %s26, %s17
      %p28 = scmp.ge.s32.totalorder %s27, 2
      %s29 = scalar_select %p28, 0, %s27
      %s30 = ssub.s32 %s17, %s29
      %s31 = ssub.s32 %s18, %s25
      %s32 = sor.u32 %s30, %s31
      %p33 = scmp.eq.s32.totalorder %s32, 0
      %s35 = sadd.s32 %s34, 1
      %s36 = scalar_select %p33, %s34, %s35
      %p39 = pneg %p33
      %p40 = scmp.eq.s32.totalorder %s10, 3
      %p41 = por %p39, %p40
      %p42 = scmp.ne.s32.totalorder %s34, %s37
      %p43 = scmp.eq.s32.totalorder %s10, 0
      %p44 = por %p42, %p43
      %p45 = scmp.ne.s32.totalorder %s34, %s37
      %p46 = scmp.eq.s32.totalorder %s15, 3
      %p47 = por %p45, %p46
      %p48 = scmp.ne.s32.totalorder %s37, %s38
      %p49 = scmp.eq.s32.totalorder %s15, 0
      %p50 = por %p48, %p49
      %p51 = scmp.ne.s32.totalorder %s37, %s38
      %p52 = scmp.eq.s32.totalorder %s16, 3
      %p53 = por %p51, %p52
      %p55 = scmp.ne.s32.totalorder %s38, %s54
      %p56 = scmp.eq.s32.totalorder %s16, 0
      %p57 = por %p55, %p56
      %s59 = sadd.s32 %s58, 1
      %p62 = scmp.eq.s32.totalorder %s10, 3
      %p63 = scmp.ne.s32.totalorder %s58, %s60
      %p64 = scmp.eq.s32.totalorder %s10, 0
      %p65 = por %p63, %p64
      %p66 = scmp.ne.s32.totalorder %s58, %s60
      %p67 = scmp.eq.s32.totalorder %s15, 3
      %p68 = por %p66, %p67
      %p69 = scmp.ne.s32.totalorder %s60, %s61
      %p70 = scmp.eq.s32.totalorder %s15, 0
      %p71 = por %p69, %p70
      %p72 = scmp.ne.s32.totalorder %s60, %s61
      %p73 = scmp.eq.s32.totalorder %s16, 3
      %p74 = por %p72, %p73
      %p76 = scmp.ne.s32.totalorder %s61, %s75
      %p77 = scmp.eq.s32.totalorder %s16, 0
      %p78 = por %p76, %p77
      %s79 = smul.u32 %s17, 2
      %s80 = sadd.s32 %s79, %s18
      %s81 = smul.u32 %s29, 2
      %s82 = sadd.s32 %s81, %s25
      %s83 = ssub.s32 %s80, %s82
      %p84 = scmp.eq.s32.totalorder %s83, 0
      %s86 = sadd.s32 %s85, 1
      %s87 = scalar_select %p84, %s85, %s86
      %p90 = pneg %p84
      %p91 = scmp.eq.s32.totalorder %s10, 3
      %p92 = por %p90, %p91
      %p93 = scmp.ne.s32.totalorder %s85, %s88
      %p94 = scmp.eq.s32.totalorder %s10, 0
      %p95 = por %p93, %p94
      %p96 = scmp.ne.s32.totalorder %s85, %s88
      %p97 = scmp.eq.s32.totalorder %s15, 3
      %p98 = por %p96, %p97
      %p99 = scmp.ne.s32.totalorder %s88, %s89
      %p100 = scmp.eq.s32.totalorder %s15, 0
      %p101 = por %p99, %p100
      %p102 = scmp.ne.s32.totalorder %s88, %s89
      %p103 = scmp.eq.s32.totalorder %s16, 3
      %p104 = por %p102, %p103
      %p106 = scmp.ne.s32.totalorder %s89, %s105
      %p107 = scmp.eq.s32.totalorder %s16, 0
      %p108 = por %p106, %p107
      %s109 = smul.u32 %s17, 2
      %s110 = sadd.s32 %s109, %s18
      %s111 = smul.u32 %s29, 2
      %s112 = sadd.s32 %s111, %s25
      %s113 = ssub.s32 %s110, %s112
      %p114 = scmp.eq.s32.totalorder %s113, 0
      %s116 = sadd.s32 %s115, 1
      %s117 = scalar_select %p114, %s115, %s116
      %p120 = pneg %p114
      %p121 = scmp.eq.s32.totalorder %s10, 3
      %p122 = por %p120, %p121
      %p123 = scmp.ne.s32.totalorder %s115, %s118
      %p124 = scmp.eq.s32.totalorder %s10, 0
      %p125 = por %p123, %p124
      %p126 = scmp.ne.s32.totalorder %s115, %s118
      %p127 = scmp.eq.s32.totalorder %s15, 3
      %p128 = por %p126, %p127
      %p129 = scmp.ne.s32.totalorder %s118, %s119
      %p130 = scmp.eq.s32.totalorder %s15, 0
      %p131 = por %p129, %p130
      %p132 = scmp.ne.s32.totalorder %s118, %s119
      %p133 = scmp.eq.s32.totalorder %s16, 3
      %p134 = por %p132, %p133
      %p136 = scmp.ne.s32.totalorder %s119, %s135
      %p137 = scmp.eq.s32.totalorder %s16, 0
      %p138 = por %p136, %p137
      %p139 = scmp.le.s32.totalorder 1, %s10
      %p140 = scmp.lt.s32.totalorder %s10, 5
      %p141 = pnand %p139, %p140
      %p142 = pneg %p141
      // Predicated region
      $region9: #{_bottleneck_forward.4} parent=5 // pred_check
        _
      $region10: #{_bottleneck_forward.4} parent=5 // pred_check_branch
        %144 = sbr.rel (%p141) target = $region12
      $region11: #{_bottleneck_forward.4} parent=5 // pred_region
        %s145 = ssub.s32 %s10, 1
        // Predicated region
        $region13: #{_bottleneck_forward.4} parent=11 // pred_check
          %p146 = pneg %p71
        $region14: #{_bottleneck_forward.4} parent=11 // pred_check_branch
          %148 = sbr.rel (%p146) target = $region16
        $region15: #{_bottleneck_forward.4} parent=11 // pred_region
          _
        $region16: #{_bottleneck_forward.4} parent=11 // pred_fallthru
          _
      $region12: #{_bottleneck_forward.4} parent=5 // pred_fallthru
        _
      %p149 = scmp.lt.s32.totalorder %s10, 4
      // Predicated region
      $region17: #{_bottleneck_forward.4} parent=5 // pred_check
        %p150 = pneg %p149
      $region18: #{_bottleneck_forward.4} parent=5 // pred_check_branch
        %152 = sbr.rel (%p150) target = $region20
      $region19: #{_bottleneck_forward.4} parent=5 // pred_region
        // Predicated region
        $region21: #{_bottleneck_forward.4} parent=19 // pred_check
          %p153 = pneg %p44
        $region22: #{_bottleneck_forward.4} parent=19 // pred_check_branch
          %155 = sbr.rel (%p153) target = $region24
        $region23: #{_bottleneck_forward.4} parent=19 // pred_region
          %s156 = sand.u32 %s34, 1
          %s157 = sand.u32 %s34, 1
          %s158 = smul.addr %s157, 128
          %s159 = scalar_lea.vmem [#allocation2], %s158
          %s160 = smul.addr %s17, 32
          %s161 = sadd.s32 %s18, %s160
          %s162 = smul.addr %s161, 8
          %s163 = scalar_lea.vmem %s0, %s162
          // Predicated region
          $region25: #{_bottleneck_forward.4} parent=23 // pred_check
            _
          $region26: #{_bottleneck_forward.4} parent=23 // pred_check_branch
            %165 = sbr.rel (0) target = $region28
          $region27: #{_bottleneck_forward.4} parent=23 // pred_region
            // Predicated region
            $region29: #{_bottleneck_forward.4} parent=27 // pred_check
              _
            $region30: #{_bottleneck_forward.4} parent=27 // pred_check_branch
              %167 = sbr.rel (0) target = $region32
            $region31: #{_bottleneck_forward.4} parent=27 // pred_region
              // Predicated region
              $region44: #{_bottleneck_forward.4} parent=31 // pred_check
                _
              $region45: #{_bottleneck_forward.4} parent=31 // pred_check_branch
                %213 = sbr.rel (0) target = $region47
              $region46: #{_bottleneck_forward.4} parent=31 // pred_region
                loop: start=0, step=1, limit=1
                $region48: #{_bottleneck_forward.4} parent=46 // loop_pre_header
                  _
                $region49: #{_bottleneck_forward.4} parent=46 // loop_header
                  %s215 = sphi 0, %s219
                  %p216 = scmp.ge.s32.totalorder %s215, 1
                  %s220 = sphi %s163, %s163
                  %s221 = sphi %s159, %s159
                $region50: #{_bottleneck_forward.4} parent=46 // loop_header_branch
                  %218 = sbr.rel (%p216) target = $region54
                $region51: #{_bottleneck_forward.4} parent=46 // loop_body
                  %v222 = vld [vmem:[%s220] sm:$0xff]
                  %223 = vst [vmem:[%s221] sm:$0xff] %v222
                  %v224 = vld [vmem:[%s220 + $0x10] sm:$0xff]
                  %225 = vst [vmem:[%s221 + $0x8] sm:$0xff] %v224
                  %v226 = vld [vmem:[%s220 + $0x20] sm:$0xff]
                  %227 = vst [vmem:[%s221 + $0x10] sm:$0xff] %v226
                  %v228 = vld [vmem:[%s220 + $0x30] sm:$0xff]
                  %229 = vst [vmem:[%s221 + $0x18] sm:$0xff] %v228
                  %v230 = vld [vmem:[%s220 + $0x40] sm:$0xff]
                  %231 = vst [vmem:[%s221 + $0x20] sm:$0xff] %v230
                  %v232 = vld [vmem:[%s220 + $0x50] sm:$0xff]
                  %233 = vst [vmem:[%s221 + $0x28] sm:$0xff] %v232
                  %v234 = vld [vmem:[%s220 + $0x60] sm:$0xff]
                  %235 = vst [vmem:[%s221 + $0x30] sm:$0xff] %v234
                  %v236 = vld [vmem:[%s220 + $0x70] sm:$0xff]
                  %237 = vst [vmem:[%s221 + $0x38] sm:$0xff] %v236
                  %v238 = vld [vmem:[%s220 + $0x80] sm:$0xff]
                  %239 = vst [vmem:[%s221 + $0x40] sm:$0xff] %v238
                  %v240 = vld [vmem:[%s220 + $0x90] sm:$0xff]
                  %241 = vst [vmem:[%s221 + $0x48] sm:$0xff] %v240
                  %v242 = vld [vmem:[%s220 + $0xa0] sm:$0xff]
                  %243 = vst [vmem:[%s221 + $0x50] sm:$0xff] %v242
                  %v244 = vld [vmem:[%s220 + $0xb0] sm:$0xff]
                  %245 = vst [vmem:[%s221 + $0x58] sm:$0xff] %v244
                  %v246 = vld [vmem:[%s220 + $0xc0] sm:$0xff]
                  %247 = vst [vmem:[%s221 + $0x60] sm:$0xff] %v246
                  %v248 = vld [vmem:[%s220 + $0xd0] sm:$0xff]
                  %249 = vst [vmem:[%s221 + $0x68] sm:$0xff] %v248
                  %v250 = vld [vmem:[%s220 + $0xe0] sm:$0xff]
                  %251 = vst [vmem:[%s221 + $0x70] sm:$0xff] %v250
                  %v252 = vld [vmem:[%s220 + $0xf0] sm:$0xff]
                  %253 = vst [vmem:[%s221 + $0x78] sm:$0xff] %v252
                $region52: #{_bottleneck_forward.4} parent=46 // loop_footer
                  %s219 = sadd.s32 1, %s215
                $region53: #{_bottleneck_forward.4} parent=46 // loop_footer_branch
                  %214 = sbr.rel target = $region49
                $region54: #{_bottleneck_forward.4} parent=46 // loop_exit
                  _
              $region47: #{_bottleneck_forward.4} parent=31 // pred_fallthru
                _
              // Predicated region
              $region55: #{_bottleneck_forward.4} parent=31 // pred_check
                _
              $region56: #{_bottleneck_forward.4} parent=31 // pred_check_branch
                %255 = sbr.rel target = $region58
              $region57: #{_bottleneck_forward.4} parent=31 // pred_region
                _
              $region58: #{_bottleneck_forward.4} parent=31 // pred_fallthru
                _
            $region32: #{_bottleneck_forward.4} parent=27 // pred_fallthru
              _
            // Predicated region
            $region33: #{_bottleneck_forward.4} parent=27 // pred_check
              _
            $region34: #{_bottleneck_forward.4} parent=27 // pred_check_branch
              %169 = sbr.rel target = $region36
            $region35: #{_bottleneck_forward.4} parent=27 // pred_region
              %s171 = ssub.s32 256, 1
              loop: start=0, step=1, limit=1
              $region37: #{_bottleneck_forward.4} parent=35 // loop_pre_header
                _
              $region38: #{_bottleneck_forward.4} parent=35 // loop_header
                %s173 = sphi 0, %s177
                %p174 = scmp.ge.s32.totalorder %s173, 1
                %s178 = sphi %s163, %s163
                %s179 = sphi %s159, %s159
              $region39: #{_bottleneck_forward.4} parent=35 // loop_header_branch
                %176 = sbr.rel (%p174) target = $region43
              $region40: #{_bottleneck_forward.4} parent=35 // loop_body
                %v180 = vld [vmem:[%s178] sm:%s171]
                %181 = vst [vmem:[%s179] sm:%s171] %v180
                %v182 = vld [vmem:[%s178 + $0x10] sm:%s171]
                %183 = vst [vmem:[%s179 + $0x8] sm:%s171] %v182
                %v184 = vld [vmem:[%s178 + $0x20] sm:%s171]
                %185 = vst [vmem:[%s179 + $0x10] sm:%s171] %v184
                %v186 = vld [vmem:[%s178 + $0x30] sm:%s171]
                %187 = vst [vmem:[%s179 + $0x18] sm:%s171] %v186
                %v188 = vld [vmem:[%s178 + $0x40] sm:%s171]
                %189 = vst [vmem:[%s179 + $0x20] sm:%s171] %v188
                %v190 = vld [vmem:[%s178 + $0x50] sm:%s171]
                %191 = vst [vmem:[%s179 + $0x28] sm:%s171] %v190
                %v192 = vld [vmem:[%s178 + $0x60] sm:%s171]
                %193 = vst [vmem:[%s179 + $0x30] sm:%s171] %v192
                %v194 = vld [vmem:[%s178 + $0x70] sm:%s171]
                %195 = vst [vmem:[%s179 + $0x38] sm:%s171] %v194
                %v196 = vld [vmem:[%s178 + $0x80] sm:%s171]
                %197 = vst [vmem:[%s179 + $0x40] sm:%s171] %v196
                %v198 = vld [vmem:[%s178 + $0x90] sm:%s171]
                %199 = vst [vmem:[%s179 + $0x48] sm:%s171] %v198
                %v200 = vld [vmem:[%s178 + $0xa0] sm:%s171]
                %201 = vst [vmem:[%s179 + $0x50] sm:%s171] %v200
                %v202 = vld [vmem:[%s178 + $0xb0] sm:%s171]
                %203 = vst [vmem:[%s179 + $0x58] sm:%s171] %v202
                %v204 = vld [vmem:[%s178 + $0xc0] sm:%s171]
                %205 = vst [vmem:[%s179 + $0x60] sm:%s171] %v204
                %v206 = vld [vmem:[%s178 + $0xd0] sm:%s171]
                %207 = vst [vmem:[%s179 + $0x68] sm:%s171] %v206
                %v208 = vld [vmem:[%s178 + $0xe0] sm:%s171]
                %209 = vst [vmem:[%s179 + $0x70] sm:%s171] %v208
                %v210 = vld [vmem:[%s178 + $0xf0] sm:%s171]
                %211 = vst [vmem:[%s179 + $0x78] sm:%s171] %v210
              $region41: #{_bottleneck_forward.4} parent=35 // loop_footer
                %s177 = sadd.s32 1, %s173
              $region42: #{_bottleneck_forward.4} parent=35 // loop_footer_branch
                %172 = sbr.rel target = $region38
              $region43: #{_bottleneck_forward.4} parent=35 // loop_exit
                _
            $region36: #{_bottleneck_forward.4} parent=27 // pred_fallthru
              _
          $region28: #{_bottleneck_forward.4} parent=23 // pred_fallthru
            _
          %256 = vnop
        $region24: #{_bottleneck_forward.4} parent=19 // pred_fallthru
          _
      $region20: #{_bottleneck_forward.4} parent=5 // pred_fallthru
        _
      %p257 = scmp.le.s32.totalorder 1, %s10
      %p258 = scmp.lt.s32.totalorder %s10, 5
      %p259 = pnand %p257, %p258
      %p260 = pneg %p259
      // Predicated region
      $region59: #{_bottleneck_forward.4} parent=5 // pred_check
        _
      $region60: #{_bottleneck_forward.4} parent=5 // pred_check_branch
        %262 = sbr.rel (%p259) target = $region62
      $region61: #{_bottleneck_forward.4} parent=5 // pred_region
        %s263 = ssub.s32 %s10, 1
        %s264 = sand.u32 %s37, 1
        %s265 = sand.u32 %s37, 1
        %s266 = smul.addr %s265, 128
        %s267 = scalar_lea.vmem [#allocation2], %s266
        // Predicated region
        $region63: #{_bottleneck_forward.4} parent=61 // pred_check
          %p268 = pneg %p50
        $region64: #{_bottleneck_forward.4} parent=61 // pred_check_branch
          %270 = sbr.rel (%p268) target = $region66
        $region65: #{_bottleneck_forward.4} parent=61 // pred_region
          _
        $region66: #{_bottleneck_forward.4} parent=61 // pred_fallthru
          _
        %s271 = sand.u32 %s37, 1
        %s272 = sand.u32 %s37, 1
        %s273 = smul.addr %s272, 128
        %s274 = scalar_lea.vmem [#allocation2], %s273
        %p275 = pneg %p50
        %p276 = pneg %p47
        %p277 = pneg %p71
        %p278 = pneg %p68
        %p279 = pneg %p101
        %p280 = pneg %p98
        %s281 = smul.u32 %s19, 2
        %s282 = sadd.s32 %s281, %s20
        %s283 = smul.u32 16, %s282
        %p284 = scmp.lt.s32.totalorder %s283, 63
        %s285 = scalar_select %p284, %s283, 63
        %s286 = smul.addr %s285, 4
        %s287 = scalar_lea.vmem %s2, %s286
        %p288 = pneg %p131
        %p289 = pneg %p128
        %s290 = smul.u32 %s19, 2
        %s291 = sadd.s32 %s290, %s20
        %p292 = scmp.lt.s32.totalorder %s291, 3
        %s293 = scalar_select %p292, %s291, 3
        %s294 = smul.addr %s293, 2
        %s295 = scalar_lea.vmem %s3, %s294
        %s296 = smul.u32 %s19, 2
        %s297 = sadd.s32 %s296, %s20
        %s298 = smul.u32 16, %s297
        %p299 = scmp.lt.s32.totalorder %s298, 63
        %s300 = scalar_select %p299, %s298, 63
        %s301 = smul.addr %s300, 4
        %s302 = scalar_lea.vmem %s2, %s301
        %s303 = smul.u32 %s19, 2
        %s304 = sadd.s32 %s303, %s20
        %s305 = smul.u32 16, %s304
        %s306 = smul.u32 %s19, 2
        %s307 = sadd.s32 %s306, %s20
        %p308 = scmp.lt.s32.totalorder %s307, 3
        %s309 = scalar_select %p308, %s307, 3
        %s310 = smul.addr %s309, 2
        %s311 = scalar_lea.vmem %s3, %s310
        %s312 = smul.u32 %s19, 2
        %s313 = sadd.s32 %s312, %s20
        %v315 = vld [vmem:[%s267] sm:$0xff]
        %v316 = vld [vmem:[%s267 + $0x8] sm:$0xff]
        %v317 = vld [vmem:[%s267 + $0x10] sm:$0xff]
        %v318 = vld [vmem:[%s267 + $0x18] sm:$0xff]
        %v319 = vld [vmem:[%s267 + $0x20] sm:$0xff]
        %v320 = vld [vmem:[%s267 + $0x28] sm:$0xff]
        %v321 = vld [vmem:[%s267 + $0x30] sm:$0xff]
        %v322 = vld [vmem:[%s267 + $0x38] sm:$0xff]
        %v323 = vld [vmem:[%s267 + $0x40] sm:$0xff]
        %v324 = vld [vmem:[%s267 + $0x48] sm:$0xff]
        %v325 = vld [vmem:[%s267 + $0x50] sm:$0xff]
        %v326 = vld [vmem:[%s267 + $0x58] sm:$0xff]
        %v327 = vld [vmem:[%s267 + $0x60] sm:$0xff]
        %v328 = vld [vmem:[%s267 + $0x68] sm:$0xff]
        %v329 = vld [vmem:[%s267 + $0x70] sm:$0xff]
        %v330 = vld [vmem:[%s267 + $0x78] sm:$0xff]
        %331 = vxpose.xlu0.b32.start [1/16] %v315, 128
        %332 = vxpose.xlu0.b32.cont [2/16] %v316, 128
        %333 = vxpose.xlu0.b32.cont [3/16] %v317, 128
        %334 = vxpose.xlu0.b32.cont [4/16] %v318, 128
        %335 = vxpose.xlu0.b32.cont [5/16] %v319, 128
        %336 = vxpose.xlu0.b32.cont [6/16] %v320, 128
        %337 = vxpose.xlu0.b32.cont [7/16] %v321, 128
        %338 = vxpose.xlu0.b32.cont [8/16] %v322, 128
        %339 = vxpose.xlu0.b32.cont [9/16] %v323, 128
        %340 = vxpose.xlu0.b32.cont [10/16] %v324, 128
        %341 = vxpose.xlu0.b32.cont [11/16] %v325, 128
        %342 = vxpose.xlu0.b32.cont [12/16] %v326, 128
        %343 = vxpose.xlu0.b32.cont [13/16] %v327, 128
        %344 = vxpose.xlu0.b32.cont [14/16] %v328, 128
        %345 = vxpose.xlu0.b32.cont [15/16] %v329, 128
        %346 = vxpose.xlu0.b32.end [16/16] %v330, 128
        %v347 = vpop.trf.xlu0
        %v348 = vpop.trf.xlu0
        %v349 = vpop.trf.xlu0
        %v350 = vpop.trf.xlu0
        %v351 = vpop.trf.xlu0
        %v352 = vpop.trf.xlu0
        %v353 = vpop.trf.xlu0
        %v354 = vpop.trf.xlu0
        %v355 = vpop.trf.xlu0
        %v356 = vpop.trf.xlu0
        %v357 = vpop.trf.xlu0
        %v358 = vpop.trf.xlu0
        %v359 = vpop.trf.xlu0
        %v360 = vpop.trf.xlu0
        %v361 = vpop.trf.xlu0
        %v362 = vpop.trf.xlu0
        %v363 = vpack.c.bf16 %v348, %v347
        %v364 = vpack.c.bf16 %v350, %v349
        %v365 = vpack.c.bf16 %v352, %v351
        %v366 = vpack.c.bf16 %v354, %v353
        %v367 = vpack.c.bf16 %v356, %v355
        %v368 = vpack.c.bf16 %v358, %v357
        %v369 = vpack.c.bf16 %v360, %v359
        %v370 = vpack.c.bf16 %v362, %v361
        %v371 = vld [vmem:[%s1] sm:$0xf]
        %v372 = vld [vmem:[%s1 + $0x4] sm:$0xf]
        %v373 = vld [vmem:[%s1 + $0x8] sm:$0xf]
        %v374 = vld [vmem:[%s1 + $0xc] sm:$0xf]
        %v375 = vld [vmem:[%s1 + $0x10] sm:$0xf]
        %v376 = vld [vmem:[%s1 + $0x14] sm:$0xf]
        %v377 = vld [vmem:[%s1 + $0x18] sm:$0xf]
        %v378 = vld [vmem:[%s1 + $0x1c] sm:$0xf]
        %v379 = vld [vmem:[%s1 + $0x20] sm:$0xf]
        %v380 = vld [vmem:[%s1 + $0x24] sm:$0xf]
        %v381 = vld [vmem:[%s1 + $0x28] sm:$0xf]
        %v382 = vld [vmem:[%s1 + $0x2c] sm:$0xf]
        %v383 = vld [vmem:[%s1 + $0x30] sm:$0xf]
        %v384 = vld [vmem:[%s1 + $0x34] sm:$0xf]
        %v385 = vld [vmem:[%s1 + $0x38] sm:$0xf]
        %v386 = vld [vmem:[%s1 + $0x3c] sm:$0xf]
        %v403 = vunpack.c.l.b16 %v371
        %v404 = vunpack.c.l.b16 %v372
        %v405 = vunpack.c.l.b16 %v373
        %v406 = vunpack.c.l.b16 %v374
        %v407 = vunpack.c.l.b16 %v375
        %v408 = vunpack.c.l.b16 %v376
        %v409 = vunpack.c.l.b16 %v377
        %v410 = vunpack.c.l.b16 %v378
        %v411 = vunpack.c.l.b16 %v379
        %v412 = vunpack.c.l.b16 %v380
        %v413 = vunpack.c.l.b16 %v381
        %v414 = vunpack.c.l.b16 %v382
        %v415 = vunpack.c.l.b16 %v383
        %v416 = vunpack.c.l.b16 %v384
        %v417 = vunpack.c.l.b16 %v385
        %v418 = vunpack.c.l.b16 %v386
        %v419 = vpack.c.b16 %v404, %v403
        %v420 = vpack.c.b16 %v406, %v405
        %v421 = vpack.c.b16 %v408, %v407
        %v422 = vpack.c.b16 %v410, %v409
        %v423 = vpack.c.b16 %v412, %v411
        %v424 = vpack.c.b16 %v414, %v413
        %v425 = vpack.c.b16 %v416, %v415
        %v426 = vpack.c.b16 %v418, %v417
        %435 = vmatprep.subr.bf16.mxu0 0
        %436 = vmatpush1.bf16.msra.mxu0 %v426
        %437 = vmatprep.subr.bf16.mxu0 0
        %438 = vmatpush1.bf16.msra.mxu0 %v425
        %439 = vmatprep.subr.bf16.mxu0 0
        %440 = vmatpush1.bf16.msra.mxu0 %v424
        %441 = vmatprep.subr.bf16.mxu0 0
        %442 = vmatpush1.bf16.msra.mxu0 %v423
        %443 = vmatprep.subr.bf16.mxu0 0
        %444 = vmatpush1.bf16.msra.mxu0 %v422
        %445 = vmatprep.subr.bf16.mxu0 0
        %446 = vmatpush1.bf16.msra.mxu0 %v421
        %447 = vmatprep.subr.bf16.mxu0 0
        %448 = vmatpush1.bf16.msra.mxu0 %v420
        %449 = vmatprep.subr.bf16.mxu0 0
        %450 = vmatpush1.bf16.msra.mxu0 %v419
        %451 = vmatprep.subr.bf16.mxu0 0
        %452 = vmatpush2.bf16.msra.mxu0 0
        %453 = vmatprep.subr.bf16.mxu0 0
        %454 = vmatpush2.bf16.msra.mxu0 0
        %455 = vmatprep.subr.bf16.mxu0 0
        %456 = vmatpush2.bf16.msra.mxu0 0
        %457 = vmatprep.subr.bf16.mxu0 0
        %458 = vmatpush2.bf16.msra.mxu0 0
        %459 = vmatprep.subr.bf16.mxu0 0
        %460 = vmatpush2.bf16.msra.mxu0 0
        %461 = vmatprep.subr.bf16.mxu0 0
        %462 = vmatpush2.bf16.msra.mxu0 0
        %463 = vmatprep.subr.bf16.mxu0 0
        %464 = vmatpush2.bf16.msra.mxu0 0
        %465 = vmatprep.subr.bf16.mxu0 0
        %466 = vmatpush2.bf16.msra.mxu0 0
        %467 = vmatprep.mubr.bf16.mxu0 0
        %468 = vmatmul.mubr.bf16.gmra.mxu0 %v363
        %v469 = vpop.f32.mrf.mxu0
        %v470 = vadd.f32 0.0, %v469
        %v471 = vpop.f32.mrf.mxu0
        %v472 = vpop.f32.mrf.mxu0
        %v473 = vadd.f32 0.0, %v472
        %v474 = vpop.f32.mrf.mxu0
        %475 = vmatprep.mubr.bf16.mxu0 0
        %476 = vmatmul.mubr.bf16.gmra.mxu0 %v364
        %v477 = vpop.f32.mrf.mxu0
        %v478 = vadd.f32 0.0, %v477
        %v479 = vpop.f32.mrf.mxu0
        %v480 = vpop.f32.mrf.mxu0
        %v481 = vadd.f32 0.0, %v480
        %v482 = vpop.f32.mrf.mxu0
        %483 = vmatprep.mubr.bf16.mxu0 0
        %484 = vmatmul.mubr.bf16.gmra.mxu0 %v365
        %v485 = vpop.f32.mrf.mxu0
        %v486 = vadd.f32 0.0, %v485
        %v487 = vpop.f32.mrf.mxu0
        %v488 = vpop.f32.mrf.mxu0
        %v489 = vadd.f32 0.0, %v488
        %v490 = vpop.f32.mrf.mxu0
        %491 = vmatprep.mubr.bf16.mxu0 0
        %492 = vmatmul.mubr.bf16.gmra.mxu0 %v366
        %v493 = vpop.f32.mrf.mxu0
        %v494 = vadd.f32 0.0, %v493
        %v495 = vpop.f32.mrf.mxu0
        %v496 = vpop.f32.mrf.mxu0
        %v497 = vadd.f32 0.0, %v496
        %v498 = vpop.f32.mrf.mxu0
        %499 = vmatprep.mubr.bf16.mxu0 0
        %500 = vmatmul.mubr.bf16.gmra.mxu0 %v367
        %v501 = vpop.f32.mrf.mxu0
        %v502 = vadd.f32 0.0, %v501
        %v503 = vpop.f32.mrf.mxu0
        %v504 = vpop.f32.mrf.mxu0
        %v505 = vadd.f32 0.0, %v504
        %v506 = vpop.f32.mrf.mxu0
        %507 = vmatprep.mubr.bf16.mxu0 0
        %508 = vmatmul.mubr.bf16.gmra.mxu0 %v368
        %v509 = vpop.f32.mrf.mxu0
        %v510 = vadd.f32 0.0, %v509
        %v511 = vpop.f32.mrf.mxu0
        %v512 = vpop.f32.mrf.mxu0
        %v513 = vadd.f32 0.0, %v512
        %v514 = vpop.f32.mrf.mxu0
        %515 = vmatprep.mubr.bf16.mxu0 0
        %516 = vmatmul.mubr.bf16.gmra.mxu0 %v369
        %v517 = vpop.f32.mrf.mxu0
        %v518 = vadd.f32 0.0, %v517
        %v519 = vpop.f32.mrf.mxu0
        %v520 = vpop.f32.mrf.mxu0
        %v521 = vadd.f32 0.0, %v520
        %v522 = vpop.f32.mrf.mxu0
        %523 = vmatprep.mubr.bf16.mxu0 0
        %524 = vmatmul.mubr.bf16.gmra.mxu0 %v370
        %v525 = vpop.f32.mrf.mxu0
        %v526 = vadd.f32 0.0, %v525
        %v527 = vpop.f32.mrf.mxu0
        %v528 = vpop.f32.mrf.mxu0
        %v529 = vadd.f32 0.0, %v528
        %v530 = vpop.f32.mrf.mxu0
        %531 = vdwg.mxu0
        %v532 = vadd.f32 %v470, %v473
        %v533 = vadd.f32 %v532, %v478
        %v534 = vadd.f32 %v533, %v481
        %v535 = vadd.f32 %v534, %v486
        %v536 = vadd.f32 %v535, %v489
        %v537 = vadd.f32 %v536, %v494
        %v538 = vadd.f32 %v537, %v497
        %v539 = vadd.f32 %v538, %v502
        %v540 = vadd.f32 %v539, %v505
        %v541 = vadd.f32 %v540, %v510
        %v542 = vadd.f32 %v541, %v513
        %v543 = vadd.f32 %v542, %v518
        %v544 = vadd.f32 %v543, %v521
        %v545 = vadd.f32 %v544, %v526
        %v546 = vadd.f32 %v545, %v529
        %v547 = vrot.slane %v546, 4
        %v548 = vadd.f32 %v546, %v547
        %v549 = vrot.slane %v548, 2
        %v550 = vadd.f32 %v548, %v549
        %v551 = vrot.slane %v550, 1
        %v552 = vadd.f32 %v550, %v551
        %v553 = vmul.f32 %v470, %v470
        %v554 = vmul.f32 %v473, %v473
        %v555 = vmul.f32 %v478, %v478
        %v556 = vmul.f32 %v481, %v481
        %v557 = vmul.f32 %v486, %v486
        %v558 = vmul.f32 %v489, %v489
        %v559 = vmul.f32 %v494, %v494
        %v560 = vmul.f32 %v497, %v497
        %v561 = vmul.f32 %v502, %v502
        %v562 = vmul.f32 %v505, %v505
        %v563 = vmul.f32 %v510, %v510
        %v564 = vmul.f32 %v513, %v513
        %v565 = vmul.f32 %v518, %v518
        %v566 = vmul.f32 %v521, %v521
        %v567 = vmul.f32 %v526, %v526
        %v568 = vmul.f32 %v529, %v529
        %v569 = vadd.f32 %v553, %v554
        %v570 = vadd.f32 %v569, %v555
        %v571 = vadd.f32 %v570, %v556
        %v572 = vadd.f32 %v571, %v557
        %v573 = vadd.f32 %v572, %v558
        %v574 = vadd.f32 %v573, %v559
        %v575 = vadd.f32 %v574, %v560
        %v576 = vadd.f32 %v575, %v561
        %v577 = vadd.f32 %v576, %v562
        %v578 = vadd.f32 %v577, %v563
        %v579 = vadd.f32 %v578, %v564
        %v580 = vadd.f32 %v579, %v565
        %v581 = vadd.f32 %v580, %v566
        %v582 = vadd.f32 %v581, %v567
        %v583 = vadd.f32 %v582, %v568
        %v584 = vrot.slane %v583, 4
        %v585 = vadd.f32 %v583, %v584
        %v586 = vrot.slane %v585, 2
        %v587 = vadd.f32 %v585, %v586
        %v588 = vrot.slane %v587, 1
        %v589 = vadd.f32 %v587, %v588
        %vm590 = vcmask 1040384
        %v591 = vsel %vm590, %v552, %v589
        %592 = vst [vmem:[%s311] sm:$0x3] %v591
        %v593 = vpack.c.bf16 %v473, %v470
        %v594 = vpack.c.bf16 %v481, %v478
        %v595 = vpack.c.bf16 %v489, %v486
        %v596 = vpack.c.bf16 %v497, %v494
        %v597 = vpack.c.bf16 %v505, %v502
        %v598 = vpack.c.bf16 %v513, %v510
        %v599 = vpack.c.bf16 %v521, %v518
        %v600 = vpack.c.bf16 %v529, %v526
        %v609 = vunpack.c.l.b16 %v593
        %v610 = vunpack.c.h.b16 %v593
        %v611 = vunpack.c.l.b16 %v594
        %v612 = vunpack.c.h.b16 %v594
        %v613 = vunpack.c.l.b16 %v595
        %v614 = vunpack.c.h.b16 %v595
        %v615 = vunpack.c.l.b16 %v596
        %v616 = vunpack.c.h.b16 %v596
        %v617 = vunpack.c.l.b16 %v597
        %v618 = vunpack.c.h.b16 %v597
        %v619 = vunpack.c.l.b16 %v598
        %v620 = vunpack.c.h.b16 %v598
        %v621 = vunpack.c.l.b16 %v599
        %v622 = vunpack.c.h.b16 %v599
        %v623 = vunpack.c.l.b16 %v600
        %v624 = vunpack.c.h.b16 %v600
        %v625 = vpack.c.b16 %v609, %v609
        %v626 = vpack.c.b16 %v610, %v610
        %v627 = vpack.c.b16 %v611, %v611
        %v628 = vpack.c.b16 %v612, %v612
        %v629 = vpack.c.b16 %v613, %v613
        %v630 = vpack.c.b16 %v614, %v614
        %v631 = vpack.c.b16 %v615, %v615
        %v632 = vpack.c.b16 %v616, %v616
        %v633 = vpack.c.b16 %v617, %v617
        %v634 = vpack.c.b16 %v618, %v618
        %v635 = vpack.c.b16 %v619, %v619
        %v636 = vpack.c.b16 %v620, %v620
        %v637 = vpack.c.b16 %v621, %v621
        %v638 = vpack.c.b16 %v622, %v622
        %v639 = vpack.c.b16 %v623, %v623
        %v640 = vpack.c.b16 %v624, %v624
        %657 = vst [vmem:[%s302] sm:$0xf] %v625
        %658 = vst [vmem:[%s302 + $0x4] sm:$0xf] %v626
        %659 = vst [vmem:[%s302 + $0x8] sm:$0xf] %v627
        %660 = vst [vmem:[%s302 + $0xc] sm:$0xf] %v628
        %661 = vst [vmem:[%s302 + $0x10] sm:$0xf] %v629
        %662 = vst [vmem:[%s302 + $0x14] sm:$0xf] %v630
        %663 = vst [vmem:[%s302 + $0x18] sm:$0xf] %v631
        %664 = vst [vmem:[%s302 + $0x1c] sm:$0xf] %v632
        %665 = vst [vmem:[%s302 + $0x20] sm:$0xf] %v633
        %666 = vst [vmem:[%s302 + $0x24] sm:$0xf] %v634
        %667 = vst [vmem:[%s302 + $0x28] sm:$0xf] %v635
        %668 = vst [vmem:[%s302 + $0x2c] sm:$0xf] %v636
        %669 = vst [vmem:[%s302 + $0x30] sm:$0xf] %v637
        %670 = vst [vmem:[%s302 + $0x34] sm:$0xf] %v638
        %671 = vst [vmem:[%s302 + $0x38] sm:$0xf] %v639
        %672 = vst [vmem:[%s302 + $0x3c] sm:$0xf] %v640
        %s673 = smul.u32 %s19, 2
        %s674 = sadd.s32 %s673, %s20
        %s675 = smul.u32 16, %s674
        %p676 = scmp.lt.s32.totalorder %s675, 63
        %s677 = scalar_select %p676, %s675, 63
        %s678 = smul.addr %s677, 4
        %s679 = scalar_lea.vmem %s2, %s678
        %s680 = smul.u32 %s19, 2
        %s681 = sadd.s32 %s680, %s20
        %p682 = scmp.lt.s32.totalorder %s681, 3
        %s683 = scalar_select %p682, %s681, 3
        %s684 = smul.addr %s683, 2
        %s685 = scalar_lea.vmem %s3, %s684
        // Predicated region
        $region67: #{_bottleneck_forward.4} parent=61 // pred_check
          %p686 = pneg %p98
        $region68: #{_bottleneck_forward.4} parent=61 // pred_check_branch
          %688 = sbr.rel (%p686) target = $region70
        $region69: #{_bottleneck_forward.4} parent=61 // pred_region
          %s689 = smul.u32 %s19, 2
          %s690 = sadd.s32 %s689, %s20
          %s691 = smul.u32 16, %s690
        $region70: #{_bottleneck_forward.4} parent=61 // pred_fallthru
          _
        // Predicated region
        $region71: #{_bottleneck_forward.4} parent=61 // pred_check
          %p692 = pneg %p128
        $region72: #{_bottleneck_forward.4} parent=61 // pred_check_branch
          %694 = sbr.rel (%p692) target = $region74
        $region73: #{_bottleneck_forward.4} parent=61 // pred_region
          %s695 = smul.u32 %s19, 2
          %s696 = sadd.s32 %s695, %s20
        $region74: #{_bottleneck_forward.4} parent=61 // pred_fallthru
          _
      $region62: #{_bottleneck_forward.4} parent=5 // pred_fallthru
        _
      %p697 = scmp.le.s32.totalorder 2, %s10
      // Predicated region
      $region75: #{_bottleneck_forward.4} parent=5 // pred_check
        %p698 = pneg %p697
      $region76: #{_bottleneck_forward.4} parent=5 // pred_check_branch
        %700 = sbr.rel (%p698) target = $region78
      $region77: #{_bottleneck_forward.4} parent=5 // pred_region
        %s701 = ssub.s32 %s10, 2
        // Predicated region
        $region79: #{_bottleneck_forward.4} parent=77 // pred_check
          %p702 = pneg %p104
        $region80: #{_bottleneck_forward.4} parent=77 // pred_check_branch
          %704 = sbr.rel (%p702) target = $region82
        $region81: #{_bottleneck_forward.4} parent=77 // pred_region
          %s705 = smul.u32 %s21, 2
          %s706 = sadd.s32 %s705, %s22
          %s707 = smul.u32 16, %s706
          %p708 = scmp.lt.s32.totalorder %s707, 63
          %s709 = scalar_select %p708, %s707, 63
          %s710 = smul.addr %s709, 4
          %s711 = scalar_lea.vmem %s2, %s710
        $region82: #{_bottleneck_forward.4} parent=77 // pred_fallthru
          _
        // Predicated region
        $region83: #{_bottleneck_forward.4} parent=77 // pred_check
          %p712 = pneg %p134
        $region84: #{_bottleneck_forward.4} parent=77 // pred_check_branch
          %714 = sbr.rel (%p712) target = $region86
        $region85: #{_bottleneck_forward.4} parent=77 // pred_region
          %s715 = smul.u32 %s21, 2
          %s716 = sadd.s32 %s715, %s22
          %p717 = scmp.lt.s32.totalorder %s716, 3
          %s718 = scalar_select %p717, %s716, 3
          %s719 = smul.addr %s718, 2
          %s720 = scalar_lea.vmem %s3, %s719
        $region86: #{_bottleneck_forward.4} parent=77 // pred_fallthru
          _
      $region78: #{_bottleneck_forward.4} parent=5 // pred_fallthru
        _
    $region6: #{_bottleneck_forward.4} parent=1 // loop_footer
      %s14 = sadd.s32 1, %s10
    $region7: #{_bottleneck_forward.4} parent=1 // loop_footer_branch
      %9 = sbr.rel target = $region3
    $region8: #{_bottleneck_forward.4} parent=1 // loop_exit
      _

// kernel: _bottleneck_forward.7
$region0: #{_bottleneck_forward.7}
  #allocation0 [shape = 'u32[]', space=smem, size = 0x4, offset = 0x4, fixed_abs, tag = 'smem constant byte address 0x4 - core index']
  #allocation1 [shape = 'u32[144,128]{1,0:T(1,128)}', space=vmem, size = 0x12000, scoped, tag = 'internal scratch']
  %s0 = inlined_call_operand.vmem [shape: bf16[512,128], index: 0, kind: input, shape index: {}]
  %s1 = inlined_call_operand.vmem [shape: f32[2,128,256], index: 1, kind: input, shape index: {}]
  %s2 = inlined_call_operand.vmem [shape: f32[1,128], index: 2, kind: input, shape index: {}]
  %s3 = inlined_call_operand.vmem [shape: f32[1,128], index: 3, kind: input, shape index: {}]
  %s4 = inlined_call_operand.vmem [shape: f32[2,128,256], index: 4, kind: output, shape index: {}]
  %s5 = sld [smem:[#allocation0]]
  $region121: #{_bottleneck_forward.7} parent=0
    _
  %s7 = ssub.s32 1, %s5
  %s8 = scalar_select 0, %s7, %s5
  $region1: #{_bottleneck_forward.7} parent=0
    #allocation2 [shape = 'u8[131072]{0}', space=vmem, size = 0x20000, scoped, tag = 'input window, operand 1']
    #allocation3 [shape = 'u8[131072]{0}', space=vmem, size = 0x20000, scoped, tag = 'output window, operand 0']
    loop: start=0, step=1, limit=6
    $region2: #{_bottleneck_forward.7} parent=1 // loop_pre_header
      _
    $region3: #{_bottleneck_forward.7} parent=1 // loop_header
      %s10 = sphi 0, %s14
      %p11 = scmp.ge.s32.totalorder %s10, 6
      %s17 = sphi 0, %s29
      %s18 = sphi 0, %s25
      %s19 = sphi 0, %s17
      %s20 = sphi 0, %s18
      %s21 = sphi 0, %s19
      %s22 = sphi 0, %s20
      %s36 = sphi 0, %s38
      %s39 = sphi 0, %s36
      %s40 = sphi 0, %s39
      %s56 = sphi 0, %s40
      %s64 = sphi 0, %s66
      %s67 = sphi 0, %s64
      %s68 = sphi 0, %s67
      %s84 = sphi 0, %s68
      %s88 = sphi 0, %s88
      %s90 = sphi 0, %s88
      %s91 = sphi 0, %s90
      %s105 = sphi 0, %s91
      %s109 = sphi 0, %s109
      %s111 = sphi 0, %s109
      %s112 = sphi 0, %s111
      %s126 = sphi 0, %s112
      %s134 = sphi 0, %s136
      %s137 = sphi 0, %s134
      %s138 = sphi 0, %s137
      %s154 = sphi 0, %s138
    $region4: #{_bottleneck_forward.7} parent=1 // loop_header_branch
      %13 = sbr.rel (%p11) target = $region8
    $region5: #{_bottleneck_forward.7} parent=1 // loop_body
      %s15 = ssub.s32 %s10, 1
      %s16 = ssub.s32 %s10, 2
      %s23 = sadd.s32 1, %s18
      %p24 = scmp.ge.s32.totalorder %s23, 2
      %s25 = scalar_select %p24, 0, %s23
      %s26 = sadd.s32 1, %s17
      %s27 = scalar_select %p24, %s26, %s17
      %p28 = scmp.ge.s32.totalorder %s27, 2
      %s29 = scalar_select %p28, 0, %s27
      %s30 = smul.u32 %s17, 2
      %s31 = sadd.s32 %s30, %s18
      %s32 = smul.u32 %s29, 2
      %s33 = sadd.s32 %s32, %s25
      %s34 = ssub.s32 %s31, %s33
      %p35 = scmp.eq.s32.totalorder %s34, 0
      %s37 = sadd.s32 %s36, 1
      %s38 = scalar_select %p35, %s36, %s37
      %p41 = pneg %p35
      %p42 = scmp.eq.s32.totalorder %s10, 3
      %p43 = por %p41, %p42
      %p44 = scmp.ne.s32.totalorder %s36, %s39
      %p45 = scmp.eq.s32.totalorder %s10, 0
      %p46 = por %p44, %p45
      %p47 = scmp.ne.s32.totalorder %s36, %s39
      %p48 = scmp.eq.s32.totalorder %s15, 3
      %p49 = por %p47, %p48
      %p50 = scmp.ne.s32.totalorder %s39, %s40
      %p51 = scmp.eq.s32.totalorder %s15, 0
      %p52 = por %p50, %p51
      %p53 = scmp.ne.s32.totalorder %s39, %s40
      %p54 = scmp.eq.s32.totalorder %s16, 3
      %p55 = por %p53, %p54
      %p57 = scmp.ne.s32.totalorder %s40, %s56
      %p58 = scmp.eq.s32.totalorder %s16, 0
      %p59 = por %p57, %p58
      %s60 = ssub.s32 %s17, %s29
      %s61 = ssub.s32 %s18, %s25
      %s62 = sor.u32 %s60, %s61
      %p63 = scmp.eq.s32.totalorder %s62, 0
      %s65 = sadd.s32 %s64, 1
      %s66 = scalar_select %p63, %s64, %s65
      %p69 = pneg %p63
      %p70 = scmp.eq.s32.totalorder %s10, 3
      %p71 = por %p69, %p70
      %p72 = scmp.ne.s32.totalorder %s64, %s67
      %p73 = scmp.eq.s32.totalorder %s10, 0
      %p74 = por %p72, %p73
      %p75 = scmp.ne.s32.totalorder %s64, %s67
      %p76 = scmp.eq.s32.totalorder %s15, 3
      %p77 = por %p75, %p76
      %p78 = scmp.ne.s32.totalorder %s67, %s68
      %p79 = scmp.eq.s32.totalorder %s15, 0
      %p80 = por %p78, %p79
      %p81 = scmp.ne.s32.totalorder %s67, %s68
      %p82 = scmp.eq.s32.totalorder %s16, 3
      %p83 = por %p81, %p82
      %p85 = scmp.ne.s32.totalorder %s68, %s84
      %p86 = scmp.eq.s32.totalorder %s16, 0
      %p87 = por %p85, %p86
      %s89 = sadd.s32 %s88, 1
      %p92 = scmp.eq.s32.totalorder %s10, 3
      %p93 = scmp.ne.s32.totalorder %s88, %s90
      %p94 = scmp.eq.s32.totalorder %s10, 0
      %p95 = por %p93, %p94
      %p96 = scmp.ne.s32.totalorder %s88, %s90
      %p97 = scmp.eq.s32.totalorder %s15, 3
      %p98 = por %p96, %p97
      %p99 = scmp.ne.s32.totalorder %s90, %s91
      %p100 = scmp.eq.s32.totalorder %s15, 0
      %p101 = por %p99, %p100
      %p102 = scmp.ne.s32.totalorder %s90, %s91
      %p103 = scmp.eq.s32.totalorder %s16, 3
      %p104 = por %p102, %p103
      %p106 = scmp.ne.s32.totalorder %s91, %s105
      %p107 = scmp.eq.s32.totalorder %s16, 0
      %p108 = por %p106, %p107
      %s110 = sadd.s32 %s109, 1
      %p113 = scmp.eq.s32.totalorder %s10, 3
      %p114 = scmp.ne.s32.totalorder %s109, %s111
      %p115 = scmp.eq.s32.totalorder %s10, 0
      %p116 = por %p114, %p115
      %p117 = scmp.ne.s32.totalorder %s109, %s111
      %p118 = scmp.eq.s32.totalorder %s15, 3
      %p119 = por %p117, %p118
      %p120 = scmp.ne.s32.totalorder %s111, %s112
      %p121 = scmp.eq.s32.totalorder %s15, 0
      %p122 = por %p120, %p121
      %p123 = scmp.ne.s32.totalorder %s111, %s112
      %p124 = scmp.eq.s32.totalorder %s16, 3
      %p125 = por %p123, %p124
      %p127 = scmp.ne.s32.totalorder %s112, %s126
      %p128 = scmp.eq.s32.totalorder %s16, 0
      %p129 = por %p127, %p128
      %s130 = ssub.s32 %s17, %s29
      %s131 = ssub.s32 %s18, %s25
      %s132 = sor.u32 %s130, %s131
      %p133 = scmp.eq.s32.totalorder %s132, 0
      %s135 = sadd.s32 %s134, 1
      %s136 = scalar_select %p133, %s134, %s135
      %p139 = pneg %p133
      %p140 = scmp.eq.s32.totalorder %s10, 3
      %p141 = por %p139, %p140
      %p142 = scmp.ne.s32.totalorder %s134, %s137
      %p143 = scmp.eq.s32.totalorder %s10, 0
      %p144 = por %p142, %p143
      %p145 = scmp.ne.s32.totalorder %s134, %s137
      %p146 = scmp.eq.s32.totalorder %s15, 3
      %p147 = por %p145, %p146
      %p148 = scmp.ne.s32.totalorder %s137, %s138
      %p149 = scmp.eq.s32.totalorder %s15, 0
      %p150 = por %p148, %p149
      %p151 = scmp.ne.s32.totalorder %s137, %s138
      %p152 = scmp.eq.s32.totalorder %s16, 3
      %p153 = por %p151, %p152
      %p155 = scmp.ne.s32.totalorder %s138, %s154
      %p156 = scmp.eq.s32.totalorder %s16, 0
      %p157 = por %p155, %p156
      %p158 = scmp.le.s32.totalorder 1, %s10
      %p159 = scmp.lt.s32.totalorder %s10, 5
      %p160 = pnand %p158, %p159
      %p161 = pneg %p160
      // Predicated region
      $region9: #{_bottleneck_forward.7} parent=5 // pred_check
        _
      $region10: #{_bottleneck_forward.7} parent=5 // pred_check_branch
        %163 = sbr.rel (%p160) target = $region12
      $region11: #{_bottleneck_forward.7} parent=5 // pred_region
        %s164 = ssub.s32 %s10, 1
        // Predicated region
        $region13: #{_bottleneck_forward.7} parent=11 // pred_check
          %p165 = pneg %p101
        $region14: #{_bottleneck_forward.7} parent=11 // pred_check_branch
          %167 = sbr.rel (%p165) target = $region16
        $region15: #{_bottleneck_forward.7} parent=11 // pred_region
          _
        $region16: #{_bottleneck_forward.7} parent=11 // pred_fallthru
          _
        // Predicated region
        $region17: #{_bottleneck_forward.7} parent=11 // pred_check
          %p168 = pneg %p122
        $region18: #{_bottleneck_forward.7} parent=11 // pred_check_branch
          %170 = sbr.rel (%p168) target = $region20
        $region19: #{_bottleneck_forward.7} parent=11 // pred_region
          _
        $region20: #{_bottleneck_forward.7} parent=11 // pred_fallthru
          _
      $region12: #{_bottleneck_forward.7} parent=5 // pred_fallthru
        _
      %p171 = scmp.lt.s32.totalorder %s10, 4
      // Predicated region
      $region21: #{_bottleneck_forward.7} parent=5 // pred_check
        %p172 = pneg %p171
      $region22: #{_bottleneck_forward.7} parent=5 // pred_check_branch
        %174 = sbr.rel (%p172) target = $region24
      $region23: #{_bottleneck_forward.7} parent=5 // pred_region
        // Predicated region
        $region25: #{_bottleneck_forward.7} parent=23 // pred_check
          %p175 = pneg %p46
        $region26: #{_bottleneck_forward.7} parent=23 // pred_check_branch
          %177 = sbr.rel (%p175) target = $region28
        $region27: #{_bottleneck_forward.7} parent=23 // pred_region
          %s178 = smul.u32 %s17, 2
          %s179 = sadd.s32 %s178, %s18
          %s180 = smul.u32 16, %s179
          %p181 = scmp.lt.s32.totalorder %s180, 63
          %s182 = scalar_select %p181, %s180, 63
          %s183 = smul.addr %s182, 4
          %s184 = scalar_lea.vmem %s0, %s183
          %s185 = smul.u32 %s17, 2
          %s186 = sadd.s32 %s185, %s18
          %s187 = smul.u32 16, %s186
        $region28: #{_bottleneck_forward.7} parent=23 // pred_fallthru
          _
        // Predicated region
        $region29: #{_bottleneck_forward.7} parent=23 // pred_check
          %p188 = pneg %p74
        $region30: #{_bottleneck_forward.7} parent=23 // pred_check_branch
          %190 = sbr.rel (%p188) target = $region32
        $region31: #{_bottleneck_forward.7} parent=23 // pred_region
          %s191 = sand.u32 %s64, 1
          %s192 = sand.u32 %s64, 1
          %s193 = smul.addr %s192, 128
          %s194 = scalar_lea.vmem [#allocation2], %s193
          %s195 = smul.addr %s17, 32
          %s196 = sadd.s32 %s18, %s195
          %s197 = smul.addr %s196, 8
          %s198 = scalar_lea.vmem %s1, %s197
          // Predicated region
          $region33: #{_bottleneck_forward.7} parent=31 // pred_check
            _
          $region34: #{_bottleneck_forward.7} parent=31 // pred_check_branch
            %200 = sbr.rel (0) target = $region36
          $region35: #{_bottleneck_forward.7} parent=31 // pred_region
            // Predicated region
            $region37: #{_bottleneck_forward.7} parent=35 // pred_check
              _
            $region38: #{_bottleneck_forward.7} parent=35 // pred_check_branch
              %202 = sbr.rel (0) target = $region40
            $region39: #{_bottleneck_forward.7} parent=35 // pred_region
              // Predicated region
              $region52: #{_bottleneck_forward.7} parent=39 // pred_check
                _
              $region53: #{_bottleneck_forward.7} parent=39 // pred_check_branch
                %248 = sbr.rel (0) target = $region55
              $region54: #{_bottleneck_forward.7} parent=39 // pred_region
                loop: start=0, step=1, limit=1
                $region56: #{_bottleneck_forward.7} parent=54 // loop_pre_header
                  _
                $region57: #{_bottleneck_forward.7} parent=54 // loop_header
                  %s250 = sphi 0, %s254
                  %p251 = scmp.ge.s32.totalorder %s250, 1
                  %s255 = sphi %s198, %s198
                  %s256 = sphi %s194, %s194
                $region58: #{_bottleneck_forward.7} parent=54 // loop_header_branch
                  %253 = sbr.rel (%p251) target = $region62
                $region59: #{_bottleneck_forward.7} parent=54 // loop_body
                  %v257 = vld [vmem:[%s255] sm:$0xff]
                  %258 = vst [vmem:[%s256] sm:$0xff] %v257
                  %v259 = vld [vmem:[%s255 + $0x10] sm:$0xff]
                  %260 = vst [vmem:[%s256 + $0x8] sm:$0xff] %v259
                  %v261 = vld [vmem:[%s255 + $0x20] sm:$0xff]
                  %262 = vst [vmem:[%s256 + $0x10] sm:$0xff] %v261
                  %v263 = vld [vmem:[%s255 + $0x30] sm:$0xff]
                  %264 = vst [vmem:[%s256 + $0x18] sm:$0xff] %v263
                  %v265 = vld [vmem:[%s255 + $0x40] sm:$0xff]
                  %266 = vst [vmem:[%s256 + $0x20] sm:$0xff] %v265
                  %v267 = vld [vmem:[%s255 + $0x50] sm:$0xff]
                  %268 = vst [vmem:[%s256 + $0x28] sm:$0xff] %v267
                  %v269 = vld [vmem:[%s255 + $0x60] sm:$0xff]
                  %270 = vst [vmem:[%s256 + $0x30] sm:$0xff] %v269
                  %v271 = vld [vmem:[%s255 + $0x70] sm:$0xff]
                  %272 = vst [vmem:[%s256 + $0x38] sm:$0xff] %v271
                  %v273 = vld [vmem:[%s255 + $0x80] sm:$0xff]
                  %274 = vst [vmem:[%s256 + $0x40] sm:$0xff] %v273
                  %v275 = vld [vmem:[%s255 + $0x90] sm:$0xff]
                  %276 = vst [vmem:[%s256 + $0x48] sm:$0xff] %v275
                  %v277 = vld [vmem:[%s255 + $0xa0] sm:$0xff]
                  %278 = vst [vmem:[%s256 + $0x50] sm:$0xff] %v277
                  %v279 = vld [vmem:[%s255 + $0xb0] sm:$0xff]
                  %280 = vst [vmem:[%s256 + $0x58] sm:$0xff] %v279
                  %v281 = vld [vmem:[%s255 + $0xc0] sm:$0xff]
                  %282 = vst [vmem:[%s256 + $0x60] sm:$0xff] %v281
                  %v283 = vld [vmem:[%s255 + $0xd0] sm:$0xff]
                  %284 = vst [vmem:[%s256 + $0x68] sm:$0xff] %v283
                  %v285 = vld [vmem:[%s255 + $0xe0] sm:$0xff]
                  %286 = vst [vmem:[%s256 + $0x70] sm:$0xff] %v285
                  %v287 = vld [vmem:[%s255 + $0xf0] sm:$0xff]
                  %288 = vst [vmem:[%s256 + $0x78] sm:$0xff] %v287
                $region60: #{_bottleneck_forward.7} parent=54 // loop_footer
                  %s254 = sadd.s32 1, %s250
                $region61: #{_bottleneck_forward.7} parent=54 // loop_footer_branch
                  %249 = sbr.rel target = $region57
                $region62: #{_bottleneck_forward.7} parent=54 // loop_exit
                  _
              $region55: #{_bottleneck_forward.7} parent=39 // pred_fallthru
                _
              // Predicated region
              $region63: #{_bottleneck_forward.7} parent=39 // pred_check
                _
              $region64: #{_bottleneck_forward.7} parent=39 // pred_check_branch
                %290 = sbr.rel target = $region66
              $region65: #{_bottleneck_forward.7} parent=39 // pred_region
                _
              $region66: #{_bottleneck_forward.7} parent=39 // pred_fallthru
                _
            $region40: #{_bottleneck_forward.7} parent=35 // pred_fallthru
              _
            // Predicated region
            $region41: #{_bottleneck_forward.7} parent=35 // pred_check
              _
            $region42: #{_bottleneck_forward.7} parent=35 // pred_check_branch
              %204 = sbr.rel target = $region44
            $region43: #{_bottleneck_forward.7} parent=35 // pred_region
              %s206 = ssub.s32 256, 1
              loop: start=0, step=1, limit=1
              $region45: #{_bottleneck_forward.7} parent=43 // loop_pre_header
                _
              $region46: #{_bottleneck_forward.7} parent=43 // loop_header
                %s208 = sphi 0, %s212
                %p209 = scmp.ge.s32.totalorder %s208, 1
                %s213 = sphi %s198, %s198
                %s214 = sphi %s194, %s194
              $region47: #{_bottleneck_forward.7} parent=43 // loop_header_branch
                %211 = sbr.rel (%p209) target = $region51
              $region48: #{_bottleneck_forward.7} parent=43 // loop_body
                %v215 = vld [vmem:[%s213] sm:%s206]
                %216 = vst [vmem:[%s214] sm:%s206] %v215
                %v217 = vld [vmem:[%s213 + $0x10] sm:%s206]
                %218 = vst [vmem:[%s214 + $0x8] sm:%s206] %v217
                %v219 = vld [vmem:[%s213 + $0x20] sm:%s206]
                %220 = vst [vmem:[%s214 + $0x10] sm:%s206] %v219
                %v221 = vld [vmem:[%s213 + $0x30] sm:%s206]
                %222 = vst [vmem:[%s214 + $0x18] sm:%s206] %v221
                %v223 = vld [vmem:[%s213 + $0x40] sm:%s206]
                %224 = vst [vmem:[%s214 + $0x20] sm:%s206] %v223
                %v225 = vld [vmem:[%s213 + $0x50] sm:%s206]
                %226 = vst [vmem:[%s214 + $0x28] sm:%s206] %v225
                %v227 = vld [vmem:[%s213 + $0x60] sm:%s206]
                %228 = vst [vmem:[%s214 + $0x30] sm:%s206] %v227
                %v229 = vld [vmem:[%s213 + $0x70] sm:%s206]
                %230 = vst [vmem:[%s214 + $0x38] sm:%s206] %v229
                %v231 = vld [vmem:[%s213 + $0x80] sm:%s206]
                %232 = vst [vmem:[%s214 + $0x40] sm:%s206] %v231
                %v233 = vld [vmem:[%s213 + $0x90] sm:%s206]
                %234 = vst [vmem:[%s214 + $0x48] sm:%s206] %v233
                %v235 = vld [vmem:[%s213 + $0xa0] sm:%s206]
                %236 = vst [vmem:[%s214 + $0x50] sm:%s206] %v235
                %v237 = vld [vmem:[%s213 + $0xb0] sm:%s206]
                %238 = vst [vmem:[%s214 + $0x58] sm:%s206] %v237
                %v239 = vld [vmem:[%s213 + $0xc0] sm:%s206]
                %240 = vst [vmem:[%s214 + $0x60] sm:%s206] %v239
                %v241 = vld [vmem:[%s213 + $0xd0] sm:%s206]
                %242 = vst [vmem:[%s214 + $0x68] sm:%s206] %v241
                %v243 = vld [vmem:[%s213 + $0xe0] sm:%s206]
                %244 = vst [vmem:[%s214 + $0x70] sm:%s206] %v243
                %v245 = vld [vmem:[%s213 + $0xf0] sm:%s206]
                %246 = vst [vmem:[%s214 + $0x78] sm:%s206] %v245
              $region49: #{_bottleneck_forward.7} parent=43 // loop_footer
                %s212 = sadd.s32 1, %s208
              $region50: #{_bottleneck_forward.7} parent=43 // loop_footer_branch
                %207 = sbr.rel target = $region46
              $region51: #{_bottleneck_forward.7} parent=43 // loop_exit
                _
            $region44: #{_bottleneck_forward.7} parent=35 // pred_fallthru
              _
          $region36: #{_bottleneck_forward.7} parent=31 // pred_fallthru
            _
          %291 = vnop
        $region32: #{_bottleneck_forward.7} parent=23 // pred_fallthru
          _
      $region24: #{_bottleneck_forward.7} parent=5 // pred_fallthru
        _
      %p292 = scmp.le.s32.totalorder 1, %s10
      %p293 = scmp.lt.s32.totalorder %s10, 5
      %p294 = pnand %p292, %p293
      %p295 = pneg %p294
      // Predicated region
      $region67: #{_bottleneck_forward.7} parent=5 // pred_check
        _
      $region68: #{_bottleneck_forward.7} parent=5 // pred_check_branch
        %297 = sbr.rel (%p294) target = $region70
      $region69: #{_bottleneck_forward.7} parent=5 // pred_region
        %s298 = ssub.s32 %s10, 1
        %s299 = sand.u32 %s67, 1
        %s300 = sand.u32 %s67, 1
        %s301 = smul.addr %s300, 128
        %s302 = scalar_lea.vmem [#allocation2], %s301
        // Predicated region
        $region71: #{_bottleneck_forward.7} parent=69 // pred_check
          %p303 = pneg %p80
        $region72: #{_bottleneck_forward.7} parent=69 // pred_check_branch
          %305 = sbr.rel (%p303) target = $region74
        $region73: #{_bottleneck_forward.7} parent=69 // pred_region
          _
        $region74: #{_bottleneck_forward.7} parent=69 // pred_fallthru
          _
        %s306 = smul.u32 %s19, 2
        %s307 = sadd.s32 %s306, %s20
        %s308 = smul.u32 16, %s307
        %p309 = scmp.lt.s32.totalorder %s308, 63
        %s310 = scalar_select %p309, %s308, 63
        %s311 = smul.addr %s310, 4
        %s312 = scalar_lea.vmem %s0, %s311
        %p313 = pneg %p52
        %p314 = pneg %p49
        %s315 = sand.u32 %s67, 1
        %s316 = sand.u32 %s67, 1
        %s317 = smul.addr %s316, 128
        %s318 = scalar_lea.vmem [#allocation2], %s317
        %p319 = pneg %p80
        %p320 = pneg %p77
        %p321 = pneg %p101
        %p322 = pneg %p98
        %p323 = pneg %p122
        %p324 = pneg %p119
        %p325 = pneg %p150
        %p326 = pneg %p147
        %s327 = sand.u32 %s137, 1
        %s328 = sand.u32 %s137, 1
        %s329 = smul.addr %s328, 128
        %s330 = scalar_lea.vmem [#allocation3], %s329
        %s331 = smul.u32 %s19, 2
        %s332 = sadd.s32 %s331, %s20
        %s333 = smul.u32 16, %s332
        %p334 = scmp.lt.s32.totalorder %s333, 63
        %s335 = scalar_select %p334, %s333, 63
        %s336 = smul.addr %s335, 4
        %s337 = scalar_lea.vmem %s0, %s336
        %s338 = smul.u32 %s19, 2
        %s339 = sadd.s32 %s338, %s20
        %s340 = smul.u32 16, %s339
        %v341 = vld [vmem:[%s337] sm:$0xf]
        %v342 = vld [vmem:[%s337 + $0x4] sm:$0xf]
        %v343 = vld [vmem:[%s337 + $0x8] sm:$0xf]
        %v344 = vld [vmem:[%s337 + $0xc] sm:$0xf]
        %v345 = vld [vmem:[%s337 + $0x10] sm:$0xf]
        %v346 = vld [vmem:[%s337 + $0x14] sm:$0xf]
        %v347 = vld [vmem:[%s337 + $0x18] sm:$0xf]
        %v348 = vld [vmem:[%s337 + $0x1c] sm:$0xf]
        %v349 = vld [vmem:[%s337 + $0x20] sm:$0xf]
        %v350 = vld [vmem:[%s337 + $0x24] sm:$0xf]
        %v351 = vld [vmem:[%s337 + $0x28] sm:$0xf]
        %v352 = vld [vmem:[%s337 + $0x2c] sm:$0xf]
        %v353 = vld [vmem:[%s337 + $0x30] sm:$0xf]
        %v354 = vld [vmem:[%s337 + $0x34] sm:$0xf]
        %v355 = vld [vmem:[%s337 + $0x38] sm:$0xf]
        %v356 = vld [vmem:[%s337 + $0x3c] sm:$0xf]
        %v357 = vunpack.c.l.bf16 %v341
        %v358 = vunpack.c.l.bf16 %v342
        %v359 = vunpack.c.l.bf16 %v343
        %v360 = vunpack.c.l.bf16 %v344
        %v361 = vunpack.c.l.bf16 %v345
        %v362 = vunpack.c.l.bf16 %v346
        %v363 = vunpack.c.l.bf16 %v347
        %v364 = vunpack.c.l.bf16 %v348
        %v365 = vunpack.c.l.bf16 %v349
        %v366 = vunpack.c.l.bf16 %v350
        %v367 = vunpack.c.l.bf16 %v351
        %v368 = vunpack.c.l.bf16 %v352
        %v369 = vunpack.c.l.bf16 %v353
        %v370 = vunpack.c.l.bf16 %v354
        %v371 = vunpack.c.l.bf16 %v355
        %v372 = vunpack.c.l.bf16 %v356
        %v373 = vld [vmem:[%s2] sm:$0x1]
        %v375 = vlaneseq
        %v376 = vshrl.u32 %v375, 7
        %v377 = vsub.s32 0, %v376
        %v378 = vrot.slane %v373, %v377
        %v380 = vmul.f32 %v357, %v378
        %v381 = vmul.f32 %v358, %v378
        %v382 = vmul.f32 %v359, %v378
        %v383 = vmul.f32 %v360, %v378
        %v384 = vmul.f32 %v361, %v378
        %v385 = vmul.f32 %v362, %v378
        %v386 = vmul.f32 %v363, %v378
        %v387 = vmul.f32 %v364, %v378
        %v388 = vmul.f32 %v365, %v378
        %v389 = vmul.f32 %v366, %v378
        %v390 = vmul.f32 %v367, %v378
        %v391 = vmul.f32 %v368, %v378
        %v392 = vmul.f32 %v369, %v378
        %v393 = vmul.f32 %v370, %v378
        %v394 = vmul.f32 %v371, %v378
        %v395 = vmul.f32 %v372, %v378
        %v396 = vld [vmem:[%s3] sm:$0x1]
        %v398 = vlaneseq
        %v399 = vshrl.u32 %v398, 7
        %v400 = vsub.s32 0, %v399
        %v401 = vrot.slane %v396, %v400
        %v403 = vadd.f32 %v380, %v401
        %v404 = vadd.f32 %v381, %v401
        %v405 = vadd.f32 %v382, %v401
        %v406 = vadd.f32 %v383, %v401
        %v407 = vadd.f32 %v384, %v401
        %v408 = vadd.f32 %v385, %v401
        %v409 = vadd.f32 %v386, %v401
        %v410 = vadd.f32 %v387, %v401
        %v411 = vadd.f32 %v388, %v401
        %v412 = vadd.f32 %v389, %v401
        %v413 = vadd.f32 %v390, %v401
        %v414 = vadd.f32 %v391, %v401
        %v415 = vadd.f32 %v392, %v401
        %v416 = vadd.f32 %v393, %v401
        %v417 = vadd.f32 %v394, %v401
        %v418 = vadd.f32 %v395, %v401
        %419 = vxpose.xlu0.b32.start [1/16] %v403, 128
        %420 = vxpose.xlu0.b32.cont [2/16] %v404, 128
        %421 = vxpose.xlu0.b32.cont [3/16] %v405, 128
        %422 = vxpose.xlu0.b32.cont [4/16] %v406, 128
        %423 = vxpose.xlu0.b32.cont [5/16] %v407, 128
        %424 = vxpose.xlu0.b32.cont [6/16] %v408, 128
        %425 = vxpose.xlu0.b32.cont [7/16] %v409, 128
        %426 = vxpose.xlu0.b32.cont [8/16] %v410, 128
        %427 = vxpose.xlu0.b32.cont [9/16] %v411, 128
        %428 = vxpose.xlu0.b32.cont [10/16] %v412, 128
        %429 = vxpose.xlu0.b32.cont [11/16] %v413, 128
        %430 = vxpose.xlu0.b32.cont [12/16] %v414, 128
        %431 = vxpose.xlu0.b32.cont [13/16] %v415, 128
        %432 = vxpose.xlu0.b32.cont [14/16] %v416, 128
        %433 = vxpose.xlu0.b32.cont [15/16] %v417, 128
        %434 = vxpose.xlu0.b32.end [16/16] %v418, 128
        %v435 = vpop.trf.xlu0
        %v436 = vpop.trf.xlu0
        %v437 = vpop.trf.xlu0
        %v438 = vpop.trf.xlu0
        %v439 = vpop.trf.xlu0
        %v440 = vpop.trf.xlu0
        %v441 = vpop.trf.xlu0
        %v442 = vpop.trf.xlu0
        %v443 = vpop.trf.xlu0
        %v444 = vpop.trf.xlu0
        %v445 = vpop.trf.xlu0
        %v446 = vpop.trf.xlu0
        %v447 = vpop.trf.xlu0
        %v448 = vpop.trf.xlu0
        %v449 = vpop.trf.xlu0
        %v450 = vpop.trf.xlu0
        %v451 = vld [vmem:[%s302] sm:$0xff]
        %v452 = vld [vmem:[%s302 + $0x8] sm:$0xff]
        %v453 = vld [vmem:[%s302 + $0x10] sm:$0xff]
        %v454 = vld [vmem:[%s302 + $0x18] sm:$0xff]
        %v455 = vld [vmem:[%s302 + $0x20] sm:$0xff]
        %v456 = vld [vmem:[%s302 + $0x28] sm:$0xff]
        %v457 = vld [vmem:[%s302 + $0x30] sm:$0xff]
        %v458 = vld [vmem:[%s302 + $0x38] sm:$0xff]
        %v459 = vld [vmem:[%s302 + $0x40] sm:$0xff]
        %v460 = vld [vmem:[%s302 + $0x48] sm:$0xff]
        %v461 = vld [vmem:[%s302 + $0x50] sm:$0xff]
        %v462 = vld [vmem:[%s302 + $0x58] sm:$0xff]
        %v463 = vld [vmem:[%s302 + $0x60] sm:$0xff]
        %v464 = vld [vmem:[%s302 + $0x68] sm:$0xff]
        %v465 = vld [vmem:[%s302 + $0x70] sm:$0xff]
        %v466 = vld [vmem:[%s302 + $0x78] sm:$0xff]
        %v467 = vadd.f32 %v435, %v451
        %v468 = vadd.f32 %v436, %v452
        %v469 = vadd.f32 %v437, %v453
        %v470 = vadd.f32 %v438, %v454
        %v471 = vadd.f32 %v439, %v455
        %v472 = vadd.f32 %v440, %v456
        %v473 = vadd.f32 %v441, %v457
        %v474 = vadd.f32 %v442, %v458
        %v475 = vadd.f32 %v443, %v459
        %v476 = vadd.f32 %v444, %v460
        %v477 = vadd.f32 %v445, %v461
        %v478 = vadd.f32 %v446, %v462
        %v479 = vadd.f32 %v447, %v463
        %v480 = vadd.f32 %v448, %v464
        %v481 = vadd.f32 %v449, %v465
        %v482 = vadd.f32 %v450, %v466
        %v483 = vmax.f32 %v467, 0.0
        %v484 = vmax.f32 %v468, 0.0
        %v485 = vmax.f32 %v469, 0.0
        %v486 = vmax.f32 %v470, 0.0
        %v487 = vmax.f32 %v471, 0.0
        %v488 = vmax.f32 %v472, 0.0
        %v489 = vmax.f32 %v473, 0.0
        %v490 = vmax.f32 %v474, 0.0
        %v491 = vmax.f32 %v475, 0.0
        %v492 = vmax.f32 %v476, 0.0
        %v493 = vmax.f32 %v477, 0.0
        %v494 = vmax.f32 %v478, 0.0
        %v495 = vmax.f32 %v479, 0.0
        %v496 = vmax.f32 %v480, 0.0
        %v497 = vmax.f32 %v481, 0.0
        %v498 = vmax.f32 %v482, 0.0
        %499 = vst [vmem:[%s330] sm:$0xff] %v483
        %500 = vst [vmem:[%s330 + $0x8] sm:$0xff] %v484
        %501 = vst [vmem:[%s330 + $0x10] sm:$0xff] %v485
        %502 = vst [vmem:[%s330 + $0x18] sm:$0xff] %v486
        %503 = vst [vmem:[%s330 + $0x20] sm:$0xff] %v487
        %504 = vst [vmem:[%s330 + $0x28] sm:$0xff] %v488
        %505 = vst [vmem:[%s330 + $0x30] sm:$0xff] %v489
        %506 = vst [vmem:[%s330 + $0x38] sm:$0xff] %v490
        %507 = vst [vmem:[%s330 + $0x40] sm:$0xff] %v491
        %508 = vst [vmem:[%s330 + $0x48] sm:$0xff] %v492
        %509 = vst [vmem:[%s330 + $0x50] sm:$0xff] %v493
        %510 = vst [vmem:[%s330 + $0x58] sm:$0xff] %v494
        %511 = vst [vmem:[%s330 + $0x60] sm:$0xff] %v495
        %512 = vst [vmem:[%s330 + $0x68] sm:$0xff] %v496
        %513 = vst [vmem:[%s330 + $0x70] sm:$0xff] %v497
        %514 = vst [vmem:[%s330 + $0x78] sm:$0xff] %v498
        %s515 = sand.u32 %s137, 1
        %s516 = sand.u32 %s137, 1
        %s517 = smul.addr %s516, 128
        %s518 = scalar_lea.vmem [#allocation3], %s517
        // Predicated region
        $region75: #{_bottleneck_forward.7} parent=69 // pred_check
          %p519 = pneg %p147
        $region76: #{_bottleneck_forward.7} parent=69 // pred_check_branch
          %521 = sbr.rel (%p519) target = $region78
        $region77: #{_bottleneck_forward.7} parent=69 // pred_region
          %s522 = smul.addr %s19, 32
          %s523 = sadd.s32 %s20, %s522
          %s524 = smul.addr %s523, 8
          %s525 = scalar_lea.vmem %s4, %s524
          // Predicated region
          $region79: #{_bottleneck_forward.7} parent=77 // pred_check
            _
          $region80: #{_bottleneck_forward.7} parent=77 // pred_check_branch
            %527 = sbr.rel (0) target = $region82
          $region81: #{_bottleneck_forward.7} parent=77 // pred_region
            // Predicated region
            $region83: #{_bottleneck_forward.7} parent=81 // pred_check
              _
            $region84: #{_bottleneck_forward.7} parent=81 // pred_check_branch
              %529 = sbr.rel (0) target = $region86
            $region85: #{_bottleneck_forward.7} parent=81 // pred_region
              // Predicated region
              $region98: #{_bottleneck_forward.7} parent=85 // pred_check
                _
              $region99: #{_bottleneck_forward.7} parent=85 // pred_check_branch
                %575 = sbr.rel (0) target = $region101
              $region100: #{_bottleneck_forward.7} parent=85 // pred_region
                loop: start=0, step=1, limit=1
                $region102: #{_bottleneck_forward.7} parent=100 // loop_pre_header
                  _
                $region103: #{_bottleneck_forward.7} parent=100 // loop_header
                  %s577 = sphi 0, %s581
                  %p578 = scmp.ge.s32.totalorder %s577, 1
                  %s582 = sphi %s518, %s518
                  %s583 = sphi %s525, %s525
                $region104: #{_bottleneck_forward.7} parent=100 // loop_header_branch
                  %580 = sbr.rel (%p578) target = $region108
                $region105: #{_bottleneck_forward.7} parent=100 // loop_body
                  %v584 = vld [vmem:[%s582] sm:$0xff]
                  %585 = vst [vmem:[%s583] sm:$0xff] %v584
                  %v586 = vld [vmem:[%s582 + $0x8] sm:$0xff]
                  %587 = vst [vmem:[%s583 + $0x10] sm:$0xff] %v586
                  %v588 = vld [vmem:[%s582 + $0x10] sm:$0xff]
                  %589 = vst [vmem:[%s583 + $0x20] sm:$0xff] %v588
                  %v590 = vld [vmem:[%s582 + $0x18] sm:$0xff]
                  %591 = vst [vmem:[%s583 + $0x30] sm:$0xff] %v590
                  %v592 = vld [vmem:[%s582 + $0x20] sm:$0xff]
                  %593 = vst [vmem:[%s583 + $0x40] sm:$0xff] %v592
                  %v594 = vld [vmem:[%s582 + $0x28] sm:$0xff]
                  %595 = vst [vmem:[%s583 + $0x50] sm:$0xff] %v594
                  %v596 = vld [vmem:[%s582 + $0x30] sm:$0xff]
                  %597 = vst [vmem:[%s583 + $0x60] sm:$0xff] %v596
                  %v598 = vld [vmem:[%s582 + $0x38] sm:$0xff]
                  %599 = vst [vmem:[%s583 + $0x70] sm:$0xff] %v598
                  %v600 = vld [vmem:[%s582 + $0x40] sm:$0xff]
                  %601 = vst [vmem:[%s583 + $0x80] sm:$0xff] %v600
                  %v602 = vld [vmem:[%s582 + $0x48] sm:$0xff]
                  %603 = vst [vmem:[%s583 + $0x90] sm:$0xff] %v602
                  %v604 = vld [vmem:[%s582 + $0x50] sm:$0xff]
                  %605 = vst [vmem:[%s583 + $0xa0] sm:$0xff] %v604
                  %v606 = vld [vmem:[%s582 + $0x58] sm:$0xff]
                  %607 = vst [vmem:[%s583 + $0xb0] sm:$0xff] %v606
                  %v608 = vld [vmem:[%s582 + $0x60] sm:$0xff]
                  %609 = vst [vmem:[%s583 + $0xc0] sm:$0xff] %v608
                  %v610 = vld [vmem:[%s582 + $0x68] sm:$0xff]
                  %611 = vst [vmem:[%s583 + $0xd0] sm:$0xff] %v610
                  %v612 = vld [vmem:[%s582 + $0x70] sm:$0xff]
                  %613 = vst [vmem:[%s583 + $0xe0] sm:$0xff] %v612
                  %v614 = vld [vmem:[%s582 + $0x78] sm:$0xff]
                  %615 = vst [vmem:[%s583 + $0xf0] sm:$0xff] %v614
                $region106: #{_bottleneck_forward.7} parent=100 // loop_footer
                  %s581 = sadd.s32 1, %s577
                $region107: #{_bottleneck_forward.7} parent=100 // loop_footer_branch
                  %576 = sbr.rel target = $region103
                $region108: #{_bottleneck_forward.7} parent=100 // loop_exit
                  _
              $region101: #{_bottleneck_forward.7} parent=85 // pred_fallthru
                _
              // Predicated region
              $region109: #{_bottleneck_forward.7} parent=85 // pred_check
                _
              $region110: #{_bottleneck_forward.7} parent=85 // pred_check_branch
                %617 = sbr.rel target = $region112
              $region111: #{_bottleneck_forward.7} parent=85 // pred_region
                _
              $region112: #{_bottleneck_forward.7} parent=85 // pred_fallthru
                _
            $region86: #{_bottleneck_forward.7} parent=81 // pred_fallthru
              _
            // Predicated region
            $region87: #{_bottleneck_forward.7} parent=81 // pred_check
              _
            $region88: #{_bottleneck_forward.7} parent=81 // pred_check_branch
              %531 = sbr.rel target = $region90
            $region89: #{_bottleneck_forward.7} parent=81 // pred_region
              %s533 = ssub.s32 256, 1
              loop: start=0, step=1, limit=1
              $region91: #{_bottleneck_forward.7} parent=89 // loop_pre_header
                _
              $region92: #{_bottleneck_forward.7} parent=89 // loop_header
                %s535 = sphi 0, %s539
                %p536 = scmp.ge.s32.totalorder %s535, 1
                %s540 = sphi %s518, %s518
                %s541 = sphi %s525, %s525
              $region93: #{_bottleneck_forward.7} parent=89 // loop_header_branch
                %538 = sbr.rel (%p536) target = $region97
              $region94: #{_bottleneck_forward.7} parent=89 // loop_body
                %v542 = vld [vmem:[%s540] sm:%s533]
                %543 = vst [vmem:[%s541] sm:%s533] %v542
                %v544 = vld [vmem:[%s540 + $0x8] sm:%s533]
                %545 = vst [vmem:[%s541 + $0x10] sm:%s533] %v544
                %v546 = vld [vmem:[%s540 + $0x10] sm:%s533]
                %547 = vst [vmem:[%s541 + $0x20] sm:%s533] %v546
                %v548 = vld [vmem:[%s540 + $0x18] sm:%s533]
                %549 = vst [vmem:[%s541 + $0x30] sm:%s533] %v548
                %v550 = vld [vmem:[%s540 + $0x20] sm:%s533]
                %551 = vst [vmem:[%s541 + $0x40] sm:%s533] %v550
                %v552 = vld [vmem:[%s540 + $0x28] sm:%s533]
                %553 = vst [vmem:[%s541 + $0x50] sm:%s533] %v552
                %v554 = vld [vmem:[%s540 + $0x30] sm:%s533]
                %555 = vst [vmem:[%s541 + $0x60] sm:%s533] %v554
                %v556 = vld [vmem:[%s540 + $0x38] sm:%s533]
                %557 = vst [vmem:[%s541 + $0x70] sm:%s533] %v556
                %v558 = vld [vmem:[%s540 + $0x40] sm:%s533]
                %559 = vst [vmem:[%s541 + $0x80] sm:%s533] %v558
                %v560 = vld [vmem:[%s540 + $0x48] sm:%s533]
                %561 = vst [vmem:[%s541 + $0x90] sm:%s533] %v560
                %v562 = vld [vmem:[%s540 + $0x50] sm:%s533]
                %563 = vst [vmem:[%s541 + $0xa0] sm:%s533] %v562
                %v564 = vld [vmem:[%s540 + $0x58] sm:%s533]
                %565 = vst [vmem:[%s541 + $0xb0] sm:%s533] %v564
                %v566 = vld [vmem:[%s540 + $0x60] sm:%s533]
                %567 = vst [vmem:[%s541 + $0xc0] sm:%s533] %v566
                %v568 = vld [vmem:[%s540 + $0x68] sm:%s533]
                %569 = vst [vmem:[%s541 + $0xd0] sm:%s533] %v568
                %v570 = vld [vmem:[%s540 + $0x70] sm:%s533]
                %571 = vst [vmem:[%s541 + $0xe0] sm:%s533] %v570
                %v572 = vld [vmem:[%s540 + $0x78] sm:%s533]
                %573 = vst [vmem:[%s541 + $0xf0] sm:%s533] %v572
              $region95: #{_bottleneck_forward.7} parent=89 // loop_footer
                %s539 = sadd.s32 1, %s535
              $region96: #{_bottleneck_forward.7} parent=89 // loop_footer_branch
                %534 = sbr.rel target = $region92
              $region97: #{_bottleneck_forward.7} parent=89 // loop_exit
                _
            $region90: #{_bottleneck_forward.7} parent=81 // pred_fallthru
              _
          $region82: #{_bottleneck_forward.7} parent=77 // pred_fallthru
            _
          %618 = vnop
        $region78: #{_bottleneck_forward.7} parent=69 // pred_fallthru
          _
      $region70: #{_bottleneck_forward.7} parent=5 // pred_fallthru
        _
      %p619 = scmp.le.s32.totalorder 2, %s10
      // Predicated region
      $region113: #{_bottleneck_forward.7} parent=5 // pred_check
        %p620 = pneg %p619
      $region114: #{_bottleneck_forward.7} parent=5 // pred_check_branch
        %622 = sbr.rel (%p620) target = $region116
      $region115: #{_bottleneck_forward.7} parent=5 // pred_region
        %s623 = ssub.s32 %s10, 2
        // Predicated region
        $region117: #{_bottleneck_forward.7} parent=115 // pred_check
          %p624 = pneg %p153
        $region118: #{_bottleneck_forward.7} parent=115 // pred_check_branch
          %626 = sbr.rel (%p624) target = $region120
        $region119: #{_bottleneck_forward.7} parent=115 // pred_region
          %s627 = sand.u32 %s138, 1
          %s628 = sand.u32 %s138, 1
          %s629 = smul.addr %s628, 128
          %s630 = scalar_lea.vmem [#allocation3], %s629
        $region120: #{_bottleneck_forward.7} parent=115 // pred_fallthru
          _
      $region116: #{_bottleneck_forward.7} parent=5 // pred_fallthru
        _
    $region6: #{_bottleneck_forward.7} parent=1 // loop_footer
      %s14 = sadd.s32 1, %s10
    $region7: #{_bottleneck_forward.7} parent=1 // loop_footer_branch
      %9 = sbr.rel target = $region3
    $region8: #{_bottleneck_forward.7} parent=1 // loop_exit
      _

// kernel: _bottleneck_forward.6
$region0: #{_bottleneck_forward.6}
  #allocation0 [shape = 'u32[]', space=smem, size = 0x4, offset = 0x4, fixed_abs, tag = 'smem constant byte address 0x4 - core index']
  #allocation1 [shape = 'u32[144,128]{1,0:T(1,128)}', space=vmem, size = 0x12000, scoped, tag = 'internal scratch']
  %s0 = inlined_call_operand.vmem [shape: bf16[512,128], index: 0, kind: input, shape index: {}]
  %s1 = inlined_call_operand.vmem [shape: f32[1,128], index: 1, kind: input, shape index: {}]
  %s2 = inlined_call_operand.vmem [shape: f32[1,128], index: 2, kind: input, shape index: {}]
  %s3 = inlined_call_operand.vmem [shape: bf16[128,128], index: 3, kind: input, shape index: {}]
  %s4 = inlined_call_operand.vmem [shape: bf16[512,128], index: 4, kind: output, shape index: {0}]
  %s5 = inlined_call_operand.vmem [shape: f32[4,2,128], index: 5, kind: output, shape index: {1}]
  %6 = xla_tuple %s4, %s5
  %s7 = sld [smem:[#allocation0]]
  $region57: #{_bottleneck_forward.6} parent=0
    _
  %s9 = ssub.s32 1, %s7
  %s10 = scalar_select 0, %s9, %s7
  loop: start=0, step=1, limit=6
  $region2: #{_bottleneck_forward.6} parent=0 // loop_pre_header
    _
  $region3: #{_bottleneck_forward.6} parent=0 // loop_header
    %s12 = sphi 0, %s16
    %p13 = scmp.ge.s32.totalorder %s12, 6
    %s22 = sphi 0, %s24
    %s25 = sphi 0, %s22
    %s26 = sphi 0, %s25
    %s42 = sphi 0, %s26
    %s46 = sphi 0, %s46
    %s48 = sphi 0, %s46
    %s49 = sphi 0, %s48
    %s63 = sphi 0, %s49
    %s67 = sphi 0, %s67
    %s69 = sphi 0, %s67
    %s70 = sphi 0, %s69
    %s84 = sphi 0, %s70
    %s88 = sphi 0, %s88
    %s90 = sphi 0, %s88
    %s91 = sphi 0, %s90
    %s105 = sphi 0, %s91
    %s111 = sphi 0, %s113
    %s114 = sphi 0, %s111
    %s115 = sphi 0, %s114
    %s131 = sphi 0, %s115
    %s137 = sphi 0, %s139
    %s140 = sphi 0, %s137
    %s141 = sphi 0, %s140
    %s157 = sphi 0, %s141
  $region4: #{_bottleneck_forward.6} parent=0 // loop_header_branch
    %15 = sbr.rel (%p13) target = $region8
  $region5: #{_bottleneck_forward.6} parent=0 // loop_body
    %s17 = ssub.s32 %s12, 1
    %s18 = ssub.s32 %s12, 2
    %s19 = sadd.s32 %s12, 1
    %s20 = ssub.s32 %s12, %s19
    %p21 = scmp.eq.s32.totalorder %s20, 0
    %s23 = sadd.s32 %s22, 1
    %s24 = scalar_select %p21, %s22, %s23
    %p27 = pneg %p21
    %p28 = scmp.eq.s32.totalorder %s12, 3
    %p29 = por %p27, %p28
    %p30 = scmp.ne.s32.totalorder %s22, %s25
    %p31 = scmp.eq.s32.totalorder %s12, 0
    %p32 = por %p30, %p31
    %p33 = scmp.ne.s32.totalorder %s22, %s25
    %p34 = scmp.eq.s32.totalorder %s17, 3
    %p35 = por %p33, %p34
    %p36 = scmp.ne.s32.totalorder %s25, %s26
    %p37 = scmp.eq.s32.totalorder %s17, 0
    %p38 = por %p36, %p37
    %p39 = scmp.ne.s32.totalorder %s25, %s26
    %p40 = scmp.eq.s32.totalorder %s18, 3
    %p41 = por %p39, %p40
    %p43 = scmp.ne.s32.totalorder %s26, %s42
    %p44 = scmp.eq.s32.totalorder %s18, 0
    %p45 = por %p43, %p44
    %s47 = sadd.s32 %s46, 1
    %p50 = scmp.eq.s32.totalorder %s12, 3
    %p51 = scmp.ne.s32.totalorder %s46, %s48
    %p52 = scmp.eq.s32.totalorder %s12, 0
    %p53 = por %p51, %p52
    %p54 = scmp.ne.s32.totalorder %s46, %s48
    %p55 = scmp.eq.s32.totalorder %s17, 3
    %p56 = por %p54, %p55
    %p57 = scmp.ne.s32.totalorder %s48, %s49
    %p58 = scmp.eq.s32.totalorder %s17, 0
    %p59 = por %p57, %p58
    %p60 = scmp.ne.s32.totalorder %s48, %s49
    %p61 = scmp.eq.s32.totalorder %s18, 3
    %p62 = por %p60, %p61
    %p64 = scmp.ne.s32.totalorder %s49, %s63
    %p65 = scmp.eq.s32.totalorder %s18, 0
    %p66 = por %p64, %p65
    %s68 = sadd.s32 %s67, 1
    %p71 = scmp.eq.s32.totalorder %s12, 3
    %p72 = scmp.ne.s32.totalorder %s67, %s69
    %p73 = scmp.eq.s32.totalorder %s12, 0
    %p74 = por %p72, %p73
    %p75 = scmp.ne.s32.totalorder %s67, %s69
    %p76 = scmp.eq.s32.totalorder %s17, 3
    %p77 = por %p75, %p76
    %p78 = scmp.ne.s32.totalorder %s69, %s70
    %p79 = scmp.eq.s32.totalorder %s17, 0
    %p80 = por %p78, %p79
    %p81 = scmp.ne.s32.totalorder %s69, %s70
    %p82 = scmp.eq.s32.totalorder %s18, 3
    %p83 = por %p81, %p82
    %p85 = scmp.ne.s32.totalorder %s70, %s84
    %p86 = scmp.eq.s32.totalorder %s18, 0
    %p87 = por %p85, %p86
    %s89 = sadd.s32 %s88, 1
    %p92 = scmp.eq.s32.totalorder %s12, 3
    %p93 = scmp.ne.s32.totalorder %s88, %s90
    %p94 = scmp.eq.s32.totalorder %s12, 0
    %p95 = por %p93, %p94
    %p96 = scmp.ne.s32.totalorder %s88, %s90
    %p97 = scmp.eq.s32.totalorder %s17, 3
    %p98 = por %p96, %p97
    %p99 = scmp.ne.s32.totalorder %s90, %s91
    %p100 = scmp.eq.s32.totalorder %s17, 0
    %p101 = por %p99, %p100
    %p102 = scmp.ne.s32.totalorder %s90, %s91
    %p103 = scmp.eq.s32.totalorder %s18, 3
    %p104 = por %p102, %p103
    %p106 = scmp.ne.s32.totalorder %s91, %s105
    %p107 = scmp.eq.s32.totalorder %s18, 0
    %p108 = por %p106, %p107
    %s109 = ssub.s32 %s12, %s19
    %p110 = scmp.eq.s32.totalorder %s109, 0
    %s112 = sadd.s32 %s111, 1
    %s113 = scalar_select %p110, %s111, %s112
    %p116 = pneg %p110
    %p117 = scmp.eq.s32.totalorder %s12, 3
    %p118 = por %p116, %p117
    %p119 = scmp.ne.s32.totalorder %s111, %s114
    %p120 = scmp.eq.s32.totalorder %s12, 0
    %p121 = por %p119, %p120
    %p122 = scmp.ne.s32.totalorder %s111, %s114
    %p123 = scmp.eq.s32.totalorder %s17, 3
    %p124 = por %p122, %p123
    %p125 = scmp.ne.s32.totalorder %s114, %s115
    %p126 = scmp.eq.s32.totalorder %s17, 0
    %p127 = por %p125, %p126
    %p128 = scmp.ne.s32.totalorder %s114, %s115
    %p129 = scmp.eq.s32.totalorder %s18, 3
    %p130 = por %p128, %p129
    %p132 = scmp.ne.s32.totalorder %s115, %s131
    %p133 = scmp.eq.s32.totalorder %s18, 0
    %p134 = por %p132, %p133
    %s135 = ssub.s32 %s12, %s19
    %p136 = scmp.eq.s32.totalorder %s135, 0
    %s138 = sadd.s32 %s137, 1
    %s139 = scalar_select %p136, %s137, %s138
    %p142 = pneg %p136
    %p143 = scmp.eq.s32.totalorder %s12, 3
    %p144 = por %p142, %p143
    %p145 = scmp.ne.s32.totalorder %s137, %s140
    %p146 = scmp.eq.s32.totalorder %s12, 0
    %p147 = por %p145, %p146
    %p148 = scmp.ne.s32.totalorder %s137, %s140
    %p149 = scmp.eq.s32.totalorder %s17, 3
    %p150 = por %p148, %p149
    %p151 = scmp.ne.s32.totalorder %s140, %s141
    %p152 = scmp.eq.s32.totalorder %s17, 0
    %p153 = por %p151, %p152
    %p154 = scmp.ne.s32.totalorder %s140, %s141
    %p155 = scmp.eq.s32.totalorder %s18, 3
    %p156 = por %p154, %p155
    %p158 = scmp.ne.s32.totalorder %s141, %s157
    %p159 = scmp.eq.s32.totalorder %s18, 0
    %p160 = por %p158, %p159
    %p161 = scmp.le.s32.totalorder 1, %s12
    %p162 = scmp.lt.s32.totalorder %s12, 5
    %p163 = pnand %p161, %p162
    %p164 = pneg %p163
    // Predicated region
    $region9: #{_bottleneck_forward.6} parent=5 // pred_check
      _
    $region10: #{_bottleneck_forward.6} parent=5 // pred_check_branch
      %166 = sbr.rel (%p163) target = $region12
    $region11: #{_bottleneck_forward.6} parent=5 // pred_region
      %s167 = ssub.s32 %s12, 1
      // Predicated region
      $region13: #{_bottleneck_forward.6} parent=11 // pred_check
        %p168 = pneg %p59
      $region14: #{_bottleneck_forward.6} parent=11 // pred_check_branch
        %170 = sbr.rel (%p168) target = $region16
      $region15: #{_bottleneck_forward.6} parent=11 // pred_region
        _
      $region16: #{_bottleneck_forward.6} parent=11 // pred_fallthru
        _
      // Predicated region
      $region17: #{_bottleneck_forward.6} parent=11 // pred_check
        %p171 = pneg %p80
      $region18: #{_bottleneck_forward.6} parent=11 // pred_check_branch
        %173 = sbr.rel (%p171) target = $region20
      $region19: #{_bottleneck_forward.6} parent=11 // pred_region
        _
      $region20: #{_bottleneck_forward.6} parent=11 // pred_fallthru
        _
      // Predicated region
      $region21: #{_bottleneck_forward.6} parent=11 // pred_check
        %p174 = pneg %p101
      $region22: #{_bottleneck_forward.6} parent=11 // pred_check_branch
        %176 = sbr.rel (%p174) target = $region24
      $region23: #{_bottleneck_forward.6} parent=11 // pred_region
        _
      $region24: #{_bottleneck_forward.6} parent=11 // pred_fallthru
        _
    $region12: #{_bottleneck_forward.6} parent=5 // pred_fallthru
      _
    %p177 = scmp.lt.s32.totalorder %s12, 4
    // Predicated region
    $region25: #{_bottleneck_forward.6} parent=5 // pred_check
      %p178 = pneg %p177
    $region26: #{_bottleneck_forward.6} parent=5 // pred_check_branch
      %180 = sbr.rel (%p178) target = $region28
    $region27: #{_bottleneck_forward.6} parent=5 // pred_region
      // Predicated region
      $region29: #{_bottleneck_forward.6} parent=27 // pred_check
        %p181 = pneg %p32
      $region30: #{_bottleneck_forward.6} parent=27 // pred_check_branch
        %183 = sbr.rel (%p181) target = $region32
      $region31: #{_bottleneck_forward.6} parent=27 // pred_region
        %s184 = smul.u32 16, %s12
        %p185 = scmp.lt.s32.totalorder %s184, 63
        %s186 = scalar_select %p185, %s184, 63
        %s187 = smul.addr %s186, 4
        %s188 = scalar_lea.vmem %s0, %s187
        %s189 = smul.u32 16, %s12
      $region32: #{_bottleneck_forward.6} parent=27 // pred_fallthru
        _
    $region28: #{_bottleneck_forward.6} parent=5 // pred_fallthru
      _
    %p190 = scmp.le.s32.totalorder 1, %s12
    %p191 = scmp.lt.s32.totalorder %s12, 5
    %p192 = pnand %p190, %p191
    %p193 = pneg %p192
    // Predicated region
    $region33: #{_bottleneck_forward.6} parent=5 // pred_check
      _
    $region34: #{_bottleneck_forward.6} parent=5 // pred_check_branch
      %195 = sbr.rel (%p192) target = $region36
    $region35: #{_bottleneck_forward.6} parent=5 // pred_region
      %s196 = ssub.s32 %s12, 1
      %s197 = smul.u32 16, %s17
      %p198 = scmp.lt.s32.totalorder %s197, 63
      %s199 = scalar_select %p198, %s197, 63
      %s200 = smul.addr %s199, 4
      %s201 = scalar_lea.vmem %s0, %s200
      %p202 = pneg %p38
      %p203 = pneg %p35
      %p204 = pneg %p59
      %p205 = pneg %p56
      %p206 = pneg %p80
      %p207 = pneg %p77
      %p208 = pneg %p101
      %p209 = pneg %p98
      %p210 = pneg %p127
      %p211 = pneg %p124
      %s212 = smul.u32 16, %s17
      %p213 = scmp.lt.s32.totalorder %s212, 63
      %s214 = scalar_select %p213, %s212, 63
      %s215 = smul.addr %s214, 4
      %s216 = scalar_lea.vmem %s4, %s215
      %p217 = pneg %p153
      %p218 = pneg %p150
      %p219 = scmp.lt.s32.totalorder %s17, 3
      %s220 = scalar_select %p219, %s17, 3
      %s221 = smul.addr %s220, 2
      %s222 = scalar_lea.vmem %s5, %s221
      %s223 = smul.u32 16, %s17
      %p224 = scmp.lt.s32.totalorder %s223, 63
      %s225 = scalar_select %p224, %s223, 63
      %s226 = smul.addr %s225, 4
      %s227 = scalar_lea.vmem %s0, %s226
      %s228 = smul.u32 16, %s17
      %s229 = smul.u32 16, %s17
      %p230 = scmp.lt.s32.totalorder %s229, 63
      %s231 = scalar_select %p230, %s229, 63
      %s232 = smul.addr %s231, 4
      %s233 = scalar_lea.vmem %s4, %s232
      %s234 = smul.u32 16, %s17
      %p235 = scmp.lt.s32.totalorder %s17, 3
      %s236 = scalar_select %p235, %s17, 3
      %s237 = smul.addr %s236, 2
      %s238 = scalar_lea.vmem %s5, %s237
      %v240 = vld [vmem:[%s227] sm:$0xf]
      %v241 = vld [vmem:[%s227 + $0x4] sm:$0xf]
      %v242 = vld [vmem:[%s227 + $0x8] sm:$0xf]
      %v243 = vld [vmem:[%s227 + $0xc] sm:$0xf]
      %v244 = vld [vmem:[%s227 + $0x10] sm:$0xf]
      %v245 = vld [vmem:[%s227 + $0x14] sm:$0xf]
      %v246 = vld [vmem:[%s227 + $0x18] sm:$0xf]
      %v247 = vld [vmem:[%s227 + $0x1c] sm:$0xf]
      %v248 = vld [vmem:[%s227 + $0x20] sm:$0xf]
      %v249 = vld [vmem:[%s227 + $0x24] sm:$0xf]
      %v250 = vld [vmem:[%s227 + $0x28] sm:$0xf]
      %v251 = vld [vmem:[%s227 + $0x2c] sm:$0xf]
      %v252 = vld [vmem:[%s227 + $0x30] sm:$0xf]
      %v253 = vld [vmem:[%s227 + $0x34] sm:$0xf]
      %v254 = vld [vmem:[%s227 + $0x38] sm:$0xf]
      %v255 = vld [vmem:[%s227 + $0x3c] sm:$0xf]
      %v256 = vunpack.c.l.bf16 %v240
      %v257 = vunpack.c.l.bf16 %v241
      %v258 = vunpack.c.l.bf16 %v242
      %v259 = vunpack.c.l.bf16 %v243
      %v260 = vunpack.c.l.bf16 %v244
      %v261 = vunpack.c.l.bf16 %v245
      %v262 = vunpack.c.l.bf16 %v246
      %v263 = vunpack.c.l.bf16 %v247
      %v264 = vunpack.c.l.bf16 %v248
      %v265 = vunpack.c.l.bf16 %v249
      %v266 = vunpack.c.l.bf16 %v250
      %v267 = vunpack.c.l.bf16 %v251
      %v268 = vunpack.c.l.bf16 %v252
      %v269 = vunpack.c.l.bf16 %v253
      %v270 = vunpack.c.l.bf16 %v254
      %v271 = vunpack.c.l.bf16 %v255
      %v272 = vld [vmem:[%s1] sm:$0x1]
      %v274 = vlaneseq
      %v275 = vshrl.u32 %v274, 7
      %v276 = vsub.s32 0, %v275
      %v277 = vrot.slane %v272, %v276
      %v279 = vmul.f32 %v256, %v277
      %v280 = vmul.f32 %v257, %v277
      %v281 = vmul.f32 %v258, %v277
      %v282 = vmul.f32 %v259, %v277
      %v283 = vmul.f32 %v260, %v277
      %v284 = vmul.f32 %v261, %v277
      %v285 = vmul.f32 %v262, %v277
      %v286 = vmul.f32 %v263, %v277
      %v287 = vmul.f32 %v264, %v277
      %v288 = vmul.f32 %v265, %v277
      %v289 = vmul.f32 %v266, %v277
      %v290 = vmul.f32 %v267, %v277
      %v291 = vmul.f32 %v268, %v277
      %v292 = vmul.f32 %v269, %v277
      %v293 = vmul.f32 %v270, %v277
      %v294 = vmul.f32 %v271, %v277
      %v295 = vld [vmem:[%s2] sm:$0x1]
      %v297 = vlaneseq
      %v298 = vshrl.u32 %v297, 7
      %v299 = vsub.s32 0, %v298
      %v300 = vrot.slane %v295, %v299
      %v302 = vadd.f32 %v279, %v300
      %v303 = vadd.f32 %v280, %v300
      %v304 = vadd.f32 %v281, %v300
      %v305 = vadd.f32 %v282, %v300
      %v306 = vadd.f32 %v283, %v300
      %v307 = vadd.f32 %v284, %v300
      %v308 = vadd.f32 %v285, %v300
      %v309 = vadd.f32 %v286, %v300
      %v310 = vadd.f32 %v287, %v300
      %v311 = vadd.f32 %v288, %v300
      %v312 = vadd.f32 %v289, %v300
      %v313 = vadd.f32 %v290, %v300
      %v314 = vadd.f32 %v291, %v300
      %v315 = vadd.f32 %v292, %v300
      %v316 = vadd.f32 %v293, %v300
      %v317 = vadd.f32 %v294, %v300
      %v318 = vmax.f32 %v302, 0.0
      %v319 = vmax.f32 %v303, 0.0
      %v320 = vmax.f32 %v304, 0.0
      %v321 = vmax.f32 %v305, 0.0
      %v322 = vmax.f32 %v306, 0.0
      %v323 = vmax.f32 %v307, 0.0
      %v324 = vmax.f32 %v308, 0.0
      %v325 = vmax.f32 %v309, 0.0
      %v326 = vmax.f32 %v310, 0.0
      %v327 = vmax.f32 %v311, 0.0
      %v328 = vmax.f32 %v312, 0.0
      %v329 = vmax.f32 %v313, 0.0
      %v330 = vmax.f32 %v314, 0.0
      %v331 = vmax.f32 %v315, 0.0
      %v332 = vmax.f32 %v316, 0.0
      %v333 = vmax.f32 %v317, 0.0
      %v334 = vpack.c.bf16 %v319, %v318
      %v335 = vpack.c.bf16 %v321, %v320
      %v336 = vpack.c.bf16 %v323, %v322
      %v337 = vpack.c.bf16 %v325, %v324
      %v338 = vpack.c.bf16 %v327, %v326
      %v339 = vpack.c.bf16 %v329, %v328
      %v340 = vpack.c.bf16 %v331, %v330
      %v341 = vpack.c.bf16 %v333, %v332
      %v342 = vld [vmem:[%s3] sm:$0xf]
      %v343 = vld [vmem:[%s3 + $0x4] sm:$0xf]
      %v344 = vld [vmem:[%s3 + $0x8] sm:$0xf]
      %v345 = vld [vmem:[%s3 + $0xc] sm:$0xf]
      %v346 = vld [vmem:[%s3 + $0x10] sm:$0xf]
      %v347 = vld [vmem:[%s3 + $0x14] sm:$0xf]
      %v348 = vld [vmem:[%s3 + $0x18] sm:$0xf]
      %v349 = vld [vmem:[%s3 + $0x1c] sm:$0xf]
      %v350 = vld [vmem:[%s3 + $0x20] sm:$0xf]
      %v351 = vld [vmem:[%s3 + $0x24] sm:$0xf]
      %v352 = vld [vmem:[%s3 + $0x28] sm:$0xf]
      %v353 = vld [vmem:[%s3 + $0x2c] sm:$0xf]
      %v354 = vld [vmem:[%s3 + $0x30] sm:$0xf]
      %v355 = vld [vmem:[%s3 + $0x34] sm:$0xf]
      %v356 = vld [vmem:[%s3 + $0x38] sm:$0xf]
      %v357 = vld [vmem:[%s3 + $0x3c] sm:$0xf]
      %v374 = vunpack.c.l.b16 %v342
      %v375 = vunpack.c.l.b16 %v343
      %v376 = vunpack.c.l.b16 %v344
      %v377 = vunpack.c.l.b16 %v345
      %v378 = vunpack.c.l.b16 %v346
      %v379 = vunpack.c.l.b16 %v347
      %v380 = vunpack.c.l.b16 %v348
      %v381 = vunpack.c.l.b16 %v349
      %v382 = vunpack.c.l.b16 %v350
      %v383 = vunpack.c.l.b16 %v351
      %v384 = vunpack.c.l.b16 %v352
      %v385 = vunpack.c.l.b16 %v353
      %v386 = vunpack.c.l.b16 %v354
      %v387 = vunpack.c.l.b16 %v355
      %v388 = vunpack.c.l.b16 %v356
      %v389 = vunpack.c.l.b16 %v357
      %v390 = vpack.c.b16 %v375, %v374
      %v391 = vpack.c.b16 %v377, %v376
      %v392 = vpack.c.b16 %v379, %v378
      %v393 = vpack.c.b16 %v381, %v380
      %v394 = vpack.c.b16 %v383, %v382
      %v395 = vpack.c.b16 %v385, %v384
      %v396 = vpack.c.b16 %v387, %v386
      %v397 = vpack.c.b16 %v389, %v388
      %406 = vmatprep.subr.bf16.mxu0 0
      %407 = vmatpush1.bf16.msra.mxu0 %v397
      %408 = vmatprep.subr.bf16.mxu0 0
      %409 = vmatpush1.bf16.msra.mxu0 %v396
      %410 = vmatprep.subr.bf16.mxu0 0
      %411 = vmatpush1.bf16.msra.mxu0 %v395
      %412 = vmatprep.subr.bf16.mxu0 0
      %413 = vmatpush1.bf16.msra.mxu0 %v394
      %414 = vmatprep.subr.bf16.mxu0 0
      %415 = vmatpush1.bf16.msra.mxu0 %v393
      %416 = vmatprep.subr.bf16.mxu0 0
      %417 = vmatpush1.bf16.msra.mxu0 %v392
      %418 = vmatprep.subr.bf16.mxu0 0
      %419 = vmatpush1.bf16.msra.mxu0 %v391
      %420 = vmatprep.subr.bf16.mxu0 0
      %421 = vmatpush1.bf16.msra.mxu0 %v390
      %422 = vmatprep.subr.bf16.mxu0 0
      %423 = vmatpush2.bf16.msra.mxu0 0
      %424 = vmatprep.subr.bf16.mxu0 0
      %425 = vmatpush2.bf16.msra.mxu0 0
      %426 = vmatprep.subr.bf16.mxu0 0
      %427 = vmatpush2.bf16.msra.mxu0 0
      %428 = vmatprep.subr.bf16.mxu0 0
      %429 = vmatpush2.bf16.msra.mxu0 0
      %430 = vmatprep.subr.bf16.mxu0 0
      %431 = vmatpush2.bf16.msra.mxu0 0
      %432 = vmatprep.subr.bf16.mxu0 0
      %433 = vmatpush2.bf16.msra.mxu0 0
      %434 = vmatprep.subr.bf16.mxu0 0
      %435 = vmatpush2.bf16.msra.mxu0 0
      %436 = vmatprep.subr.bf16.mxu0 0
      %437 = vmatpush2.bf16.msra.mxu0 0
      %438 = vmatprep.mubr.bf16.mxu0 0
      %439 = vmatmul.mubr.bf16.gmra.mxu0 %v334
      %v440 = vpop.f32.mrf.mxu0
      %v441 = vadd.f32 0.0, %v440
      %v442 = vpop.f32.mrf.mxu0
      %v443 = vpop.f32.mrf.mxu0
      %v444 = vadd.f32 0.0, %v443
      %v445 = vpop.f32.mrf.mxu0
      %446 = vmatprep.mubr.bf16.mxu0 0
      %447 = vmatmul.mubr.bf16.gmra.mxu0 %v335
      %v448 = vpop.f32.mrf.mxu0
      %v449 = vadd.f32 0.0, %v448
      %v450 = vpop.f32.mrf.mxu0
      %v451 = vpop.f32.mrf.mxu0
      %v452 = vadd.f32 0.0, %v451
      %v453 = vpop.f32.mrf.mxu0
      %454 = vmatprep.mubr.bf16.mxu0 0
      %455 = vmatmul.mubr.bf16.gmra.mxu0 %v336
      %v456 = vpop.f32.mrf.mxu0
      %v457 = vadd.f32 0.0, %v456
      %v458 = vpop.f32.mrf.mxu0
      %v459 = vpop.f32.mrf.mxu0
      %v460 = vadd.f32 0.0, %v459
      %v461 = vpop.f32.mrf.mxu0
      %462 = vmatprep.mubr.bf16.mxu0 0
      %463 = vmatmul.mubr.bf16.gmra.mxu0 %v337
      %v464 = vpop.f32.mrf.mxu0
      %v465 = vadd.f32 0.0, %v464
      %v466 = vpop.f32.mrf.mxu0
      %v467 = vpop.f32.mrf.mxu0
      %v468 = vadd.f32 0.0, %v467
      %v469 = vpop.f32.mrf.mxu0
      %470 = vmatprep.mubr.bf16.mxu0 0
      %471 = vmatmul.mubr.bf16.gmra.mxu0 %v338
      %v472 = vpop.f32.mrf.mxu0
      %v473 = vadd.f32 0.0, %v472
      %v474 = vpop.f32.mrf.mxu0
      %v475 = vpop.f32.mrf.mxu0
      %v476 = vadd.f32 0.0, %v475
      %v477 = vpop.f32.mrf.mxu0
      %478 = vmatprep.mubr.bf16.mxu0 0
      %479 = vmatmul.mubr.bf16.gmra.mxu0 %v339
      %v480 = vpop.f32.mrf.mxu0
      %v481 = vadd.f32 0.0, %v480
      %v482 = vpop.f32.mrf.mxu0
      %v483 = vpop.f32.mrf.mxu0
      %v484 = vadd.f32 0.0, %v483
      %v485 = vpop.f32.mrf.mxu0
      %486 = vmatprep.mubr.bf16.mxu0 0
      %487 = vmatmul.mubr.bf16.gmra.mxu0 %v340
      %v488 = vpop.f32.mrf.mxu0
      %v489 = vadd.f32 0.0, %v488
      %v490 = vpop.f32.mrf.mxu0
      %v491 = vpop.f32.mrf.mxu0
      %v492 = vadd.f32 0.0, %v491
      %v493 = vpop.f32.mrf.mxu0
      %494 = vmatprep.mubr.bf16.mxu0 0
      %495 = vmatmul.mubr.bf16.gmra.mxu0 %v341
      %v496 = vpop.f32.mrf.mxu0
      %v497 = vadd.f32 0.0, %v496
      %v498 = vpop.f32.mrf.mxu0
      %v499 = vpop.f32.mrf.mxu0
      %v500 = vadd.f32 0.0, %v499
      %v501 = vpop.f32.mrf.mxu0
      %502 = vdwg.mxu0
      %v503 = vadd.f32 %v441, %v444
      %v504 = vadd.f32 %v503, %v449
      %v505 = vadd.f32 %v504, %v452
      %v506 = vadd.f32 %v505, %v457
      %v507 = vadd.f32 %v506, %v460
      %v508 = vadd.f32 %v507, %v465
      %v509 = vadd.f32 %v508, %v468
      %v510 = vadd.f32 %v509, %v473
      %v511 = vadd.f32 %v510, %v476
      %v512 = vadd.f32 %v511, %v481
      %v513 = vadd.f32 %v512, %v484
      %v514 = vadd.f32 %v513, %v489
      %v515 = vadd.f32 %v514, %v492
      %v516 = vadd.f32 %v515, %v497
      %v517 = vadd.f32 %v516, %v500
      %v518 = vrot.slane %v517, 4
      %v519 = vadd.f32 %v517, %v518
      %v520 = vrot.slane %v519, 2
      %v521 = vadd.f32 %v519, %v520
      %v522 = vrot.slane %v521, 1
      %v523 = vadd.f32 %v521, %v522
      %v524 = vmul.f32 %v441, %v441
      %v525 = vmul.f32 %v444, %v444
      %v526 = vmul.f32 %v449, %v449
      %v527 = vmul.f32 %v452, %v452
      %v528 = vmul.f32 %v457, %v457
      %v529 = vmul.f32 %v460, %v460
      %v530 = vmul.f32 %v465, %v465
      %v531 = vmul.f32 %v468, %v468
      %v532 = vmul.f32 %v473, %v473
      %v533 = vmul.f32 %v476, %v476
      %v534 = vmul.f32 %v481, %v481
      %v535 = vmul.f32 %v484, %v484
      %v536 = vmul.f32 %v489, %v489
      %v537 = vmul.f32 %v492, %v492
      %v538 = vmul.f32 %v497, %v497
      %v539 = vmul.f32 %v500, %v500
      %v540 = vadd.f32 %v524, %v525
      %v541 = vadd.f32 %v540, %v526
      %v542 = vadd.f32 %v541, %v527
      %v543 = vadd.f32 %v542, %v528
      %v544 = vadd.f32 %v543, %v529
      %v545 = vadd.f32 %v544, %v530
      %v546 = vadd.f32 %v545, %v531
      %v547 = vadd.f32 %v546, %v532
      %v548 = vadd.f32 %v547, %v533
      %v549 = vadd.f32 %v548, %v534
      %v550 = vadd.f32 %v549, %v535
      %v551 = vadd.f32 %v550, %v536
      %v552 = vadd.f32 %v551, %v537
      %v553 = vadd.f32 %v552, %v538
      %v554 = vadd.f32 %v553, %v539
      %v555 = vrot.slane %v554, 4
      %v556 = vadd.f32 %v554, %v555
      %v557 = vrot.slane %v556, 2
      %v558 = vadd.f32 %v556, %v557
      %v559 = vrot.slane %v558, 1
      %v560 = vadd.f32 %v558, %v559
      %vm561 = vcmask 1040384
      %v562 = vsel %vm561, %v523, %v560
      %563 = vst [vmem:[%s238] sm:$0x3] %v562
      %v564 = vpack.c.bf16 %v444, %v441
      %v565 = vpack.c.bf16 %v452, %v449
      %v566 = vpack.c.bf16 %v460, %v457
      %v567 = vpack.c.bf16 %v468, %v465
      %v568 = vpack.c.bf16 %v476, %v473
      %v569 = vpack.c.bf16 %v484, %v481
      %v570 = vpack.c.bf16 %v492, %v489
      %v571 = vpack.c.bf16 %v500, %v497
      %v580 = vunpack.c.l.b16 %v564
      %v581 = vunpack.c.h.b16 %v564
      %v582 = vunpack.c.l.b16 %v565
      %v583 = vunpack.c.h.b16 %v565
      %v584 = vunpack.c.l.b16 %v566
      %v585 = vunpack.c.h.b16 %v566
      %v586 = vunpack.c.l.b16 %v567
      %v587 = vunpack.c.h.b16 %v567
      %v588 = vunpack.c.l.b16 %v568
      %v589 = vunpack.c.h.b16 %v568
      %v590 = vunpack.c.l.b16 %v569
      %v591 = vunpack.c.h.b16 %v569
      %v592 = vunpack.c.l.b16 %v570
      %v593 = vunpack.c.h.b16 %v570
      %v594 = vunpack.c.l.b16 %v571
      %v595 = vunpack.c.h.b16 %v571
      %v596 = vpack.c.b16 %v580, %v580
      %v597 = vpack.c.b16 %v581, %v581
      %v598 = vpack.c.b16 %v582, %v582
      %v599 = vpack.c.b16 %v583, %v583
      %v600 = vpack.c.b16 %v584, %v584
      %v601 = vpack.c.b16 %v585, %v585
      %v602 = vpack.c.b16 %v586, %v586
      %v603 = vpack.c.b16 %v587, %v587
      %v604 = vpack.c.b16 %v588, %v588
      %v605 = vpack.c.b16 %v589, %v589
      %v606 = vpack.c.b16 %v590, %v590
      %v607 = vpack.c.b16 %v591, %v591
      %v608 = vpack.c.b16 %v592, %v592
      %v609 = vpack.c.b16 %v593, %v593
      %v610 = vpack.c.b16 %v594, %v594
      %v611 = vpack.c.b16 %v595, %v595
      %628 = vst [vmem:[%s233] sm:$0xf] %v596
      %629 = vst [vmem:[%s233 + $0x4] sm:$0xf] %v597
      %630 = vst [vmem:[%s233 + $0x8] sm:$0xf] %v598
      %631 = vst [vmem:[%s233 + $0xc] sm:$0xf] %v599
      %632 = vst [vmem:[%s233 + $0x10] sm:$0xf] %v600
      %633 = vst [vmem:[%s233 + $0x14] sm:$0xf] %v601
      %634 = vst [vmem:[%s233 + $0x18] sm:$0xf] %v602
      %635 = vst [vmem:[%s233 + $0x1c] sm:$0xf] %v603
      %636 = vst [vmem:[%s233 + $0x20] sm:$0xf] %v604
      %637 = vst [vmem:[%s233 + $0x24] sm:$0xf] %v605
      %638 = vst [vmem:[%s233 + $0x28] sm:$0xf] %v606
      %639 = vst [vmem:[%s233 + $0x2c] sm:$0xf] %v607
      %640 = vst [vmem:[%s233 + $0x30] sm:$0xf] %v608
      %641 = vst [vmem:[%s233 + $0x34] sm:$0xf] %v609
      %642 = vst [vmem:[%s233 + $0x38] sm:$0xf] %v610
      %643 = vst [vmem:[%s233 + $0x3c] sm:$0xf] %v611
      %s644 = smul.u32 16, %s17
      %p645 = scmp.lt.s32.totalorder %s644, 63
      %s646 = scalar_select %p645, %s644, 63
      %s647 = smul.addr %s646, 4
      %s648 = scalar_lea.vmem %s4, %s647
      %p649 = scmp.lt.s32.totalorder %s17, 3
      %s650 = scalar_select %p649, %s17, 3
      %s651 = smul.addr %s650, 2
      %s652 = scalar_lea.vmem %s5, %s651
      // Predicated region
      $region37: #{_bottleneck_forward.6} parent=35 // pred_check
        %p653 = pneg %p124
      $region38: #{_bottleneck_forward.6} parent=35 // pred_check_branch
        %655 = sbr.rel (%p653) target = $region40
      $region39: #{_bottleneck_forward.6} parent=35 // pred_region
        %s656 = smul.u32 16, %s17
      $region40: #{_bottleneck_forward.6} parent=35 // pred_fallthru
        _
      // Predicated region
      $region41: #{_bottleneck_forward.6} parent=35 // pred_check
        %p657 = pneg %p150
      $region42: #{_bottleneck_forward.6} parent=35 // pred_check_branch
        %659 = sbr.rel (%p657) target = $region44
      $region43: #{_bottleneck_forward.6} parent=35 // pred_region
        _
      $region44: #{_bottleneck_forward.6} parent=35 // pred_fallthru
        _
    $region36: #{_bottleneck_forward.6} parent=5 // pred_fallthru
      _
    %p660 = scmp.le.s32.totalorder 2, %s12
    // Predicated region
    $region45: #{_bottleneck_forward.6} parent=5 // pred_check
      %p661 = pneg %p660
    $region46: #{_bottleneck_forward.6} parent=5 // pred_check_branch
      %663 = sbr.rel (%p661) target = $region48
    $region47: #{_bottleneck_forward.6} parent=5 // pred_region
      %s664 = ssub.s32 %s12, 2
      // Predicated region
      $region49: #{_bottleneck_forward.6} parent=47 // pred_check
        %p665 = pneg %p130
      $region50: #{_bottleneck_forward.6} parent=47 // pred_check_branch
        %667 = sbr.rel (%p665) target = $region52
      $region51: #{_bottleneck_forward.6} parent=47 // pred_region
        %s668 = smul.u32 16, %s18
        %p669 = scmp.lt.s32.totalorder %s668, 63
        %s670 = scalar_select %p669, %s668, 63
        %s671 = smul.addr %s670, 4
        %s672 = scalar_lea.vmem %s4, %s671
      $region52: #{_bottleneck_forward.6} parent=47 // pred_fallthru
        _
      // Predicated region
      $region53: #{_bottleneck_forward.6} parent=47 // pred_check
        %p673 = pneg %p156
      $region54: #{_bottleneck_forward.6} parent=47 // pred_check_branch
        %675 = sbr.rel (%p673) target = $region56
      $region55: #{_bottleneck_forward.6} parent=47 // pred_region
        %p676 = scmp.lt.s32.totalorder %s18, 3
        %s677 = scalar_select %p676, %s18, 3
        %s678 = smul.addr %s677, 2
        %s679 = scalar_lea.vmem %s5, %s678
      $region56: #{_bottleneck_forward.6} parent=47 // pred_fallthru
        _
    $region48: #{_bottleneck_forward.6} parent=5 // pred_fallthru
      _
  $region6: #{_bottleneck_forward.6} parent=0 // loop_footer
    %s16 = sadd.s32 1, %s12
  $region7: #{_bottleneck_forward.6} parent=0 // loop_footer_branch
    %11 = sbr.rel target = $region3
  $region8: #{_bottleneck_forward.6} parent=0 // loop_exit
    _

// kernel: _bottleneck_forward.5
$region0: #{_bottleneck_forward.5}
  #allocation0 [shape = 'u32[]', space=smem, size = 0x4, offset = 0x4, fixed_abs, tag = 'smem constant byte address 0x4 - core index']
  #allocation1 [shape = 'u32[144,128]{1,0:T(1,128)}', space=vmem, size = 0x12000, scoped, tag = 'internal scratch']
  #allocation2 [shape = 'f32[10,18,128]{2,1,0:T(8,128)}', space=vmem, size = 0x1e000, scoped, tag = 'scratch operand']
  %s0 = inlined_call_operand.vmem [shape: bf16[512,128], index: 0, kind: input, shape index: {}, may-alias: {0,1,2}]
  %s1 = inlined_call_operand.vmem [shape: bf16[512,128], index: 1, kind: input, shape index: {}, may-alias: {0,1,2}]
  %s2 = inlined_call_operand.vmem [shape: bf16[512,128], index: 2, kind: input, shape index: {}, may-alias: {0,1,2}]
  %s3 = inlined_call_operand.vmem [shape: f32[1,128], index: 3, kind: input, shape index: {}]
  %s4 = inlined_call_operand.vmem [shape: f32[1,128], index: 4, kind: input, shape index: {}]
  %s5 = inlined_call_operand.vmem [shape: bf16[9,128,128], index: 5, kind: input, shape index: {}]
  %s6 = inlined_call_operand.vmem [shape: bf16[512,128], index: 6, kind: output, shape index: {0}]
  %s7 = inlined_call_operand.vmem [shape: f32[4,2,128], index: 7, kind: output, shape index: {1}]
  %8 = xla_tuple %s6, %s7
  %s9 = sld [smem:[#allocation0]]
  $region65: #{_bottleneck_forward.5} parent=0
    _
  %s11 = ssub.s32 1, %s9
  %s12 = scalar_select 0, %s11, %s9
  loop: start=0, step=1, limit=6
  $region2: #{_bottleneck_forward.5} parent=0 // loop_pre_header
    _
  $region3: #{_bottleneck_forward.5} parent=0 // loop_header
    %s14 = sphi 0, %s18
    %p15 = scmp.ge.s32.totalorder %s14, 6
    %s21 = sphi 0, %s33
    %s22 = sphi 0, %s29
    %s23 = sphi 0, %s21
    %s24 = sphi 0, %s22
    %s25 = sphi 0, %s23
    %s26 = sphi 0, %s24
    %s40 = sphi 0, %s42
    %s43 = sphi 0, %s40
    %s44 = sphi 0, %s43
    %s60 = sphi 0, %s44
    %s78 = sphi 0, %s80
    %s81 = sphi 0, %s78
    %s82 = sphi 0, %s81
    %s98 = sphi 0, %s82
    %s116 = sphi 0, %s118
    %s119 = sphi 0, %s116
    %s120 = sphi 0, %s119
    %s136 = sphi 0, %s120
    %s140 = sphi 0, %s140
    %s142 = sphi 0, %s140
    %s143 = sphi 0, %s142
    %s157 = sphi 0, %s143
    %s161 = sphi 0, %s161
    %s163 = sphi 0, %s161
    %s164 = sphi 0, %s163
    %s178 = sphi 0, %s164
    %s182 = sphi 0, %s182
    %s184 = sphi 0, %s182
    %s185 = sphi 0, %s184
    %s199 = sphi 0, %s185
    %s209 = sphi 0, %s211
    %s212 = sphi 0, %s209
    %s213 = sphi 0, %s212
    %s229 = sphi 0, %s213
    %s239 = sphi 0, %s241
    %s242 = sphi 0, %s239
    %s243 = sphi 0, %s242
    %s259 = sphi 0, %s243
  $region4: #{_bottleneck_forward.5} parent=0 // loop_header_branch
    %17 = sbr.rel (%p15) target = $region8
  $region5: #{_bottleneck_forward.5} parent=0 // loop_body
    %s19 = ssub.s32 %s14, 1
    %s20 = ssub.s32 %s14, 2
    %s27 = sadd.s32 1, %s22
    %p28 = scmp.ge.s32.totalorder %s27, 2
    %s29 = scalar_select %p28, 0, %s27
    %s30 = sadd.s32 1, %s21
    %s31 = scalar_select %p28, %s30, %s21
    %p32 = scmp.ge.s32.totalorder %s31, 2
    %s33 = scalar_select %p32, 0, %s31
    %s34 = smul.u32 %s21, 2
    %s35 = sadd.s32 %s34, %s22
    %s36 = smul.u32 %s33, 2
    %s37 = sadd.s32 %s36, %s29
    %s38 = ssub.s32 %s35, %s37
    %p39 = scmp.eq.s32.totalorder %s38, 0
    %s41 = sadd.s32 %s40, 1
    %s42 = scalar_select %p39, %s40, %s41
    %p45 = pneg %p39
    %p46 = scmp.eq.s32.totalorder %s14, 3
    %p47 = por %p45, %p46
    %p48 = scmp.ne.s32.totalorder %s40, %s43
    %p49 = scmp.eq.s32.totalorder %s14, 0
    %p50 = por %p48, %p49
    %p51 = scmp.ne.s32.totalorder %s40, %s43
    %p52 = scmp.eq.s32.totalorder %s19, 3
    %p53 = por %p51, %p52
    %p54 = scmp.ne.s32.totalorder %s43, %s44
    %p55 = scmp.eq.s32.totalorder %s19, 0
    %p56 = por %p54, %p55
    %p57 = scmp.ne.s32.totalorder %s43, %s44
    %p58 = scmp.eq.s32.totalorder %s20, 3
    %p59 = por %p57, %p58
    %p61 = scmp.ne.s32.totalorder %s44, %s60
    %p62 = scmp.eq.s32.totalorder %s20, 0
    %p63 = por %p61, %p62
    %s64 = smul.u32 %s21, 16
    %s65 = smul.u32 %s22, 8
    %s66 = ssub.s32 %s65, 1
    %p67 = scmp.gt.s32.totalorder %s66, 0
    %s68 = scalar_select %p67, %s66, 0
    %s69 = sadd.s32 %s64, %s68
    %s70 = smul.u32 %s33, 16
    %s71 = smul.u32 %s29, 8
    %s72 = ssub.s32 %s71, 1
    %p73 = scmp.gt.s32.totalorder %s72, 0
    %s74 = scalar_select %p73, %s72, 0
    %s75 = sadd.s32 %s70, %s74
    %s76 = ssub.s32 %s69, %s75
    %p77 = scmp.eq.s32.totalorder %s76, 0
    %s79 = sadd.s32 %s78, 1
    %s80 = scalar_select %p77, %s78, %s79
    %p83 = pneg %p77
    %p84 = scmp.eq.s32.totalorder %s14, 3
    %p85 = por %p83, %p84
    %p86 = scmp.ne.s32.totalorder %s78, %s81
    %p87 = scmp.eq.s32.totalorder %s14, 0
    %p88 = por %p86, %p87
    %p89 = scmp.ne.s32.totalorder %s78, %s81
    %p90 = scmp.eq.s32.totalorder %s19, 3
    %p91 = por %p89, %p90
    %p92 = scmp.ne.s32.totalorder %s81, %s82
    %p93 = scmp.eq.s32.totalorder %s19, 0
    %p94 = por %p92, %p93
    %p95 = scmp.ne.s32.totalorder %s81, %s82
    %p96 = scmp.eq.s32.totalorder %s20, 3
    %p97 = por %p95, %p96
    %p99 = scmp.ne.s32.totalorder %s82, %s98
    %p100 = scmp.eq.s32.totalorder %s20, 0
    %p101 = por %p99, %p100
    %s102 = smul.u32 %s21, 16
    %s103 = sadd.s32 %s22, 1
    %s104 = smul.u32 %s103, 8
    %p105 = scmp.lt.s32.totalorder %s104, 15
    %s106 = scalar_select %p105, %s104, 15
    %s107 = sadd.s32 %s102, %s106
    %s108 = smul.u32 %s33, 16
    %s109 = sadd.s32 %s29, 1
    %s110 = smul.u32 %s109, 8
    %p111 = scmp.lt.s32.totalorder %s110, 15
    %s112 = scalar_select %p111, %s110, 15
    %s113 = sadd.s32 %s108, %s112
    %s114 = ssub.s32 %s107, %s113
    %p115 = scmp.eq.s32.totalorder %s114, 0
    %s117 = sadd.s32 %s116, 1
    %s118 = scalar_select %p115, %s116, %s117
    %p121 = pneg %p115
    %p122 = scmp.eq.s32.totalorder %s14, 3
    %p123 = por %p121, %p122
    %p124 = scmp.ne.s32.totalorder %s116, %s119
    %p125 = scmp.eq.s32.totalorder %s14, 0
    %p126 = por %p124, %p125
    %p127 = scmp.ne.s32.totalorder %s116, %s119
    %p128 = scmp.eq.s32.totalorder %s19, 3
    %p129 = por %p127, %p128
    %p130 = scmp.ne.s32.totalorder %s119, %s120
    %p131 = scmp.eq.s32.totalorder %s19, 0
    %p132 = por %p130, %p131
    %p133 = scmp.ne.s32.totalorder %s119, %s120
    %p134 = scmp.eq.s32.totalorder %s20, 3
    %p135 = por %p133, %p134
    %p137 = scmp.ne.s32.totalorder %s120, %s136
    %p138 = scmp.eq.s32.totalorder %s20, 0
    %p139 = por %p137, %p138
    %s141 = sadd.s32 %s140, 1
    %p144 = scmp.eq.s32.totalorder %s14, 3
    %p145 = scmp.ne.s32.totalorder %s140, %s142
    %p146 = scmp.eq.s32.totalorder %s14, 0
    %p147 = por %p145, %p146
    %p148 = scmp.ne.s32.totalorder %s140, %s142
    %p149 = scmp.eq.s32.totalorder %s19, 3
    %p150 = por %p148, %p149
    %p151 = scmp.ne.s32.totalorder %s142, %s143
    %p152 = scmp.eq.s32.totalorder %s19, 0
    %p153 = por %p151, %p152
    %p154 = scmp.ne.s32.totalorder %s142, %s143
    %p155 = scmp.eq.s32.totalorder %s20, 3
    %p156 = por %p154, %p155
    %p158 = scmp.ne.s32.totalorder %s143, %s157
    %p159 = scmp.eq.s32.totalorder %s20, 0
    %p160 = por %p158, %p159
    %s162 = sadd.s32 %s161, 1
    %p165 = scmp.eq.s32.totalorder %s14, 3
    %p166 = scmp.ne.s32.totalorder %s161, %s163
    %p167 = scmp.eq.s32.totalorder %s14, 0
    %p168 = por %p166, %p167
    %p169 = scmp.ne.s32.totalorder %s161, %s163
    %p170 = scmp.eq.s32.totalorder %s19, 3
    %p171 = por %p169, %p170
    %p172 = scmp.ne.s32.totalorder %s163, %s164
    %p173 = scmp.eq.s32.totalorder %s19, 0
    %p174 = por %p172, %p173
    %p175 = scmp.ne.s32.totalorder %s163, %s164
    %p176 = scmp.eq.s32.totalorder %s20, 3
    %p177 = por %p175, %p176
    %p179 = scmp.ne.s32.totalorder %s164, %s178
    %p180 = scmp.eq.s32.totalorder %s20, 0
    %p181 = por %p179, %p180
    %s183 = sadd.s32 %s182, 1
    %p186 = scmp.eq.s32.totalorder %s14, 3
    %p187 = scmp.ne.s32.totalorder %s182, %s184
    %p188 = scmp.eq.s32.totalorder %s14, 0
    %p189 = por %p187, %p188
    %p190 = scmp.ne.s32.totalorder %s182, %s184
    %p191 = scmp.eq.s32.totalorder %s19, 3
    %p192 = por %p190, %p191
    %p193 = scmp.ne.s32.totalorder %s184, %s185
    %p194 = scmp.eq.s32.totalorder %s19, 0
    %p195 = por %p193, %p194
    %p196 = scmp.ne.s32.totalorder %s184, %s185
    %p197 = scmp.eq.s32.totalorder %s20, 3
    %p198 = por %p196, %p197
    %p200 = scmp.ne.s32.totalorder %s185, %s199
    %p201 = scmp.eq.s32.totalorder %s20, 0
    %p202 = por %p200, %p201
    %s203 = smul.u32 %s21, 2
    %s204 = sadd.s32 %s203, %s22
    %s205 = smul.u32 %s33, 2
    %s206 = sadd.s32 %s205, %s29
    %s207 = ssub.s32 %s204, %s206
    %p208 = scmp.eq.s32.totalorder %s207, 0
    %s210 = sadd.s32 %s209, 1
    %s211 = scalar_select %p208, %s209, %s210
    %p214 = pneg %p208
    %p215 = scmp.eq.s32.totalorder %s14, 3
    %p216 = por %p214, %p215
    %p217 = scmp.ne.s32.totalorder %s209, %s212
    %p218 = scmp.eq.s32.totalorder %s14, 0
    %p219 = por %p217, %p218
    %p220 = scmp.ne.s32.totalorder %s209, %s212
    %p221 = scmp.eq.s32.totalorder %s19, 3
    %p222 = por %p220, %p221
    %p223 = scmp.ne.s32.totalorder %s212, %s213
    %p224 = scmp.eq.s32.totalorder %s19, 0
    %p225 = por %p223, %p224
    %p226 = scmp.ne.s32.totalorder %s212, %s213
    %p227 = scmp.eq.s32.totalorder %s20, 3
    %p228 = por %p226, %p227
    %p230 = scmp.ne.s32.totalorder %s213, %s229
    %p231 = scmp.eq.s32.totalorder %s20, 0
    %p232 = por %p230, %p231
    %s233 = smul.u32 %s21, 2
    %s234 = sadd.s32 %s233, %s22
    %s235 = smul.u32 %s33, 2
    %s236 = sadd.s32 %s235, %s29
    %s237 = ssub.s32 %s234, %s236
    %p238 = scmp.eq.s32.totalorder %s237, 0
    %s240 = sadd.s32 %s239, 1
    %s241 = scalar_select %p238, %s239, %s240
    %p244 = pneg %p238
    %p245 = scmp.eq.s32.totalorder %s14, 3
    %p246 = por %p244, %p245
    %p247 = scmp.ne.s32.totalorder %s239, %s242
    %p248 = scmp.eq.s32.totalorder %s14, 0
    %p249 = por %p247, %p248
    %p250 = scmp.ne.s32.totalorder %s239, %s242
    %p251 = scmp.eq.s32.totalorder %s19, 3
    %p252 = por %p250, %p251
    %p253 = scmp.ne.s32.totalorder %s242, %s243
    %p254 = scmp.eq.s32.totalorder %s19, 0
    %p255 = por %p253, %p254
    %p256 = scmp.ne.s32.totalorder %s242, %s243
    %p257 = scmp.eq.s32.totalorder %s20, 3
    %p258 = por %p256, %p257
    %p260 = scmp.ne.s32.totalorder %s243, %s259
    %p261 = scmp.eq.s32.totalorder %s20, 0
    %p262 = por %p260, %p261
    %p263 = scmp.le.s32.totalorder 1, %s14
    %p264 = scmp.lt.s32.totalorder %s14, 5
    %p265 = pnand %p263, %p264
    %p266 = pneg %p265
    // Predicated region
    $region9: #{_bottleneck_forward.5} parent=5 // pred_check
      _
    $region10: #{_bottleneck_forward.5} parent=5 // pred_check_branch
      %268 = sbr.rel (%p265) target = $region12
    $region11: #{_bottleneck_forward.5} parent=5 // pred_region
      %s269 = ssub.s32 %s14, 1
      // Predicated region
      $region13: #{_bottleneck_forward.5} parent=11 // pred_check
        %p270 = pneg %p153
      $region14: #{_bottleneck_forward.5} parent=11 // pred_check_branch
        %272 = sbr.rel (%p270) target = $region16
      $region15: #{_bottleneck_forward.5} parent=11 // pred_region
        _
      $region16: #{_bottleneck_forward.5} parent=11 // pred_fallthru
        _
      // Predicated region
      $region17: #{_bottleneck_forward.5} parent=11 // pred_check
        %p273 = pneg %p174
      $region18: #{_bottleneck_forward.5} parent=11 // pred_check_branch
        %275 = sbr.rel (%p273) target = $region20
      $region19: #{_bottleneck_forward.5} parent=11 // pred_region
        _
      $region20: #{_bottleneck_forward.5} parent=11 // pred_fallthru
        _
      // Predicated region
      $region21: #{_bottleneck_forward.5} parent=11 // pred_check
        %p276 = pneg %p195
      $region22: #{_bottleneck_forward.5} parent=11 // pred_check_branch
        %278 = sbr.rel (%p276) target = $region24
      $region23: #{_bottleneck_forward.5} parent=11 // pred_region
        _
      $region24: #{_bottleneck_forward.5} parent=11 // pred_fallthru
        _
    $region12: #{_bottleneck_forward.5} parent=5 // pred_fallthru
      _
    %p279 = scmp.lt.s32.totalorder %s14, 4
    // Predicated region
    $region25: #{_bottleneck_forward.5} parent=5 // pred_check
      %p280 = pneg %p279
    $region26: #{_bottleneck_forward.5} parent=5 // pred_check_branch
      %282 = sbr.rel (%p280) target = $region28
    $region27: #{_bottleneck_forward.5} parent=5 // pred_region
      // Predicated region
      $region29: #{_bottleneck_forward.5} parent=27 // pred_check
        %p283 = pneg %p50
      $region30: #{_bottleneck_forward.5} parent=27 // pred_check_branch
        %285 = sbr.rel (%p283) target = $region32
      $region31: #{_bottleneck_forward.5} parent=27 // pred_region
        %s286 = smul.u32 %s21, 2
        %s287 = sadd.s32 %s286, %s22
        %s288 = smul.u32 16, %s287
        %p289 = scmp.lt.s32.totalorder %s288, 63
        %s290 = scalar_select %p289, %s288, 63
        %s291 = smul.addr %s290, 4
        %s292 = scalar_lea.vmem %s0, %s291
        %s293 = smul.u32 %s21, 2
        %s294 = sadd.s32 %s293, %s22
        %s295 = smul.u32 16, %s294
      $region32: #{_bottleneck_forward.5} parent=27 // pred_fallthru
        _
      // Predicated region
      $region33: #{_bottleneck_forward.5} parent=27 // pred_check
        %p296 = pneg %p88
      $region34: #{_bottleneck_forward.5} parent=27 // pred_check_branch
        %298 = sbr.rel (%p296) target = $region36
      $region35: #{_bottleneck_forward.5} parent=27 // pred_region
        %s299 = smul.u32 %s21, 16
        %s300 = smul.u32 %s22, 8
        %s301 = ssub.s32 %s300, 1
        %p302 = scmp.gt.s32.totalorder %s301, 0
        %s303 = scalar_select %p302, %s301, 0
        %s304 = sadd.s32 %s299, %s303
        %s305 = smul.u32 2, %s304
        %p306 = scmp.lt.s32.totalorder %s305, 63
        %s307 = scalar_select %p306, %s305, 63
        %s308 = smul.addr %s307, 4
        %s309 = scalar_lea.vmem %s1, %s308
        %s310 = smul.u32 %s21, 16
        %s311 = smul.u32 %s22, 8
        %s312 = ssub.s32 %s311, 1
        %p313 = scmp.gt.s32.totalorder %s312, 0
        %s314 = scalar_select %p313, %s312, 0
        %s315 = sadd.s32 %s310, %s314
        %s316 = smul.u32 2, %s315
      $region36: #{_bottleneck_forward.5} parent=27 // pred_fallthru
        _
      // Predicated region
      $region37: #{_bottleneck_forward.5} parent=27 // pred_check
        %p317 = pneg %p126
      $region38: #{_bottleneck_forward.5} parent=27 // pred_check_branch
        %319 = sbr.rel (%p317) target = $region40
      $region39: #{_bottleneck_forward.5} parent=27 // pred_region
        %s320 = smul.u32 %s21, 16
        %s321 = sadd.s32 %s22, 1
        %s322 = smul.u32 %s321, 8
        %p323 = scmp.lt.s32.totalorder %s322, 15
        %s324 = scalar_select %p323, %s322, 15
        %s325 = sadd.s32 %s320, %s324
        %s326 = smul.u32 2, %s325
        %p327 = scmp.lt.s32.totalorder %s326, 63
        %s328 = scalar_select %p327, %s326, 63
        %s329 = smul.addr %s328, 4
        %s330 = scalar_lea.vmem %s2, %s329
        %s331 = smul.u32 %s21, 16
        %s332 = sadd.s32 %s22, 1
        %s333 = smul.u32 %s332, 8
        %p334 = scmp.lt.s32.totalorder %s333, 15
        %s335 = scalar_select %p334, %s333, 15
        %s336 = sadd.s32 %s331, %s335
        %s337 = smul.u32 2, %s336
      $region40: #{_bottleneck_forward.5} parent=27 // pred_fallthru
        _
    $region28: #{_bottleneck_forward.5} parent=5 // pred_fallthru
      _
    %p338 = scmp.le.s32.totalorder 1, %s14
    %p339 = scmp.lt.s32.totalorder %s14, 5
    %p340 = pnand %p338, %p339
    %p341 = pneg %p340
    // Predicated region
    $region41: #{_bottleneck_forward.5} parent=5 // pred_check
      _
    $region42: #{_bottleneck_forward.5} parent=5 // pred_check_branch
      %343 = sbr.rel (%p340) target = $region44
    $region43: #{_bottleneck_forward.5} parent=5 // pred_region
      %s344 = ssub.s32 %s14, 1
      %s345 = smul.u32 %s23, 2
      %s346 = sadd.s32 %s345, %s24
      %s347 = smul.u32 16, %s346
      %p348 = scmp.lt.s32.totalorder %s347, 63
      %s349 = scalar_select %p348, %s347, 63
      %s350 = smul.addr %s349, 4
      %s351 = scalar_lea.vmem %s0, %s350
      %p352 = pneg %p56
      %p353 = pneg %p53
      %s354 = smul.u32 %s23, 16
      %s355 = smul.u32 %s24, 8
      %s356 = ssub.s32 %s355, 1
      %p357 = scmp.gt.s32.totalorder %s356, 0
      %s358 = scalar_select %p357, %s356, 0
      %s359 = sadd.s32 %s354, %s358
      %s360 = smul.u32 2, %s359
      %p361 = scmp.lt.s32.totalorder %s360, 63
      %s362 = scalar_select %p361, %s360, 63
      %s363 = smul.addr %s362, 4
      %s364 = scalar_lea.vmem %s1, %s363
      %p365 = pneg %p94
      %p366 = pneg %p91
      %s367 = smul.u32 %s23, 16
      %s368 = sadd.s32 %s24, 1
      %s369 = smul.u32 %s368, 8
      %p370 = scmp.lt.s32.totalorder %s369, 15
      %s371 = scalar_select %p370, %s369, 15
      %s372 = sadd.s32 %s367, %s371
      %s373 = smul.u32 2, %s372
      %p374 = scmp.lt.s32.totalorder %s373, 63
      %s375 = scalar_select %p374, %s373, 63
      %s376 = smul.addr %s375, 4
      %s377 = scalar_lea.vmem %s2, %s376
      %p378 = pneg %p132
      %p379 = pneg %p129
      %p380 = pneg %p153
      %p381 = pneg %p150
      %p382 = pneg %p174
      %p383 = pneg %p171
      %p384 = pneg %p195
      %p385 = pneg %p192
      %p386 = pneg %p225
      %p387 = pneg %p222
      %s388 = smul.u32 %s23, 2
      %s389 = sadd.s32 %s388, %s24
      %s390 = smul.u32 16, %s389
      %p391 = scmp.lt.s32.totalorder %s390, 63
      %s392 = scalar_select %p391, %s390, 63
      %s393 = smul.addr %s392, 4
      %s394 = scalar_lea.vmem %s6, %s393
      %p395 = pneg %p255
      %p396 = pneg %p252
      %s397 = smul.u32 %s23, 2
      %s398 = sadd.s32 %s397, %s24
      %p399 = scmp.lt.s32.totalorder %s398, 3
      %s400 = scalar_select %p399, %s398, 3
      %s401 = smul.addr %s400, 2
      %s402 = scalar_lea.vmem %s7, %s401
      %s403 = smul.u32 %s23, 2
      %s404 = sadd.s32 %s403, %s24
      %s405 = smul.u32 16, %s404
      %p406 = scmp.lt.s32.totalorder %s405, 63
      %s407 = scalar_select %p406, %s405, 63
      %s408 = smul.addr %s407, 4
      %s409 = scalar_lea.vmem %s0, %s408
      %s410 = smul.u32 %s23, 2
      %s411 = sadd.s32 %s410, %s24
      %s412 = smul.u32 16, %s411
      %s413 = smul.u32 %s23, 16
      %s414 = smul.u32 %s24, 8
      %s415 = ssub.s32 %s414, 1
      %p416 = scmp.gt.s32.totalorder %s415, 0
      %s417 = scalar_select %p416, %s415, 0
      %s418 = sadd.s32 %s413, %s417
      %s419 = smul.u32 2, %s418
      %p420 = scmp.lt.s32.totalorder %s419, 63
      %s421 = scalar_select %p420, %s419, 63
      %s422 = smul.addr %s421, 4
      %s423 = scalar_lea.vmem %s1, %s422
      %s424 = smul.u32 %s23, 16
      %s425 = smul.u32 %s24, 8
      %s426 = ssub.s32 %s425, 1
      %p427 = scmp.gt.s32.totalorder %s426, 0
      %s428 = scalar_select %p427, %s426, 0
      %s429 = sadd.s32 %s424, %s428
      %s430 = smul.u32 2, %s429
      %s431 = smul.u32 %s23, 16
      %s432 = sadd.s32 %s24, 1
      %s433 = smul.u32 %s432, 8
      %p434 = scmp.lt.s32.totalorder %s433, 15
      %s435 = scalar_select %p434, %s433, 15
      %s436 = sadd.s32 %s431, %s435
      %s437 = smul.u32 2, %s436
      %p438 = scmp.lt.s32.totalorder %s437, 63
      %s439 = scalar_select %p438, %s437, 63
      %s440 = smul.addr %s439, 4
      %s441 = scalar_lea.vmem %s2, %s440
      %s442 = smul.u32 %s23, 16
      %s443 = sadd.s32 %s24, 1
      %s444 = smul.u32 %s443, 8
      %p445 = scmp.lt.s32.totalorder %s444, 15
      %s446 = scalar_select %p445, %s444, 15
      %s447 = sadd.s32 %s442, %s446
      %s448 = smul.u32 2, %s447
      %s449 = smul.u32 %s23, 2
      %s450 = sadd.s32 %s449, %s24
      %s451 = smul.u32 16, %s450
      %p452 = scmp.lt.s32.totalorder %s451, 63
      %s453 = scalar_select %p452, %s451, 63
      %s454 = smul.addr %s453, 4
      %s455 = scalar_lea.vmem %s6, %s454
      %s456 = smul.u32 %s23, 2
      %s457 = sadd.s32 %s456, %s24
      %s458 = smul.u32 16, %s457
      %s459 = smul.u32 %s23, 2
      %s460 = sadd.s32 %s459, %s24
      %p461 = scmp.lt.s32.totalorder %s460, 3
      %s462 = scalar_select %p461, %s460, 3
      %s463 = smul.addr %s462, 2
      %s464 = scalar_lea.vmem %s7, %s463
      %s465 = smul.u32 %s23, 2
      %s466 = sadd.s32 %s465, %s24
      %v468 = vld [vmem:[%s3] sm:$0x1]
      %v469 = vld [vmem:[%s4] sm:$0x1]
      %v470 = vld [vmem:[%s409] sm:$0xf]
      %v471 = vld [vmem:[%s409 + $0x4] sm:$0xf]
      %v472 = vld [vmem:[%s409 + $0x8] sm:$0xf]
      %v473 = vld [vmem:[%s409 + $0xc] sm:$0xf]
      %v474 = vld [vmem:[%s409 + $0x10] sm:$0xf]
      %v475 = vld [vmem:[%s409 + $0x14] sm:$0xf]
      %v476 = vld [vmem:[%s409 + $0x18] sm:$0xf]
      %v477 = vld [vmem:[%s409 + $0x1c] sm:$0xf]
      %v478 = vld [vmem:[%s409 + $0x20] sm:$0xf]
      %v479 = vld [vmem:[%s409 + $0x24] sm:$0xf]
      %v480 = vld [vmem:[%s409 + $0x28] sm:$0xf]
      %v481 = vld [vmem:[%s409 + $0x2c] sm:$0xf]
      %v482 = vld [vmem:[%s409 + $0x30] sm:$0xf]
      %v483 = vld [vmem:[%s409 + $0x34] sm:$0xf]
      %v484 = vld [vmem:[%s409 + $0x38] sm:$0xf]
      %v485 = vld [vmem:[%s409 + $0x3c] sm:$0xf]
      %v486 = vunpack.c.l.bf16 %v470
      %v487 = vunpack.c.l.bf16 %v471
      %v488 = vunpack.c.l.bf16 %v472
      %v489 = vunpack.c.l.bf16 %v473
      %v490 = vunpack.c.l.bf16 %v474
      %v491 = vunpack.c.l.bf16 %v475
      %v492 = vunpack.c.l.bf16 %v476
      %v493 = vunpack.c.l.bf16 %v477
      %v494 = vunpack.c.l.bf16 %v478
      %v495 = vunpack.c.l.bf16 %v479
      %v496 = vunpack.c.l.bf16 %v480
      %v497 = vunpack.c.l.bf16 %v481
      %v498 = vunpack.c.l.bf16 %v482
      %v499 = vunpack.c.l.bf16 %v483
      %v500 = vunpack.c.l.bf16 %v484
      %v501 = vunpack.c.l.bf16 %v485
      %v503 = vlaneseq
      %v504 = vshrl.u32 %v503, 7
      %v505 = vsub.s32 0, %v504
      %v506 = vrot.slane %v468, %v505
      %v508 = vmul.f32 %v486, %v506
      %v509 = vmul.f32 %v487, %v506
      %v510 = vmul.f32 %v488, %v506
      %v511 = vmul.f32 %v489, %v506
      %v512 = vmul.f32 %v490, %v506
      %v513 = vmul.f32 %v491, %v506
      %v514 = vmul.f32 %v492, %v506
      %v515 = vmul.f32 %v493, %v506
      %v516 = vmul.f32 %v494, %v506
      %v517 = vmul.f32 %v495, %v506
      %v518 = vmul.f32 %v496, %v506
      %v519 = vmul.f32 %v497, %v506
      %v520 = vmul.f32 %v498, %v506
      %v521 = vmul.f32 %v499, %v506
      %v522 = vmul.f32 %v500, %v506
      %v523 = vmul.f32 %v501, %v506
      %v525 = vlaneseq
      %v526 = vshrl.u32 %v525, 7
      %v527 = vsub.s32 0, %v526
      %v528 = vrot.slane %v469, %v527
      %v530 = vadd.f32 %v508, %v528
      %v531 = vadd.f32 %v509, %v528
      %v532 = vadd.f32 %v510, %v528
      %v533 = vadd.f32 %v511, %v528
      %v534 = vadd.f32 %v512, %v528
      %v535 = vadd.f32 %v513, %v528
      %v536 = vadd.f32 %v514, %v528
      %v537 = vadd.f32 %v515, %v528
      %v538 = vadd.f32 %v516, %v528
      %v539 = vadd.f32 %v517, %v528
      %v540 = vadd.f32 %v518, %v528
      %v541 = vadd.f32 %v519, %v528
      %v542 = vadd.f32 %v520, %v528
      %v543 = vadd.f32 %v521, %v528
      %v544 = vadd.f32 %v522, %v528
      %v545 = vadd.f32 %v523, %v528
      %v546 = vmax.f32 %v530, 0.0
      %v547 = vmax.f32 %v531, 0.0
      %v548 = vmax.f32 %v532, 0.0
      %v549 = vmax.f32 %v533, 0.0
      %v550 = vmax.f32 %v534, 0.0
      %v551 = vmax.f32 %v535, 0.0
      %v552 = vmax.f32 %v536, 0.0
      %v553 = vmax.f32 %v537, 0.0
      %v554 = vmax.f32 %v538, 0.0
      %v555 = vmax.f32 %v539, 0.0
      %v556 = vmax.f32 %v540, 0.0
      %v557 = vmax.f32 %v541, 0.0
      %v558 = vmax.f32 %v542, 0.0
      %v559 = vmax.f32 %v543, 0.0
      %v560 = vmax.f32 %v544, 0.0
      %v561 = vmax.f32 %v545, 0.0
      %v562 = vld [vmem:[%s423] sm:$0xf]
      %v563 = vld [vmem:[%s423 + $0x4] sm:$0xf]
      %v564 = vunpack.c.l.bf16 %v562
      %v565 = vunpack.c.l.bf16 %v563
      %v566 = vmul.f32 %v564, %v506
      %v567 = vmul.f32 %v565, %v506
      %v568 = vadd.f32 %v566, %v528
      %v569 = vadd.f32 %v567, %v528
      %v570 = vmax.f32 %v568, 0.0
      %v571 = vmax.f32 %v569, 0.0
      %p572 = scmp.eq.s32.totalorder %s24, 0
      %s573 = scalar_select %p572, 0.0, 1.0
      %v574 = vstv %s573
      %v575 = vmul.f32 %v570, %v574
      %v576 = vmul.f32 %v571, %v574
      %v577 = vld [vmem:[%s441] sm:$0xf]
      %v578 = vld [vmem:[%s441 + $0x4] sm:$0xf]
      %v579 = vunpack.c.l.bf16 %v577
      %v580 = vunpack.c.l.bf16 %v578
      %v581 = vmul.f32 %v579, %v506
      %v582 = vmul.f32 %v580, %v506
      %v583 = vadd.f32 %v581, %v528
      %v584 = vadd.f32 %v582, %v528
      %v585 = vmax.f32 %v583, 0.0
      %v586 = vmax.f32 %v584, 0.0
      %p587 = scmp.eq.s32.totalorder %s24, 1
      %s588 = scalar_select %p587, 0.0, 1.0
      %v589 = vstv %s588
      %v590 = vmul.f32 %v585, %v589
      %v591 = vmul.f32 %v586, %v589
      %592 = vst [vmem:[#allocation2] sm:$0x1] 0.0
      %593 = vst [vmem:[#allocation2 + $0x18] sm:$0x1] 0.0
      %594 = vst [vmem:[#allocation2 + $0x30] sm:$0x1] 0.0
      %595 = vst [vmem:[#allocation2 + $0x48] sm:$0x1] 0.0
      %596 = vst [vmem:[#allocation2 + $0x60] sm:$0x1] 0.0
      %597 = vst [vmem:[#allocation2 + $0x78] sm:$0x1] 0.0
      %598 = vst [vmem:[#allocation2 + $0x90] sm:$0x1] 0.0
      %599 = vst [vmem:[#allocation2 + $0xa8] sm:$0x1] 0.0
      %600 = vst [vmem:[#allocation2 + $0xc0] sm:$0x1] 0.0
      %601 = vst [vmem:[#allocation2 + $0xd8] sm:$0x1] 0.0
      %602 = vst [vmem:[#allocation2 + $0x11] sm:$0x1] 0.0
      %603 = vst [vmem:[#allocation2 + $0x29] sm:$0x1] 0.0
      %604 = vst [vmem:[#allocation2 + $0x41] sm:$0x1] 0.0
      %605 = vst [vmem:[#allocation2 + $0x59] sm:$0x1] 0.0
      %606 = vst [vmem:[#allocation2 + $0x71] sm:$0x1] 0.0
      %607 = vst [vmem:[#allocation2 + $0x89] sm:$0x1] 0.0
      %608 = vst [vmem:[#allocation2 + $0xa1] sm:$0x1] 0.0
      %609 = vst [vmem:[#allocation2 + $0xb9] sm:$0x1] 0.0
      %610 = vst [vmem:[#allocation2 + $0xd1] sm:$0x1] 0.0
      %611 = vst [vmem:[#allocation2 + $0xe9] sm:$0x1] 0.0
      %612 = vst [vmem:[#allocation2 + $0x1] sm:$0xff] %v575
      %613 = vst [vmem:[#allocation2 + $0x9] sm:$0xff] %v576
      %s614 = scalar_lea.vmem [#allocation2], 216
      %615 = vst [vmem:[%s614 + $0x1] sm:$0xff] %v590
      %616 = vst [vmem:[%s614 + $0x9] sm:$0xff] %v591
      %s617 = scalar_lea.vmem [#allocation2], 24
      %618 = vst [vmem:[%s617 + $0x1] sm:$0xff] %v546
      %619 = vst [vmem:[%s617 + $0x9] sm:$0xff] %v547
      %620 = vst [vmem:[%s617 + $0x19] sm:$0xff] %v548
      %621 = vst [vmem:[%s617 + $0x21] sm:$0xff] %v549
      %622 = vst [vmem:[%s617 + $0x31] sm:$0xff] %v550
      %623 = vst [vmem:[%s617 + $0x39] sm:$0xff] %v551
      %624 = vst [vmem:[%s617 + $0x49] sm:$0xff] %v552
      %625 = vst [vmem:[%s617 + $0x51] sm:$0xff] %v553
      %626 = vst [vmem:[%s617 + $0x61] sm:$0xff] %v554
      %627 = vst [vmem:[%s617 + $0x69] sm:$0xff] %v555
      %628 = vst [vmem:[%s617 + $0x79] sm:$0xff] %v556
      %629 = vst [vmem:[%s617 + $0x81] sm:$0xff] %v557
      %630 = vst [vmem:[%s617 + $0x91] sm:$0xff] %v558
      %631 = vst [vmem:[%s617 + $0x99] sm:$0xff] %v559
      %632 = vst [vmem:[%s617 + $0xa9] sm:$0xff] %v560
      %633 = vst [vmem:[%s617 + $0xb1] sm:$0xff] %v561
      %v634 = vld [vmem:[#allocation2] sm:$0xff]
      %v635 = vld [vmem:[#allocation2 + $0x8] sm:$0xff]
      %v636 = vld [vmem:[#allocation2 + $0x18] sm:$0xff]
      %v637 = vld [vmem:[#allocation2 + $0x20] sm:$0xff]
      %v638 = vld [vmem:[#allocation2 + $0x30] sm:$0xff]
      %v639 = vld [vmem:[#allocation2 + $0x38] sm:$0xff]
      %v640 = vld [vmem:[#allocation2 + $0x48] sm:$0xff]
      %v641 = vld [vmem:[#allocation2 + $0x50] sm:$0xff]
      %v642 = vld [vmem:[#allocation2 + $0x60] sm:$0xff]
      %v643 = vld [vmem:[#allocation2 + $0x68] sm:$0xff]
      %v644 = vld [vmem:[#allocation2 + $0x78] sm:$0xff]
      %v645 = vld [vmem:[#allocation2 + $0x80] sm:$0xff]
      %v646 = vld [vmem:[#allocation2 + $0x90] sm:$0xff]
      %v647 = vld [vmem:[#allocation2 + $0x98] sm:$0xff]
      %v648 = vld [vmem:[#allocation2 + $0xa8] sm:$0xff]
      %v649 = vld [vmem:[#allocation2 + $0xb0] sm:$0xff]
      %v650 = vpack.c.bf16 %v635, %v634
      %v651 = vpack.c.bf16 %v637, %v636
      %v652 = vpack.c.bf16 %v639, %v638
      %v653 = vpack.c.bf16 %v641, %v640
      %v654 = vpack.c.bf16 %v643, %v642
      %v655 = vpack.c.bf16 %v645, %v644
      %v656 = vpack.c.bf16 %v647, %v646
      %v657 = vpack.c.bf16 %v649, %v648
      %v658 = vld [vmem:[%s5] sm:$0xf]
      %v659 = vld [vmem:[%s5 + $0x4] sm:$0xf]
      %v660 = vld [vmem:[%s5 + $0x8] sm:$0xf]
      %v661 = vld [vmem:[%s5 + $0xc] sm:$0xf]
      %v662 = vld [vmem:[%s5 + $0x10] sm:$0xf]
      %v663 = vld [vmem:[%s5 + $0x14] sm:$0xf]
      %v664 = vld [vmem:[%s5 + $0x18] sm:$0xf]
      %v665 = vld [vmem:[%s5 + $0x1c] sm:$0xf]
      %v666 = vld [vmem:[%s5 + $0x20] sm:$0xf]
      %v667 = vld [vmem:[%s5 + $0x24] sm:$0xf]
      %v668 = vld [vmem:[%s5 + $0x28] sm:$0xf]
      %v669 = vld [vmem:[%s5 + $0x2c] sm:$0xf]
      %v670 = vld [vmem:[%s5 + $0x30] sm:$0xf]
      %v671 = vld [vmem:[%s5 + $0x34] sm:$0xf]
      %v672 = vld [vmem:[%s5 + $0x38] sm:$0xf]
      %v673 = vld [vmem:[%s5 + $0x3c] sm:$0xf]
      %v674 = vld [vmem:[#allocation2 + $0x1] sm:$0xff]
      %v675 = vld [vmem:[#allocation2 + $0x9] sm:$0xff]
      %v676 = vld [vmem:[#allocation2 + $0x19] sm:$0xff]
      %v677 = vld [vmem:[#allocation2 + $0x21] sm:$0xff]
      %v678 = vld [vmem:[#allocation2 + $0x31] sm:$0xff]
      %v679 = vld [vmem:[#allocation2 + $0x39] sm:$0xff]
      %v680 = vld [vmem:[#allocation2 + $0x49] sm:$0xff]
      %v681 = vld [vmem:[#allocation2 + $0x51] sm:$0xff]
      %v682 = vld [vmem:[#allocation2 + $0x61] sm:$0xff]
      %v683 = vld [vmem:[#allocation2 + $0x69] sm:$0xff]
      %v684 = vld [vmem:[#allocation2 + $0x79] sm:$0xff]
      %v685 = vld [vmem:[#allocation2 + $0x81] sm:$0xff]
      %v686 = vld [vmem:[#allocation2 + $0x91] sm:$0xff]
      %v687 = vld [vmem:[#allocation2 + $0x99] sm:$0xff]
      %v688 = vld [vmem:[#allocation2 + $0xa9] sm:$0xff]
      %v689 = vld [vmem:[#allocation2 + $0xb1] sm:$0xff]
      %v690 = vpack.c.bf16 %v675, %v674
      %v691 = vpack.c.bf16 %v677, %v676
      %v692 = vpack.c.bf16 %v679, %v678
      %v693 = vpack.c.bf16 %v681, %v680
      %v694 = vpack.c.bf16 %v683, %v682
      %v695 = vpack.c.bf16 %v685, %v684
      %v696 = vpack.c.bf16 %v687, %v686
      %v697 = vpack.c.bf16 %v689, %v688
      %s698 = scalar_lea.vmem %s5, 64
      %v699 = vld [vmem:[%s698] sm:$0xf]
      %v700 = vld [vmem:[%s698 + $0x4] sm:$0xf]
      %v701 = vld [vmem:[%s698 + $0x8] sm:$0xf]
      %v702 = vld [vmem:[%s698 + $0xc] sm:$0xf]
      %v703 = vld [vmem:[%s698 + $0x10] sm:$0xf]
      %v704 = vld [vmem:[%s698 + $0x14] sm:$0xf]
      %v705 = vld [vmem:[%s698 + $0x18] sm:$0xf]
      %v706 = vld [vmem:[%s698 + $0x1c] sm:$0xf]
      %v707 = vld [vmem:[%s698 + $0x20] sm:$0xf]
      %v708 = vld [vmem:[%s698 + $0x24] sm:$0xf]
      %v709 = vld [vmem:[%s698 + $0x28] sm:$0xf]
      %v710 = vld [vmem:[%s698 + $0x2c] sm:$0xf]
      %v711 = vld [vmem:[%s698 + $0x30] sm:$0xf]
      %v712 = vld [vmem:[%s698 + $0x34] sm:$0xf]
      %v713 = vld [vmem:[%s698 + $0x38] sm:$0xf]
      %v714 = vld [vmem:[%s698 + $0x3c] sm:$0xf]
      %v731 = vunpack.c.l.b16 %v699
      %v732 = vunpack.c.l.b16 %v700
      %v733 = vunpack.c.l.b16 %v701
      %v734 = vunpack.c.l.b16 %v702
      %v735 = vunpack.c.l.b16 %v703
      %v736 = vunpack.c.l.b16 %v704
      %v737 = vunpack.c.l.b16 %v705
      %v738 = vunpack.c.l.b16 %v706
      %v739 = vunpack.c.l.b16 %v707
      %v740 = vunpack.c.l.b16 %v708
      %v741 = vunpack.c.l.b16 %v709
      %v742 = vunpack.c.l.b16 %v710
      %v743 = vunpack.c.l.b16 %v711
      %v744 = vunpack.c.l.b16 %v712
      %v745 = vunpack.c.l.b16 %v713
      %v746 = vunpack.c.l.b16 %v714
      %v747 = vpack.c.b16 %v732, %v731
      %v748 = vpack.c.b16 %v734, %v733
      %v749 = vpack.c.b16 %v736, %v735
      %v750 = vpack.c.b16 %v738, %v737
      %v751 = vpack.c.b16 %v740, %v739
      %v752 = vpack.c.b16 %v742, %v741
      %v753 = vpack.c.b16 %v744, %v743
      %v754 = vpack.c.b16 %v746, %v745
      %763 = vmatprep.subr.bf16.mxu0 0
      %764 = vmatpush1.bf16.msra.mxu0 %v754
      %765 = vmatprep.subr.bf16.mxu0 0
      %766 = vmatpush1.bf16.msra.mxu0 %v753
      %767 = vmatprep.subr.bf16.mxu0 0
      %768 = vmatpush1.bf16.msra.mxu0 %v752
      %769 = vmatprep.subr.bf16.mxu0 0
      %770 = vmatpush1.bf16.msra.mxu0 %v751
      %771 = vmatprep.subr.bf16.mxu0 0
      %772 = vmatpush1.bf16.msra.mxu0 %v750
      %773 = vmatprep.subr.bf16.mxu0 0
      %774 = vmatpush1.bf16.msra.mxu0 %v749
      %775 = vmatprep.subr.bf16.mxu0 0
      %776 = vmatpush1.bf16.msra.mxu0 %v748
      %777 = vmatprep.subr.bf16.mxu0 0
      %778 = vmatpush1.bf16.msra.mxu0 %v747
      %779 = vmatprep.subr.bf16.mxu0 0
      %780 = vmatpush2.bf16.msra.mxu0 0
      %781 = vmatprep.subr.bf16.mxu0 0
      %782 = vmatpush2.bf16.msra.mxu0 0
      %783 = vmatprep.subr.bf16.mxu0 0
      %784 = vmatpush2.bf16.msra.mxu0 0
      %785 = vmatprep.subr.bf16.mxu0 0
      %786 = vmatpush2.bf16.msra.mxu0 0
      %787 = vmatprep.subr.bf16.mxu0 0
      %788 = vmatpush2.bf16.msra.mxu0 0
      %789 = vmatprep.subr.bf16.mxu0 0
      %790 = vmatpush2.bf16.msra.mxu0 0
      %791 = vmatprep.subr.bf16.mxu0 0
      %792 = vmatpush2.bf16.msra.mxu0 0
      %793 = vmatprep.subr.bf16.mxu0 0
      %794 = vmatpush2.bf16.msra.mxu0 0
      %795 = vmatprep.mubr.bf16.mxu0 0
      %796 = vmatmul.mubr.bf16.gmra.mxu0 %v690
      %v797 = vpop.f32.mrf.mxu0
      %v798 = vadd.f32 0.0, %v797
      %v799 = vpop.f32.mrf.mxu0
      %v800 = vpop.f32.mrf.mxu0
      %v801 = vadd.f32 0.0, %v800
      %v802 = vpop.f32.mrf.mxu0
      %803 = vmatprep.mubr.bf16.mxu0 0
      %804 = vmatmul.mubr.bf16.gmra.mxu0 %v691
      %v805 = vpop.f32.mrf.mxu0
      %v806 = vadd.f32 0.0, %v805
      %v807 = vpop.f32.mrf.mxu0
      %v808 = vpop.f32.mrf.mxu0
      %v809 = vadd.f32 0.0, %v808
      %v810 = vpop.f32.mrf.mxu0
      %811 = vmatprep.mubr.bf16.mxu0 0
      %812 = vmatmul.mubr.bf16.gmra.mxu0 %v692
      %v813 = vpop.f32.mrf.mxu0
      %v814 = vadd.f32 0.0, %v813
      %v815 = vpop.f32.mrf.mxu0
      %v816 = vpop.f32.mrf.mxu0
      %v817 = vadd.f32 0.0, %v816
      %v818 = vpop.f32.mrf.mxu0
      %819 = vmatprep.mubr.bf16.mxu0 0
      %820 = vmatmul.mubr.bf16.gmra.mxu0 %v693
      %v821 = vpop.f32.mrf.mxu0
      %v822 = vadd.f32 0.0, %v821
      %v823 = vpop.f32.mrf.mxu0
      %v824 = vpop.f32.mrf.mxu0
      %v825 = vadd.f32 0.0, %v824
      %v826 = vpop.f32.mrf.mxu0
      %827 = vmatprep.mubr.bf16.mxu0 0
      %828 = vmatmul.mubr.bf16.gmra.mxu0 %v694
      %v829 = vpop.f32.mrf.mxu0
      %v830 = vadd.f32 0.0, %v829
      %v831 = vpop.f32.mrf.mxu0
      %v832 = vpop.f32.mrf.mxu0
      %v833 = vadd.f32 0.0, %v832
      %v834 = vpop.f32.mrf.mxu0
      %835 = vmatprep.mubr.bf16.mxu0 0
      %836 = vmatmul.mubr.bf16.gmra.mxu0 %v695
      %v837 = vpop.f32.mrf.mxu0
      %v838 = vadd.f32 0.0, %v837
      %v839 = vpop.f32.mrf.mxu0
      %v840 = vpop.f32.mrf.mxu0
      %v841 = vadd.f32 0.0, %v840
      %v842 = vpop.f32.mrf.mxu0
      %843 = vmatprep.mubr.bf16.mxu0 0
      %844 = vmatmul.mubr.bf16.gmra.mxu0 %v696
      %v845 = vpop.f32.mrf.mxu0
      %v846 = vadd.f32 0.0, %v845
      %v847 = vpop.f32.mrf.mxu0
      %v848 = vpop.f32.mrf.mxu0
      %v849 = vadd.f32 0.0, %v848
      %v850 = vpop.f32.mrf.mxu0
      %851 = vmatprep.mubr.bf16.mxu0 0
      %852 = vmatmul.mubr.bf16.gmra.mxu0 %v697
      %v853 = vpop.f32.mrf.mxu0
      %v854 = vadd.f32 0.0, %v853
      %v855 = vpop.f32.mrf.mxu0
      %v856 = vpop.f32.mrf.mxu0
      %v857 = vadd.f32 0.0, %v856
      %v858 = vpop.f32.mrf.mxu0
      %859 = vdwg.mxu0
      %v876 = vunpack.c.l.b16 %v658
      %v877 = vunpack.c.l.b16 %v659
      %v878 = vunpack.c.l.b16 %v660
      %v879 = vunpack.c.l.b16 %v661
      %v880 = vunpack.c.l.b16 %v662
      %v881 = vunpack.c.l.b16 %v663
      %v882 = vunpack.c.l.b16 %v664
      %v883 = vunpack.c.l.b16 %v665
      %v884 = vunpack.c.l.b16 %v666
      %v885 = vunpack.c.l.b16 %v667
      %v886 = vunpack.c.l.b16 %v668
      %v887 = vunpack.c.l.b16 %v669
      %v888 = vunpack.c.l.b16 %v670
      %v889 = vunpack.c.l.b16 %v671
      %v890 = vunpack.c.l.b16 %v672
      %v891 = vunpack.c.l.b16 %v673
      %v892 = vpack.c.b16 %v877, %v876
      %v893 = vpack.c.b16 %v879, %v878
      %v894 = vpack.c.b16 %v881, %v880
      %v895 = vpack.c.b16 %v883, %v882
      %v896 = vpack.c.b16 %v885, %v884
      %v897 = vpack.c.b16 %v887, %v886
      %v898 = vpack.c.b16 %v889, %v888
      %v899 = vpack.c.b16 %v891, %v890
      %908 = vmatprep.subr.bf16.mxu0 0
      %909 = vmatpush1.bf16.msra.mxu0 %v899
      %910 = vmatprep.subr.bf16.mxu0 0
      %911 = vmatpush1.bf16.msra.mxu0 %v898
      %912 = vmatprep.subr.bf16.mxu0 0
      %913 = vmatpush1.bf16.msra.mxu0 %v897
      %914 = vmatprep.subr.bf16.mxu0 0
      %915 = vmatpush1.bf16.msra.mxu0 %v896
      %916 = vmatprep.subr.bf16.mxu0 0
      %917 = vmatpush1.bf16.msra.mxu0 %v895
      %918 = vmatprep.subr.bf16.mxu0 0
      %919 = vmatpush1.bf16.msra.mxu0 %v894
      %920 = vmatprep.subr.bf16.mxu0 0
      %921 = vmatpush1.bf16.msra.mxu0 %v893
      %922 = vmatprep.subr.bf16.mxu0 0
      %923 = vmatpush1.bf16.msra.mxu0 %v892
      %924 = vmatprep.subr.bf16.mxu0 0
      %925 = vmatpush2.bf16.msra.mxu0 0
      %926 = vmatprep.subr.bf16.mxu0 0
      %927 = vmatpush2.bf16.msra.mxu0 0
      %928 = vmatprep.subr.bf16.mxu0 0
      %929 = vmatpush2.bf16.msra.mxu0 0
      %930 = vmatprep.subr.bf16.mxu0 0
      %931 = vmatpush2.bf16.msra.mxu0 0
      %932 = vmatprep.subr.bf16.mxu0 0
      %933 = vmatpush2.bf16.msra.mxu0 0
      %934 = vmatprep.subr.bf16.mxu0 0
      %935 = vmatpush2.bf16.msra.mxu0 0
      %936 = vmatprep.subr.bf16.mxu0 0
      %937 = vmatpush2.bf16.msra.mxu0 0
      %938 = vmatprep.subr.bf16.mxu0 0
      %939 = vmatpush2.bf16.msra.mxu0 0
      %940 = vmatprep.mubr.bf16.mxu0 0
      %941 = vmatmul.mubr.bf16.gmra.mxu0 %v650
      %v942 = vpop.f32.mrf.mxu0
      %v943 = vadd.f32 %v798, %v942
      %v944 = vpop.f32.mrf.mxu0
      %v945 = vpop.f32.mrf.mxu0
      %v946 = vadd.f32 %v801, %v945
      %v947 = vpop.f32.mrf.mxu0
      %948 = vmatprep.mubr.bf16.mxu0 0
      %949 = vmatmul.mubr.bf16.gmra.mxu0 %v651
      %v950 = vpop.f32.mrf.mxu0
      %v951 = vadd.f32 %v806, %v950
      %v952 = vpop.f32.mrf.mxu0
      %v953 = vpop.f32.mrf.mxu0
      %v954 = vadd.f32 %v809, %v953
      %v955 = vpop.f32.mrf.mxu0
      %956 = vmatprep.mubr.bf16.mxu0 0
      %957 = vmatmul.mubr.bf16.gmra.mxu0 %v652
      %v958 = vpop.f32.mrf.mxu0
      %v959 = vadd.f32 %v814, %v958
      %v960 = vpop.f32.mrf.mxu0
      %v961 = vpop.f32.mrf.mxu0
      %v962 = vadd.f32 %v817, %v961
      %v963 = vpop.f32.mrf.mxu0
      %964 = vmatprep.mubr.bf16.mxu0 0
      %965 = vmatmul.mubr.bf16.gmra.mxu0 %v653
      %v966 = vpop.f32.mrf.mxu0
      %v967 = vadd.f32 %v822, %v966
      %v968 = vpop.f32.mrf.mxu0
      %v969 = vpop.f32.mrf.mxu0
      %v970 = vadd.f32 %v825, %v969
      %v971 = vpop.f32.mrf.mxu0
      %972 = vmatprep.mubr.bf16.mxu0 0
      %973 = vmatmul.mubr.bf16.gmra.mxu0 %v654
      %v974 = vpop.f32.mrf.mxu0
      %v975 = vadd.f32 %v830, %v974
      %v976 = vpop.f32.mrf.mxu0
      %v977 = vpop.f32.mrf.mxu0
      %v978 = vadd.f32 %v833, %v977
      %v979 = vpop.f32.mrf.mxu0
      %980 = vmatprep.mubr.bf16.mxu0 0
      %981 = vmatmul.mubr.bf16.gmra.mxu0 %v655
      %v982 = vpop.f32.mrf.mxu0
      %v983 = vadd.f32 %v838, %v982
      %v984 = vpop.f32.mrf.mxu0
      %v985 = vpop.f32.mrf.mxu0
      %v986 = vadd.f32 %v841, %v985
      %v987 = vpop.f32.mrf.mxu0
      %988 = vmatprep.mubr.bf16.mxu0 0
      %989 = vmatmul.mubr.bf16.gmra.mxu0 %v656
      %v990 = vpop.f32.mrf.mxu0
      %v991 = vadd.f32 %v846, %v990
      %v992 = vpop.f32.mrf.mxu0
      %v993 = vpop.f32.mrf.mxu0
      %v994 = vadd.f32 %v849, %v993
      %v995 = vpop.f32.mrf.mxu0
      %996 = vmatprep.mubr.bf16.mxu0 0
      %997 = vmatmul.mubr.bf16.gmra.mxu0 %v657
      %v998 = vpop.f32.mrf.mxu0
      %v999 = vadd.f32 %v854, %v998
      %v1000 = vpop.f32.mrf.mxu0
      %v1001 = vpop.f32.mrf.mxu0
      %v1002 = vadd.f32 %v857, %v1001
      %v1003 = vpop.f32.mrf.mxu0
      %1004 = vdwg.mxu0
      %v1005 = vld [vmem:[#allocation2 + $0x2] sm:$0xff]
      %v1006 = vld [vmem:[#allocation2 + $0xa] sm:$0xff]
      %v1007 = vld [vmem:[#allocation2 + $0x1a] sm:$0xff]
      %v1008 = vld [vmem:[#allocation2 + $0x22] sm:$0xff]
      %v1009 = vld [vmem:[#allocation2 + $0x32] sm:$0xff]
      %v1010 = vld [vmem:[#allocation2 + $0x3a] sm:$0xff]
      %v1011 = vld [vmem:[#allocation2 + $0x4a] sm:$0xff]
      %v1012 = vld [vmem:[#allocation2 + $0x52] sm:$0xff]
      %v1013 = vld [vmem:[#allocation2 + $0x62] sm:$0xff]
      %v1014 = vld [vmem:[#allocation2 + $0x6a] sm:$0xff]
      %v1015 = vld [vmem:[#allocation2 + $0x7a] sm:$0xff]
      %v1016 = vld [vmem:[#allocation2 + $0x82] sm:$0xff]
      %v1017 = vld [vmem:[#allocation2 + $0x92] sm:$0xff]
      %v1018 = vld [vmem:[#allocation2 + $0x9a] sm:$0xff]
      %v1019 = vld [vmem:[#allocation2 + $0xaa] sm:$0xff]
      %v1020 = vld [vmem:[#allocation2 + $0xb2] sm:$0xff]
      %v1021 = vpack.c.bf16 %v1006, %v1005
      %v1022 = vpack.c.bf16 %v1008, %v1007
      %v1023 = vpack.c.bf16 %v1010, %v1009
      %v1024 = vpack.c.bf16 %v1012, %v1011
      %v1025 = vpack.c.bf16 %v1014, %v1013
      %v1026 = vpack.c.bf16 %v1016, %v1015
      %v1027 = vpack.c.bf16 %v1018, %v1017
      %v1028 = vpack.c.bf16 %v1020, %v1019
      %s1029 = scalar_lea.vmem %s5, 128
      %v1030 = vld [vmem:[%s1029] sm:$0xf]
      %v1031 = vld [vmem:[%s1029 + $0x4] sm:$0xf]
      %v1032 = vld [vmem:[%s1029 + $0x8] sm:$0xf]
      %v1033 = vld [vmem:[%s1029 + $0xc] sm:$0xf]
      %v1034 = vld [vmem:[%s1029 + $0x10] sm:$0xf]
      %v1035 = vld [vmem:[%s1029 + $0x14] sm:$0xf]
      %v1036 = vld [vmem:[%s1029 + $0x18] sm:$0xf]
      %v1037 = vld [vmem:[%s1029 + $0x1c] sm:$0xf]
      %v1038 = vld [vmem:[%s1029 + $0x20] sm:$0xf]
      %v1039 = vld [vmem:[%s1029 + $0x24] sm:$0xf]
      %v1040 = vld [vmem:[%s1029 + $0x28] sm:$0xf]
      %v1041 = vld [vmem:[%s1029 + $0x2c] sm:$0xf]
      %v1042 = vld [vmem:[%s1029 + $0x30] sm:$0xf]
      %v1043 = vld [vmem:[%s1029 + $0x34] sm:$0xf]
      %v1044 = vld [vmem:[%s1029 + $0x38] sm:$0xf]
      %v1045 = vld [vmem:[%s1029 + $0x3c] sm:$0xf]
      %v1062 = vunpack.c.l.b16 %v1030
      %v1063 = vunpack.c.l.b16 %v1031
      %v1064 = vunpack.c.l.b16 %v1032
      %v1065 = vunpack.c.l.b16 %v1033
      %v1066 = vunpack.c.l.b16 %v1034
      %v1067 = vunpack.c.l.b16 %v1035
      %v1068 = vunpack.c.l.b16 %v1036
      %v1069 = vunpack.c.l.b16 %v1037
      %v1070 = vunpack.c.l.b16 %v1038
      %v1071 = vunpack.c.l.b16 %v1039
      %v1072 = vunpack.c.l.b16 %v1040
      %v1073 = vunpack.c.l.b16 %v1041
      %v1074 = vunpack.c.l.b16 %v1042
      %v1075 = vunpack.c.l.b16 %v1043
      %v1076 = vunpack.c.l.b16 %v1044
      %v1077 = vunpack.c.l.b16 %v1045
      %v1078 = vpack.c.b16 %v1063, %v1062
      %v1079 = vpack.c.b16 %v1065, %v1064
      %v1080 = vpack.c.b16 %v1067, %v1066
      %v1081 = vpack.c.b16 %v1069, %v1068
      %v1082 = vpack.c.b16 %v1071, %v1070
      %v1083 = vpack.c.b16 %v1073, %v1072
      %v1084 = vpack.c.b16 %v1075, %v1074
      %v1085 = vpack.c.b16 %v1077, %v1076
      %1094 = vmatprep.subr.bf16.mxu0 0
      %1095 = vmatpush1.bf16.msra.mxu0 %v1085
      %1096 = vmatprep.subr.bf16.mxu0 0
      %1097 = vmatpush1.bf16.msra.mxu0 %v1084
      %1098 = vmatprep.subr.bf16.mxu0 0
      %1099 = vmatpush1.bf16.msra.mxu0 %v1083
      %1100 = vmatprep.subr.bf16.mxu0 0
      %1101 = vmatpush1.bf16.msra.mxu0 %v1082
      %1102 = vmatprep.subr.bf16.mxu0 0
      %1103 = vmatpush1.bf16.msra.mxu0 %v1081
      %1104 = vmatprep.subr.bf16.mxu0 0
      %1105 = vmatpush1.bf16.msra.mxu0 %v1080
      %1106 = vmatprep.subr.bf16.mxu0 0
      %1107 = vmatpush1.bf16.msra.mxu0 %v1079
      %1108 = vmatprep.subr.bf16.mxu0 0
      %1109 = vmatpush1.bf16.msra.mxu0 %v1078
      %1110 = vmatprep.subr.bf16.mxu0 0
      %1111 = vmatpush2.bf16.msra.mxu0 0
      %1112 = vmatprep.subr.bf16.mxu0 0
      %1113 = vmatpush2.bf16.msra.mxu0 0
      %1114 = vmatprep.subr.bf16.mxu0 0
      %1115 = vmatpush2.bf16.msra.mxu0 0
      %1116 = vmatprep.subr.bf16.mxu0 0
      %1117 = vmatpush2.bf16.msra.mxu0 0
      %1118 = vmatprep.subr.bf16.mxu0 0
      %1119 = vmatpush2.bf16.msra.mxu0 0
      %1120 = vmatprep.subr.bf16.mxu0 0
      %1121 = vmatpush2.bf16.msra.mxu0 0
      %1122 = vmatprep.subr.bf16.mxu0 0
      %1123 = vmatpush2.bf16.msra.mxu0 0
      %1124 = vmatprep.subr.bf16.mxu0 0
      %1125 = vmatpush2.bf16.msra.mxu0 0
      %1126 = vmatprep.mubr.bf16.mxu0 0
      %1127 = vmatmul.mubr.bf16.gmra.mxu0 %v1021
      %v1128 = vpop.f32.mrf.mxu0
      %v1129 = vadd.f32 0.0, %v1128
      %v1130 = vpop.f32.mrf.mxu0
      %v1131 = vpop.f32.mrf.mxu0
      %v1132 = vadd.f32 0.0, %v1131
      %v1133 = vpop.f32.mrf.mxu0
      %1134 = vmatprep.mubr.bf16.mxu0 0
      %1135 = vmatmul.mubr.bf16.gmra.mxu0 %v1022
      %v1136 = vpop.f32.mrf.mxu0
      %v1137 = vadd.f32 0.0, %v1136
      %v1138 = vpop.f32.mrf.mxu0
      %v1139 = vpop.f32.mrf.mxu0
      %v1140 = vadd.f32 0.0, %v1139
      %v1141 = vpop.f32.mrf.mxu0
      %1142 = vmatprep.mubr.bf16.mxu0 0
      %1143 = vmatmul.mubr.bf16.gmra.mxu0 %v1023
      %v1144 = vpop.f32.mrf.mxu0
      %v1145 = vadd.f32 0.0, %v1144
      %v1146 = vpop.f32.mrf.mxu0
      %v1147 = vpop.f32.mrf.mxu0
      %v1148 = vadd.f32 0.0, %v1147
      %v1149 = vpop.f32.mrf.mxu0
      %1150 = vmatprep.mubr.bf16.mxu0 0
      %1151 = vmatmul.mubr.bf16.gmra.mxu0 %v1024
      %v1152 = vpop.f32.mrf.mxu0
      %v1153 = vadd.f32 0.0, %v1152
      %v1154 = vpop.f32.mrf.mxu0
      %v1155 = vpop.f32.mrf.mxu0
      %v1156 = vadd.f32 0.0, %v1155
      %v1157 = vpop.f32.mrf.mxu0
      %1158 = vmatprep.mubr.bf16.mxu0 0
      %1159 = vmatmul.mubr.bf16.gmra.mxu0 %v1025
      %v1160 = vpop.f32.mrf.mxu0
      %v1161 = vadd.f32 0.0, %v1160
      %v1162 = vpop.f32.mrf.mxu0
      %v1163 = vpop.f32.mrf.mxu0
      %v1164 = vadd.f32 0.0, %v1163
      %v1165 = vpop.f32.mrf.mxu0
      %1166 = vmatprep.mubr.bf16.mxu0 0
      %1167 = vmatmul.mubr.bf16.gmra.mxu0 %v1026
      %v1168 = vpop.f32.mrf.mxu0
      %v1169 = vadd.f32 0.0, %v1168
      %v1170 = vpop.f32.mrf.mxu0
      %v1171 = vpop.f32.mrf.mxu0
      %v1172 = vadd.f32 0.0, %v1171
      %v1173 = vpop.f32.mrf.mxu0
      %1174 = vmatprep.mubr.bf16.mxu0 0
      %1175 = vmatmul.mubr.bf16.gmra.mxu0 %v1027
      %v1176 = vpop.f32.mrf.mxu0
      %v1177 = vadd.f32 0.0, %v1176
      %v1178 = vpop.f32.mrf.mxu0
      %v1179 = vpop.f32.mrf.mxu0
      %v1180 = vadd.f32 0.0, %v1179
      %v1181 = vpop.f32.mrf.mxu0
      %1182 = vmatprep.mubr.bf16.mxu0 0
      %1183 = vmatmul.mubr.bf16.gmra.mxu0 %v1028
      %v1184 = vpop.f32.mrf.mxu0
      %v1185 = vadd.f32 0.0, %v1184
      %v1186 = vpop.f32.mrf.mxu0
      %v1187 = vpop.f32.mrf.mxu0
      %v1188 = vadd.f32 0.0, %v1187
      %v1189 = vpop.f32.mrf.mxu0
      %1190 = vdwg.mxu0
      %v1191 = vadd.f32 %v943, %v1129
      %v1192 = vadd.f32 %v946, %v1132
      %v1193 = vadd.f32 %v951, %v1137
      %v1194 = vadd.f32 %v954, %v1140
      %v1195 = vadd.f32 %v959, %v1145
      %v1196 = vadd.f32 %v962, %v1148
      %v1197 = vadd.f32 %v967, %v1153
      %v1198 = vadd.f32 %v970, %v1156
      %v1199 = vadd.f32 %v975, %v1161
      %v1200 = vadd.f32 %v978, %v1164
      %v1201 = vadd.f32 %v983, %v1169
      %v1202 = vadd.f32 %v986, %v1172
      %v1203 = vadd.f32 %v991, %v1177
      %v1204 = vadd.f32 %v994, %v1180
      %v1205 = vadd.f32 %v999, %v1185
      %v1206 = vadd.f32 %v1002, %v1188
      %v1207 = vld [vmem:[%s617] sm:$0xff]
      %v1208 = vld [vmem:[%s617 + $0x8] sm:$0xff]
      %v1209 = vld [vmem:[%s617 + $0x18] sm:$0xff]
      %v1210 = vld [vmem:[%s617 + $0x20] sm:$0xff]
      %v1211 = vld [vmem:[%s617 + $0x30] sm:$0xff]
      %v1212 = vld [vmem:[%s617 + $0x38] sm:$0xff]
      %v1213 = vld [vmem:[%s617 + $0x48] sm:$0xff]
      %v1214 = vld [vmem:[%s617 + $0x50] sm:$0xff]
      %v1215 = vld [vmem:[%s617 + $0x60] sm:$0xff]
      %v1216 = vld [vmem:[%s617 + $0x68] sm:$0xff]
      %v1217 = vld [vmem:[%s617 + $0x78] sm:$0xff]
      %v1218 = vld [vmem:[%s617 + $0x80] sm:$0xff]
      %v1219 = vld [vmem:[%s617 + $0x90] sm:$0xff]
      %v1220 = vld [vmem:[%s617 + $0x98] sm:$0xff]
      %v1221 = vld [vmem:[%s617 + $0xa8] sm:$0xff]
      %v1222 = vld [vmem:[%s617 + $0xb0] sm:$0xff]
      %v1223 = vpack.c.bf16 %v1208, %v1207
      %v1224 = vpack.c.bf16 %v1210, %v1209
      %v1225 = vpack.c.bf16 %v1212, %v1211
      %v1226 = vpack.c.bf16 %v1214, %v1213
      %v1227 = vpack.c.bf16 %v1216, %v1215
      %v1228 = vpack.c.bf16 %v1218, %v1217
      %v1229 = vpack.c.bf16 %v1220, %v1219
      %v1230 = vpack.c.bf16 %v1222, %v1221
      %s1231 = scalar_lea.vmem %s5, 192
      %v1232 = vld [vmem:[%s1231] sm:$0xf]
      %v1233 = vld [vmem:[%s1231 + $0x4] sm:$0xf]
      %v1234 = vld [vmem:[%s1231 + $0x8] sm:$0xf]
      %v1235 = vld [vmem:[%s1231 + $0xc] sm:$0xf]
      %v1236 = vld [vmem:[%s1231 + $0x10] sm:$0xf]
      %v1237 = vld [vmem:[%s1231 + $0x14] sm:$0xf]
      %v1238 = vld [vmem:[%s1231 + $0x18] sm:$0xf]
      %v1239 = vld [vmem:[%s1231 + $0x1c] sm:$0xf]
      %v1240 = vld [vmem:[%s1231 + $0x20] sm:$0xf]
      %v1241 = vld [vmem:[%s1231 + $0x24] sm:$0xf]
      %v1242 = vld [vmem:[%s1231 + $0x28] sm:$0xf]
      %v1243 = vld [vmem:[%s1231 + $0x2c] sm:$0xf]
      %v1244 = vld [vmem:[%s1231 + $0x30] sm:$0xf]
      %v1245 = vld [vmem:[%s1231 + $0x34] sm:$0xf]
      %v1246 = vld [vmem:[%s1231 + $0x38] sm:$0xf]
      %v1247 = vld [vmem:[%s1231 + $0x3c] sm:$0xf]
      %v1264 = vunpack.c.l.b16 %v1232
      %v1265 = vunpack.c.l.b16 %v1233
      %v1266 = vunpack.c.l.b16 %v1234
      %v1267 = vunpack.c.l.b16 %v1235
      %v1268 = vunpack.c.l.b16 %v1236
      %v1269 = vunpack.c.l.b16 %v1237
      %v1270 = vunpack.c.l.b16 %v1238
      %v1271 = vunpack.c.l.b16 %v1239
      %v1272 = vunpack.c.l.b16 %v1240
      %v1273 = vunpack.c.l.b16 %v1241
      %v1274 = vunpack.c.l.b16 %v1242
      %v1275 = vunpack.c.l.b16 %v1243
      %v1276 = vunpack.c.l.b16 %v1244
      %v1277 = vunpack.c.l.b16 %v1245
      %v1278 = vunpack.c.l.b16 %v1246
      %v1279 = vunpack.c.l.b16 %v1247
      %v1280 = vpack.c.b16 %v1265, %v1264
      %v1281 = vpack.c.b16 %v1267, %v1266
      %v1282 = vpack.c.b16 %v1269, %v1268
      %v1283 = vpack.c.b16 %v1271, %v1270
      %v1284 = vpack.c.b16 %v1273, %v1272
      %v1285 = vpack.c.b16 %v1275, %v1274
      %v1286 = vpack.c.b16 %v1277, %v1276
      %v1287 = vpack.c.b16 %v1279, %v1278
      %1296 = vmatprep.subr.bf16.mxu0 0
      %1297 = vmatpush1.bf16.msra.mxu0 %v1287
      %1298 = vmatprep.subr.bf16.mxu0 0
      %1299 = vmatpush1.bf16.msra.mxu0 %v1286
      %1300 = vmatprep.subr.bf16.mxu0 0
      %1301 = vmatpush1.bf16.msra.mxu0 %v1285
      %1302 = vmatprep.subr.bf16.mxu0 0
      %1303 = vmatpush1.bf16.msra.mxu0 %v1284
      %1304 = vmatprep.subr.bf16.mxu0 0
      %1305 = vmatpush1.bf16.msra.mxu0 %v1283
      %1306 = vmatprep.subr.bf16.mxu0 0
      %1307 = vmatpush1.bf16.msra.mxu0 %v1282
      %1308 = vmatprep.subr.bf16.mxu0 0
      %1309 = vmatpush1.bf16.msra.mxu0 %v1281
      %1310 = vmatprep.subr.bf16.mxu0 0
      %1311 = vmatpush1.bf16.msra.mxu0 %v1280
      %1312 = vmatprep.subr.bf16.mxu0 0
      %1313 = vmatpush2.bf16.msra.mxu0 0
      %1314 = vmatprep.subr.bf16.mxu0 0
      %1315 = vmatpush2.bf16.msra.mxu0 0
      %1316 = vmatprep.subr.bf16.mxu0 0
      %1317 = vmatpush2.bf16.msra.mxu0 0
      %1318 = vmatprep.subr.bf16.mxu0 0
      %1319 = vmatpush2.bf16.msra.mxu0 0
      %1320 = vmatprep.subr.bf16.mxu0 0
      %1321 = vmatpush2.bf16.msra.mxu0 0
      %1322 = vmatprep.subr.bf16.mxu0 0
      %1323 = vmatpush2.bf16.msra.mxu0 0
      %1324 = vmatprep.subr.bf16.mxu0 0
      %1325 = vmatpush2.bf16.msra.mxu0 0
      %1326 = vmatprep.subr.bf16.mxu0 0
      %1327 = vmatpush2.bf16.msra.mxu0 0
      %1328 = vmatprep.mubr.bf16.mxu0 0
      %1329 = vmatmul.mubr.bf16.gmra.mxu0 %v1223
      %v1330 = vpop.f32.mrf.mxu0
      %v1331 = vadd.f32 0.0, %v1330
      %v1332 = vpop.f32.mrf.mxu0
      %v1333 = vpop.f32.mrf.mxu0
      %v1334 = vadd.f32 0.0, %v1333
      %v1335 = vpop.f32.mrf.mxu0
      %1336 = vmatprep.mubr.bf16.mxu0 0
      %1337 = vmatmul.mubr.bf16.gmra.mxu0 %v1224
      %v1338 = vpop.f32.mrf.mxu0
      %v1339 = vadd.f32 0.0, %v1338
      %v1340 = vpop.f32.mrf.mxu0
      %v1341 = vpop.f32.mrf.mxu0
      %v1342 = vadd.f32 0.0, %v1341
      %v1343 = vpop.f32.mrf.mxu0
      %1344 = vmatprep.mubr.bf16.mxu0 0
      %1345 = vmatmul.mubr.bf16.gmra.mxu0 %v1225
      %v1346 = vpop.f32.mrf.mxu0
      %v1347 = vadd.f32 0.0, %v1346
      %v1348 = vpop.f32.mrf.mxu0
      %v1349 = vpop.f32.mrf.mxu0
      %v1350 = vadd.f32 0.0, %v1349
      %v1351 = vpop.f32.mrf.mxu0
      %1352 = vmatprep.mubr.bf16.mxu0 0
      %1353 = vmatmul.mubr.bf16.gmra.mxu0 %v1226
      %v1354 = vpop.f32.mrf.mxu0
      %v1355 = vadd.f32 0.0, %v1354
      %v1356 = vpop.f32.mrf.mxu0
      %v1357 = vpop.f32.mrf.mxu0
      %v1358 = vadd.f32 0.0, %v1357
      %v1359 = vpop.f32.mrf.mxu0
      %1360 = vmatprep.mubr.bf16.mxu0 0
      %1361 = vmatmul.mubr.bf16.gmra.mxu0 %v1227
      %v1362 = vpop.f32.mrf.mxu0
      %v1363 = vadd.f32 0.0, %v1362
      %v1364 = vpop.f32.mrf.mxu0
      %v1365 = vpop.f32.mrf.mxu0
      %v1366 = vadd.f32 0.0, %v1365
      %v1367 = vpop.f32.mrf.mxu0
      %1368 = vmatprep.mubr.bf16.mxu0 0
      %1369 = vmatmul.mubr.bf16.gmra.mxu0 %v1228
      %v1370 = vpop.f32.mrf.mxu0
      %v1371 = vadd.f32 0.0, %v1370
      %v1372 = vpop.f32.mrf.mxu0
      %v1373 = vpop.f32.mrf.mxu0
      %v1374 = vadd.f32 0.0, %v1373
      %v1375 = vpop.f32.mrf.mxu0
      %1376 = vmatprep.mubr.bf16.mxu0 0
      %1377 = vmatmul.mubr.bf16.gmra.mxu0 %v1229
      %v1378 = vpop.f32.mrf.mxu0
      %v1379 = vadd.f32 0.0, %v1378
      %v1380 = vpop.f32.mrf.mxu0
      %v1381 = vpop.f32.mrf.mxu0
      %v1382 = vadd.f32 0.0, %v1381
      %v1383 = vpop.f32.mrf.mxu0
      %1384 = vmatprep.mubr.bf16.mxu0 0
      %1385 = vmatmul.mubr.bf16.gmra.mxu0 %v1230
      %v1386 = vpop.f32.mrf.mxu0
      %v1387 = vadd.f32 0.0, %v1386
      %v1388 = vpop.f32.mrf.mxu0
      %v1389 = vpop.f32.mrf.mxu0
      %v1390 = vadd.f32 0.0, %v1389
      %v1391 = vpop.f32.mrf.mxu0
      %1392 = vdwg.mxu0
      %v1393 = vadd.f32 %v1191, %v1331
      %v1394 = vadd.f32 %v1192, %v1334
      %v1395 = vadd.f32 %v1193, %v1339
      %v1396 = vadd.f32 %v1194, %v1342
      %v1397 = vadd.f32 %v1195, %v1347
      %v1398 = vadd.f32 %v1196, %v1350
      %v1399 = vadd.f32 %v1197, %v1355
      %v1400 = vadd.f32 %v1198, %v1358
      %v1401 = vadd.f32 %v1199, %v1363
      %v1402 = vadd.f32 %v1200, %v1366
      %v1403 = vadd.f32 %v1201, %v1371
      %v1404 = vadd.f32 %v1202, %v1374
      %v1405 = vadd.f32 %v1203, %v1379
      %v1406 = vadd.f32 %v1204, %v1382
      %v1407 = vadd.f32 %v1205, %v1387
      %v1408 = vadd.f32 %v1206, %v1390
      %v1409 = vld [vmem:[%s617 + $0x1] sm:$0xff]
      %v1410 = vld [vmem:[%s617 + $0x9] sm:$0xff]
      %v1411 = vld [vmem:[%s617 + $0x19] sm:$0xff]
      %v1412 = vld [vmem:[%s617 + $0x21] sm:$0xff]
      %v1413 = vld [vmem:[%s617 + $0x31] sm:$0xff]
      %v1414 = vld [vmem:[%s617 + $0x39] sm:$0xff]
      %v1415 = vld [vmem:[%s617 + $0x49] sm:$0xff]
      %v1416 = vld [vmem:[%s617 + $0x51] sm:$0xff]
      %v1417 = vld [vmem:[%s617 + $0x61] sm:$0xff]
      %v1418 = vld [vmem:[%s617 + $0x69] sm:$0xff]
      %v1419 = vld [vmem:[%s617 + $0x79] sm:$0xff]
      %v1420 = vld [vmem:[%s617 + $0x81] sm:$0xff]
      %v1421 = vld [vmem:[%s617 + $0x91] sm:$0xff]
      %v1422 = vld [vmem:[%s617 + $0x99] sm:$0xff]
      %v1423 = vld [vmem:[%s617 + $0xa9] sm:$0xff]
      %v1424 = vld [vmem:[%s617 + $0xb1] sm:$0xff]
      %v1425 = vpack.c.bf16 %v1410, %v1409
      %v1426 = vpack.c.bf16 %v1412, %v1411
      %v1427 = vpack.c.bf16 %v1414, %v1413
      %v1428 = vpack.c.bf16 %v1416, %v1415
      %v1429 = vpack.c.bf16 %v1418, %v1417
      %v1430 = vpack.c.bf16 %v1420, %v1419
      %v1431 = vpack.c.bf16 %v1422, %v1421
      %v1432 = vpack.c.bf16 %v1424, %v1423
      %s1433 = scalar_lea.vmem %s5, 256
      %v1434 = vld [vmem:[%s1433] sm:$0xf]
      %v1435 = vld [vmem:[%s1433 + $0x4] sm:$0xf]
      %v1436 = vld [vmem:[%s1433 + $0x8] sm:$0xf]
      %v1437 = vld [vmem:[%s1433 + $0xc] sm:$0xf]
      %v1438 = vld [vmem:[%s1433 + $0x10] sm:$0xf]
      %v1439 = vld [vmem:[%s1433 + $0x14] sm:$0xf]
      %v1440 = vld [vmem:[%s1433 + $0x18] sm:$0xf]
      %v1441 = vld [vmem:[%s1433 + $0x1c] sm:$0xf]
      %v1442 = vld [vmem:[%s1433 + $0x20] sm:$0xf]
      %v1443 = vld [vmem:[%s1433 + $0x24] sm:$0xf]
      %v1444 = vld [vmem:[%s1433 + $0x28] sm:$0xf]
      %v1445 = vld [vmem:[%s1433 + $0x2c] sm:$0xf]
      %v1446 = vld [vmem:[%s1433 + $0x30] sm:$0xf]
      %v1447 = vld [vmem:[%s1433 + $0x34] sm:$0xf]
      %v1448 = vld [vmem:[%s1433 + $0x38] sm:$0xf]
      %v1449 = vld [vmem:[%s1433 + $0x3c] sm:$0xf]
      %v1466 = vunpack.c.l.b16 %v1434
      %v1467 = vunpack.c.l.b16 %v1435
      %v1468 = vunpack.c.l.b16 %v1436
      %v1469 = vunpack.c.l.b16 %v1437
      %v1470 = vunpack.c.l.b16 %v1438
      %v1471 = vunpack.c.l.b16 %v1439
      %v1472 = vunpack.c.l.b16 %v1440
      %v1473 = vunpack.c.l.b16 %v1441
      %v1474 = vunpack.c.l.b16 %v1442
      %v1475 = vunpack.c.l.b16 %v1443
      %v1476 = vunpack.c.l.b16 %v1444
      %v1477 = vunpack.c.l.b16 %v1445
      %v1478 = vunpack.c.l.b16 %v1446
      %v1479 = vunpack.c.l.b16 %v1447
      %v1480 = vunpack.c.l.b16 %v1448
      %v1481 = vunpack.c.l.b16 %v1449
      %v1482 = vpack.c.b16 %v1467, %v1466
      %v1483 = vpack.c.b16 %v1469, %v1468
      %v1484 = vpack.c.b16 %v1471, %v1470
      %v1485 = vpack.c.b16 %v1473, %v1472
      %v1486 = vpack.c.b16 %v1475, %v1474
      %v1487 = vpack.c.b16 %v1477, %v1476
      %v1488 = vpack.c.b16 %v1479, %v1478
      %v1489 = vpack.c.b16 %v1481, %v1480
      %1498 = vmatprep.subr.bf16.mxu0 0
      %1499 = vmatpush1.bf16.msra.mxu0 %v1489
      %1500 = vmatprep.subr.bf16.mxu0 0
      %1501 = vmatpush1.bf16.msra.mxu0 %v1488
      %1502 = vmatprep.subr.bf16.mxu0 0
      %1503 = vmatpush1.bf16.msra.mxu0 %v1487
      %1504 = vmatprep.subr.bf16.mxu0 0
      %1505 = vmatpush1.bf16.msra.mxu0 %v1486
      %1506 = vmatprep.subr.bf16.mxu0 0
      %1507 = vmatpush1.bf16.msra.mxu0 %v1485
      %1508 = vmatprep.subr.bf16.mxu0 0
      %1509 = vmatpush1.bf16.msra.mxu0 %v1484
      %1510 = vmatprep.subr.bf16.mxu0 0
      %1511 = vmatpush1.bf16.msra.mxu0 %v1483
      %1512 = vmatprep.subr.bf16.mxu0 0
      %1513 = vmatpush1.bf16.msra.mxu0 %v1482
      %1514 = vmatprep.subr.bf16.mxu0 0
      %1515 = vmatpush2.bf16.msra.mxu0 0
      %1516 = vmatprep.subr.bf16.mxu0 0
      %1517 = vmatpush2.bf16.msra.mxu0 0
      %1518 = vmatprep.subr.bf16.mxu0 0
      %1519 = vmatpush2.bf16.msra.mxu0 0
      %1520 = vmatprep.subr.bf16.mxu0 0
      %1521 = vmatpush2.bf16.msra.mxu0 0
      %1522 = vmatprep.subr.bf16.mxu0 0
      %1523 = vmatpush2.bf16.msra.mxu0 0
      %1524 = vmatprep.subr.bf16.mxu0 0
      %1525 = vmatpush2.bf16.msra.mxu0 0
      %1526 = vmatprep.subr.bf16.mxu0 0
      %1527 = vmatpush2.bf16.msra.mxu0 0
      %1528 = vmatprep.subr.bf16.mxu0 0
      %1529 = vmatpush2.bf16.msra.mxu0 0
      %1530 = vmatprep.mubr.bf16.mxu0 0
      %1531 = vmatmul.mubr.bf16.gmra.mxu0 %v1425
      %v1532 = vpop.f32.mrf.mxu0
      %v1533 = vadd.f32 0.0, %v1532
      %v1534 = vpop.f32.mrf.mxu0
      %v1535 = vpop.f32.mrf.mxu0
      %v1536 = vadd.f32 0.0, %v1535
      %v1537 = vpop.f32.mrf.mxu0
      %1538 = vmatprep.mubr.bf16.mxu0 0
      %1539 = vmatmul.mubr.bf16.gmra.mxu0 %v1426
      %v1540 = vpop.f32.mrf.mxu0
      %v1541 = vadd.f32 0.0, %v1540
      %v1542 = vpop.f32.mrf.mxu0
      %v1543 = vpop.f32.mrf.mxu0
      %v1544 = vadd.f32 0.0, %v1543
      %v1545 = vpop.f32.mrf.mxu0
      %1546 = vmatprep.mubr.bf16.mxu0 0
      %1547 = vmatmul.mubr.bf16.gmra.mxu0 %v1427
      %v1548 = vpop.f32.mrf.mxu0
      %v1549 = vadd.f32 0.0, %v1548
      %v1550 = vpop.f32.mrf.mxu0
      %v1551 = vpop.f32.mrf.mxu0
      %v1552 = vadd.f32 0.0, %v1551
      %v1553 = vpop.f32.mrf.mxu0
      %1554 = vmatprep.mubr.bf16.mxu0 0
      %1555 = vmatmul.mubr.bf16.gmra.mxu0 %v1428
      %v1556 = vpop.f32.mrf.mxu0
      %v1557 = vadd.f32 0.0, %v1556
      %v1558 = vpop.f32.mrf.mxu0
      %v1559 = vpop.f32.mrf.mxu0
      %v1560 = vadd.f32 0.0, %v1559
      %v1561 = vpop.f32.mrf.mxu0
      %1562 = vmatprep.mubr.bf16.mxu0 0
      %1563 = vmatmul.mubr.bf16.gmra.mxu0 %v1429
      %v1564 = vpop.f32.mrf.mxu0
      %v1565 = vadd.f32 0.0, %v1564
      %v1566 = vpop.f32.mrf.mxu0
      %v1567 = vpop.f32.mrf.mxu0
      %v1568 = vadd.f32 0.0, %v1567
      %v1569 = vpop.f32.mrf.mxu0
      %1570 = vmatprep.mubr.bf16.mxu0 0
      %1571 = vmatmul.mubr.bf16.gmra.mxu0 %v1430
      %v1572 = vpop.f32.mrf.mxu0
      %v1573 = vadd.f32 0.0, %v1572
      %v1574 = vpop.f32.mrf.mxu0
      %v1575 = vpop.f32.mrf.mxu0
      %v1576 = vadd.f32 0.0, %v1575
      %v1577 = vpop.f32.mrf.mxu0
      %1578 = vmatprep.mubr.bf16.mxu0 0
      %1579 = vmatmul.mubr.bf16.gmra.mxu0 %v1431
      %v1580 = vpop.f32.mrf.mxu0
      %v1581 = vadd.f32 0.0, %v1580
      %v1582 = vpop.f32.mrf.mxu0
      %v1583 = vpop.f32.mrf.mxu0
      %v1584 = vadd.f32 0.0, %v1583
      %v1585 = vpop.f32.mrf.mxu0
      %1586 = vmatprep.mubr.bf16.mxu0 0
      %1587 = vmatmul.mubr.bf16.gmra.mxu0 %v1432
      %v1588 = vpop.f32.mrf.mxu0
      %v1589 = vadd.f32 0.0, %v1588
      %v1590 = vpop.f32.mrf.mxu0
      %v1591 = vpop.f32.mrf.mxu0
      %v1592 = vadd.f32 0.0, %v1591
      %v1593 = vpop.f32.mrf.mxu0
      %1594 = vdwg.mxu0
      %v1595 = vadd.f32 %v1393, %v1533
      %v1596 = vadd.f32 %v1394, %v1536
      %v1597 = vadd.f32 %v1395, %v1541
      %v1598 = vadd.f32 %v1396, %v1544
      %v1599 = vadd.f32 %v1397, %v1549
      %v1600 = vadd.f32 %v1398, %v1552
      %v1601 = vadd.f32 %v1399, %v1557
      %v1602 = vadd.f32 %v1400, %v1560
      %v1603 = vadd.f32 %v1401, %v1565
      %v1604 = vadd.f32 %v1402, %v1568
      %v1605 = vadd.f32 %v1403, %v1573
      %v1606 = vadd.f32 %v1404, %v1576
      %v1607 = vadd.f32 %v1405, %v1581
      %v1608 = vadd.f32 %v1406, %v1584
      %v1609 = vadd.f32 %v1407, %v1589
      %v1610 = vadd.f32 %v1408, %v1592
      %v1611 = vld [vmem:[%s617 + $0x2] sm:$0xff]
      %v1612 = vld [vmem:[%s617 + $0xa] sm:$0xff]
      %v1613 = vld [vmem:[%s617 + $0x1a] sm:$0xff]
      %v1614 = vld [vmem:[%s617 + $0x22] sm:$0xff]
      %v1615 = vld [vmem:[%s617 + $0x32] sm:$0xff]
      %v1616 = vld [vmem:[%s617 + $0x3a] sm:$0xff]
      %v1617 = vld [vmem:[%s617 + $0x4a] sm:$0xff]
      %v1618 = vld [vmem:[%s617 + $0x52] sm:$0xff]
      %v1619 = vld [vmem:[%s617 + $0x62] sm:$0xff]
      %v1620 = vld [vmem:[%s617 + $0x6a] sm:$0xff]
      %v1621 = vld [vmem:[%s617 + $0x7a] sm:$0xff]
      %v1622 = vld [vmem:[%s617 + $0x82] sm:$0xff]
      %v1623 = vld [vmem:[%s617 + $0x92] sm:$0xff]
      %v1624 = vld [vmem:[%s617 + $0x9a] sm:$0xff]
      %v1625 = vld [vmem:[%s617 + $0xaa] sm:$0xff]
      %v1626 = vld [vmem:[%s617 + $0xb2] sm:$0xff]
      %v1627 = vpack.c.bf16 %v1612, %v1611
      %v1628 = vpack.c.bf16 %v1614, %v1613
      %v1629 = vpack.c.bf16 %v1616, %v1615
      %v1630 = vpack.c.bf16 %v1618, %v1617
      %v1631 = vpack.c.bf16 %v1620, %v1619
      %v1632 = vpack.c.bf16 %v1622, %v1621
      %v1633 = vpack.c.bf16 %v1624, %v1623
      %v1634 = vpack.c.bf16 %v1626, %v1625
      %s1635 = scalar_lea.vmem %s5, 320
      %v1636 = vld [vmem:[%s1635] sm:$0xf]
      %v1637 = vld [vmem:[%s1635 + $0x4] sm:$0xf]
      %v1638 = vld [vmem:[%s1635 + $0x8] sm:$0xf]
      %v1639 = vld [vmem:[%s1635 + $0xc] sm:$0xf]
      %v1640 = vld [vmem:[%s1635 + $0x10] sm:$0xf]
      %v1641 = vld [vmem:[%s1635 + $0x14] sm:$0xf]
      %v1642 = vld [vmem:[%s1635 + $0x18] sm:$0xf]
      %v1643 = vld [vmem:[%s1635 + $0x1c] sm:$0xf]
      %v1644 = vld [vmem:[%s1635 + $0x20] sm:$0xf]
      %v1645 = vld [vmem:[%s1635 + $0x24] sm:$0xf]
      %v1646 = vld [vmem:[%s1635 + $0x28] sm:$0xf]
      %v1647 = vld [vmem:[%s1635 + $0x2c] sm:$0xf]
      %v1648 = vld [vmem:[%s1635 + $0x30] sm:$0xf]
      %v1649 = vld [vmem:[%s1635 + $0x34] sm:$0xf]
      %v1650 = vld [vmem:[%s1635 + $0x38] sm:$0xf]
      %v1651 = vld [vmem:[%s1635 + $0x3c] sm:$0xf]
      %v1668 = vunpack.c.l.b16 %v1636
      %v1669 = vunpack.c.l.b16 %v1637
      %v1670 = vunpack.c.l.b16 %v1638
      %v1671 = vunpack.c.l.b16 %v1639
      %v1672 = vunpack.c.l.b16 %v1640
      %v1673 = vunpack.c.l.b16 %v1641
      %v1674 = vunpack.c.l.b16 %v1642
      %v1675 = vunpack.c.l.b16 %v1643
      %v1676 = vunpack.c.l.b16 %v1644
      %v1677 = vunpack.c.l.b16 %v1645
      %v1678 = vunpack.c.l.b16 %v1646
      %v1679 = vunpack.c.l.b16 %v1647
      %v1680 = vunpack.c.l.b16 %v1648
      %v1681 = vunpack.c.l.b16 %v1649
      %v1682 = vunpack.c.l.b16 %v1650
      %v1683 = vunpack.c.l.b16 %v1651
      %v1684 = vpack.c.b16 %v1669, %v1668
      %v1685 = vpack.c.b16 %v1671, %v1670
      %v1686 = vpack.c.b16 %v1673, %v1672
      %v1687 = vpack.c.b16 %v1675, %v1674
      %v1688 = vpack.c.b16 %v1677, %v1676
      %v1689 = vpack.c.b16 %v1679, %v1678
      %v1690 = vpack.c.b16 %v1681, %v1680
      %v1691 = vpack.c.b16 %v1683, %v1682
      %1700 = vmatprep.subr.bf16.mxu0 0
      %1701 = vmatpush1.bf16.msra.mxu0 %v1691
      %1702 = vmatprep.subr.bf16.mxu0 0
      %1703 = vmatpush1.bf16.msra.mxu0 %v1690
      %1704 = vmatprep.subr.bf16.mxu0 0
      %1705 = vmatpush1.bf16.msra.mxu0 %v1689
      %1706 = vmatprep.subr.bf16.mxu0 0
      %1707 = vmatpush1.bf16.msra.mxu0 %v1688
      %1708 = vmatprep.subr.bf16.mxu0 0
      %1709 = vmatpush1.bf16.msra.mxu0 %v1687
      %1710 = vmatprep.subr.bf16.mxu0 0
      %1711 = vmatpush1.bf16.msra.mxu0 %v1686
      %1712 = vmatprep.subr.bf16.mxu0 0
      %1713 = vmatpush1.bf16.msra.mxu0 %v1685
      %1714 = vmatprep.subr.bf16.mxu0 0
      %1715 = vmatpush1.bf16.msra.mxu0 %v1684
      %1716 = vmatprep.subr.bf16.mxu0 0
      %1717 = vmatpush2.bf16.msra.mxu0 0
      %1718 = vmatprep.subr.bf16.mxu0 0
      %1719 = vmatpush2.bf16.msra.mxu0 0
      %1720 = vmatprep.subr.bf16.mxu0 0
      %1721 = vmatpush2.bf16.msra.mxu0 0
      %1722 = vmatprep.subr.bf16.mxu0 0
      %1723 = vmatpush2.bf16.msra.mxu0 0
      %1724 = vmatprep.subr.bf16.mxu0 0
      %1725 = vmatpush2.bf16.msra.mxu0 0
      %1726 = vmatprep.subr.bf16.mxu0 0
      %1727 = vmatpush2.bf16.msra.mxu0 0
      %1728 = vmatprep.subr.bf16.mxu0 0
      %1729 = vmatpush2.bf16.msra.mxu0 0
      %1730 = vmatprep.subr.bf16.mxu0 0
      %1731 = vmatpush2.bf16.msra.mxu0 0
      %1732 = vmatprep.mubr.bf16.mxu0 0
      %1733 = vmatmul.mubr.bf16.gmra.mxu0 %v1627
      %v1734 = vpop.f32.mrf.mxu0
      %v1735 = vadd.f32 0.0, %v1734
      %v1736 = vpop.f32.mrf.mxu0
      %v1737 = vpop.f32.mrf.mxu0
      %v1738 = vadd.f32 0.0, %v1737
      %v1739 = vpop.f32.mrf.mxu0
      %1740 = vmatprep.mubr.bf16.mxu0 0
      %1741 = vmatmul.mubr.bf16.gmra.mxu0 %v1628
      %v1742 = vpop.f32.mrf.mxu0
      %v1743 = vadd.f32 0.0, %v1742
      %v1744 = vpop.f32.mrf.mxu0
      %v1745 = vpop.f32.mrf.mxu0
      %v1746 = vadd.f32 0.0, %v1745
      %v1747 = vpop.f32.mrf.mxu0
      %1748 = vmatprep.mubr.bf16.mxu0 0
      %1749 = vmatmul.mubr.bf16.gmra.mxu0 %v1629
      %v1750 = vpop.f32.mrf.mxu0
      %v1751 = vadd.f32 0.0, %v1750
      %v1752 = vpop.f32.mrf.mxu0
      %v1753 = vpop.f32.mrf.mxu0
      %v1754 = vadd.f32 0.0, %v1753
      %v1755 = vpop.f32.mrf.mxu0
      %1756 = vmatprep.mubr.bf16.mxu0 0
      %1757 = vmatmul.mubr.bf16.gmra.mxu0 %v1630
      %v1758 = vpop.f32.mrf.mxu0
      %v1759 = vadd.f32 0.0, %v1758
      %v1760 = vpop.f32.mrf.mxu0
      %v1761 = vpop.f32.mrf.mxu0
      %v1762 = vadd.f32 0.0, %v1761
      %v1763 = vpop.f32.mrf.mxu0
      %1764 = vmatprep.mubr.bf16.mxu0 0
      %1765 = vmatmul.mubr.bf16.gmra.mxu0 %v1631
      %v1766 = vpop.f32.mrf.mxu0
      %v1767 = vadd.f32 0.0, %v1766
      %v1768 = vpop.f32.mrf.mxu0
      %v1769 = vpop.f32.mrf.mxu0
      %v1770 = vadd.f32 0.0, %v1769
      %v1771 = vpop.f32.mrf.mxu0
      %1772 = vmatprep.mubr.bf16.mxu0 0
      %1773 = vmatmul.mubr.bf16.gmra.mxu0 %v1632
      %v1774 = vpop.f32.mrf.mxu0
      %v1775 = vadd.f32 0.0, %v1774
      %v1776 = vpop.f32.mrf.mxu0
      %v1777 = vpop.f32.mrf.mxu0
      %v1778 = vadd.f32 0.0, %v1777
      %v1779 = vpop.f32.mrf.mxu0
      %1780 = vmatprep.mubr.bf16.mxu0 0
      %1781 = vmatmul.mubr.bf16.gmra.mxu0 %v1633
      %v1782 = vpop.f32.mrf.mxu0
      %v1783 = vadd.f32 0.0, %v1782
      %v1784 = vpop.f32.mrf.mxu0
      %v1785 = vpop.f32.mrf.mxu0
      %v1786 = vadd.f32 0.0, %v1785
      %v1787 = vpop.f32.mrf.mxu0
      %1788 = vmatprep.mubr.bf16.mxu0 0
      %1789 = vmatmul.mubr.bf16.gmra.mxu0 %v1634
      %v1790 = vpop.f32.mrf.mxu0
      %v1791 = vadd.f32 0.0, %v1790
      %v1792 = vpop.f32.mrf.mxu0
      %v1793 = vpop.f32.mrf.mxu0
      %v1794 = vadd.f32 0.0, %v1793
      %v1795 = vpop.f32.mrf.mxu0
      %1796 = vdwg.mxu0
      %v1797 = vadd.f32 %v1595, %v1735
      %v1798 = vadd.f32 %v1596, %v1738
      %v1799 = vadd.f32 %v1597, %v1743
      %v1800 = vadd.f32 %v1598, %v1746
      %v1801 = vadd.f32 %v1599, %v1751
      %v1802 = vadd.f32 %v1600, %v1754
      %v1803 = vadd.f32 %v1601, %v1759
      %v1804 = vadd.f32 %v1602, %v1762
      %v1805 = vadd.f32 %v1603, %v1767
      %v1806 = vadd.f32 %v1604, %v1770
      %v1807 = vadd.f32 %v1605, %v1775
      %v1808 = vadd.f32 %v1606, %v1778
      %v1809 = vadd.f32 %v1607, %v1783
      %v1810 = vadd.f32 %v1608, %v1786
      %v1811 = vadd.f32 %v1609, %v1791
      %v1812 = vadd.f32 %v1610, %v1794
      %s1813 = scalar_lea.vmem [#allocation2], 48
      %v1814 = vld [vmem:[%s1813] sm:$0xff]
      %v1815 = vld [vmem:[%s1813 + $0x8] sm:$0xff]
      %v1816 = vld [vmem:[%s1813 + $0x18] sm:$0xff]
      %v1817 = vld [vmem:[%s1813 + $0x20] sm:$0xff]
      %v1818 = vld [vmem:[%s1813 + $0x30] sm:$0xff]
      %v1819 = vld [vmem:[%s1813 + $0x38] sm:$0xff]
      %v1820 = vld [vmem:[%s1813 + $0x48] sm:$0xff]
      %v1821 = vld [vmem:[%s1813 + $0x50] sm:$0xff]
      %v1822 = vld [vmem:[%s1813 + $0x60] sm:$0xff]
      %v1823 = vld [vmem:[%s1813 + $0x68] sm:$0xff]
      %v1824 = vld [vmem:[%s1813 + $0x78] sm:$0xff]
      %v1825 = vld [vmem:[%s1813 + $0x80] sm:$0xff]
      %v1826 = vld [vmem:[%s1813 + $0x90] sm:$0xff]
      %v1827 = vld [vmem:[%s1813 + $0x98] sm:$0xff]
      %v1828 = vld [vmem:[%s1813 + $0xa8] sm:$0xff]
      %v1829 = vld [vmem:[%s1813 + $0xb0] sm:$0xff]
      %v1830 = vpack.c.bf16 %v1815, %v1814
      %v1831 = vpack.c.bf16 %v1817, %v1816
      %v1832 = vpack.c.bf16 %v1819, %v1818
      %v1833 = vpack.c.bf16 %v1821, %v1820
      %v1834 = vpack.c.bf16 %v1823, %v1822
      %v1835 = vpack.c.bf16 %v1825, %v1824
      %v1836 = vpack.c.bf16 %v1827, %v1826
      %v1837 = vpack.c.bf16 %v1829, %v1828
      %s1838 = scalar_lea.vmem %s5, 384
      %v1839 = vld [vmem:[%s1838] sm:$0xf]
      %v1840 = vld [vmem:[%s1838 + $0x4] sm:$0xf]
      %v1841 = vld [vmem:[%s1838 + $0x8] sm:$0xf]
      %v1842 = vld [vmem:[%s1838 + $0xc] sm:$0xf]
      %v1843 = vld [vmem:[%s1838 + $0x10] sm:$0xf]
      %v1844 = vld [vmem:[%s1838 + $0x14] sm:$0xf]
      %v1845 = vld [vmem:[%s1838 + $0x18] sm:$0xf]
      %v1846 = vld [vmem:[%s1838 + $0x1c] sm:$0xf]
      %v1847 = vld [vmem:[%s1838 + $0x20] sm:$0xf]
      %v1848 = vld [vmem:[%s1838 + $0x24] sm:$0xf]
      %v1849 = vld [vmem:[%s1838 + $0x28] sm:$0xf]
      %v1850 = vld [vmem:[%s1838 + $0x2c] sm:$0xf]
      %v1851 = vld [vmem:[%s1838 + $0x30] sm:$0xf]
      %v1852 = vld [vmem:[%s1838 + $0x34] sm:$0xf]
      %v1853 = vld [vmem:[%s1838 + $0x38] sm:$0xf]
      %v1854 = vld [vmem:[%s1838 + $0x3c] sm:$0xf]
      %v1871 = vunpack.c.l.b16 %v1839
      %v1872 = vunpack.c.l.b16 %v1840
      %v1873 = vunpack.c.l.b16 %v1841
      %v1874 = vunpack.c.l.b16 %v1842
      %v1875 = vunpack.c.l.b16 %v1843
      %v1876 = vunpack.c.l.b16 %v1844
      %v1877 = vunpack.c.l.b16 %v1845
      %v1878 = vunpack.c.l.b16 %v1846
      %v1879 = vunpack.c.l.b16 %v1847
      %v1880 = vunpack.c.l.b16 %v1848
      %v1881 = vunpack.c.l.b16 %v1849
      %v1882 = vunpack.c.l.b16 %v1850
      %v1883 = vunpack.c.l.b16 %v1851
      %v1884 = vunpack.c.l.b16 %v1852
      %v1885 = vunpack.c.l.b16 %v1853
      %v1886 = vunpack.c.l.b16 %v1854
      %v1887 = vpack.c.b16 %v1872, %v1871
      %v1888 = vpack.c.b16 %v1874, %v1873
      %v1889 = vpack.c.b16 %v1876, %v1875
      %v1890 = vpack.c.b16 %v1878, %v1877
      %v1891 = vpack.c.b16 %v1880, %v1879
      %v1892 = vpack.c.b16 %v1882, %v1881
      %v1893 = vpack.c.b16 %v1884, %v1883
      %v1894 = vpack.c.b16 %v1886, %v1885
      %1903 = vmatprep.subr.bf16.mxu0 0
      %1904 = vmatpush1.bf16.msra.mxu0 %v1894
      %1905 = vmatprep.subr.bf16.mxu0 0
      %1906 = vmatpush1.bf16.msra.mxu0 %v1893
      %1907 = vmatprep.subr.bf16.mxu0 0
      %1908 = vmatpush1.bf16.msra.mxu0 %v1892
      %1909 = vmatprep.subr.bf16.mxu0 0
      %1910 = vmatpush1.bf16.msra.mxu0 %v1891
      %1911 = vmatprep.subr.bf16.mxu0 0
      %1912 = vmatpush1.bf16.msra.mxu0 %v1890
      %1913 = vmatprep.subr.bf16.mxu0 0
      %1914 = vmatpush1.bf16.msra.mxu0 %v1889
      %1915 = vmatprep.subr.bf16.mxu0 0
      %1916 = vmatpush1.bf16.msra.mxu0 %v1888
      %1917 = vmatprep.subr.bf16.mxu0 0
      %1918 = vmatpush1.bf16.msra.mxu0 %v1887
      %1919 = vmatprep.subr.bf16.mxu0 0
      %1920 = vmatpush2.bf16.msra.mxu0 0
      %1921 = vmatprep.subr.bf16.mxu0 0
      %1922 = vmatpush2.bf16.msra.mxu0 0
      %1923 = vmatprep.subr.bf16.mxu0 0
      %1924 = vmatpush2.bf16.msra.mxu0 0
      %1925 = vmatprep.subr.bf16.mxu0 0
      %1926 = vmatpush2.bf16.msra.mxu0 0
      %1927 = vmatprep.subr.bf16.mxu0 0
      %1928 = vmatpush2.bf16.msra.mxu0 0
      %1929 = vmatprep.subr.bf16.mxu0 0
      %1930 = vmatpush2.bf16.msra.mxu0 0
      %1931 = vmatprep.subr.bf16.mxu0 0
      %1932 = vmatpush2.bf16.msra.mxu0 0
      %1933 = vmatprep.subr.bf16.mxu0 0
      %1934 = vmatpush2.bf16.msra.mxu0 0
      %1935 = vmatprep.mubr.bf16.mxu0 0
      %1936 = vmatmul.mubr.bf16.gmra.mxu0 %v1830
      %v1937 = vpop.f32.mrf.mxu0
      %v1938 = vadd.f32 0.0, %v1937
      %v1939 = vpop.f32.mrf.mxu0
      %v1940 = vpop.f32.mrf.mxu0
      %v1941 = vadd.f32 0.0, %v1940
      %v1942 = vpop.f32.mrf.mxu0
      %1943 = vmatprep.mubr.bf16.mxu0 0
      %1944 = vmatmul.mubr.bf16.gmra.mxu0 %v1831
      %v1945 = vpop.f32.mrf.mxu0
      %v1946 = vadd.f32 0.0, %v1945
      %v1947 = vpop.f32.mrf.mxu0
      %v1948 = vpop.f32.mrf.mxu0
      %v1949 = vadd.f32 0.0, %v1948
      %v1950 = vpop.f32.mrf.mxu0
      %1951 = vmatprep.mubr.bf16.mxu0 0
      %1952 = vmatmul.mubr.bf16.gmra.mxu0 %v1832
      %v1953 = vpop.f32.mrf.mxu0
      %v1954 = vadd.f32 0.0, %v1953
      %v1955 = vpop.f32.mrf.mxu0
      %v1956 = vpop.f32.mrf.mxu0
      %v1957 = vadd.f32 0.0, %v1956
      %v1958 = vpop.f32.mrf.mxu0
      %1959 = vmatprep.mubr.bf16.mxu0 0
      %1960 = vmatmul.mubr.bf16.gmra.mxu0 %v1833
      %v1961 = vpop.f32.mrf.mxu0
      %v1962 = vadd.f32 0.0, %v1961
      %v1963 = vpop.f32.mrf.mxu0
      %v1964 = vpop.f32.mrf.mxu0
      %v1965 = vadd.f32 0.0, %v1964
      %v1966 = vpop.f32.mrf.mxu0
      %1967 = vmatprep.mubr.bf16.mxu0 0
      %1968 = vmatmul.mubr.bf16.gmra.mxu0 %v1834
      %v1969 = vpop.f32.mrf.mxu0
      %v1970 = vadd.f32 0.0, %v1969
      %v1971 = vpop.f32.mrf.mxu0
      %v1972 = vpop.f32.mrf.mxu0
      %v1973 = vadd.f32 0.0, %v1972
      %v1974 = vpop.f32.mrf.mxu0
      %1975 = vmatprep.mubr.bf16.mxu0 0
      %1976 = vmatmul.mubr.bf16.gmra.mxu0 %v1835
      %v1977 = vpop.f32.mrf.mxu0
      %v1978 = vadd.f32 0.0, %v1977
      %v1979 = vpop.f32.mrf.mxu0
      %v1980 = vpop.f32.mrf.mxu0
      %v1981 = vadd.f32 0.0, %v1980
      %v1982 = vpop.f32.mrf.mxu0
      %1983 = vmatprep.mubr.bf16.mxu0 0
      %1984 = vmatmul.mubr.bf16.gmra.mxu0 %v1836
      %v1985 = vpop.f32.mrf.mxu0
      %v1986 = vadd.f32 0.0, %v1985
      %v1987 = vpop.f32.mrf.mxu0
      %v1988 = vpop.f32.mrf.mxu0
      %v1989 = vadd.f32 0.0, %v1988
      %v1990 = vpop.f32.mrf.mxu0
      %1991 = vmatprep.mubr.bf16.mxu0 0
      %1992 = vmatmul.mubr.bf16.gmra.mxu0 %v1837
      %v1993 = vpop.f32.mrf.mxu0
      %v1994 = vadd.f32 0.0, %v1993
      %v1995 = vpop.f32.mrf.mxu0
      %v1996 = vpop.f32.mrf.mxu0
      %v1997 = vadd.f32 0.0, %v1996
      %v1998 = vpop.f32.mrf.mxu0
      %1999 = vdwg.mxu0
      %v2000 = vadd.f32 %v1797, %v1938
      %v2001 = vadd.f32 %v1798, %v1941
      %v2002 = vadd.f32 %v1799, %v1946
      %v2003 = vadd.f32 %v1800, %v1949
      %v2004 = vadd.f32 %v1801, %v1954
      %v2005 = vadd.f32 %v1802, %v1957
      %v2006 = vadd.f32 %v1803, %v1962
      %v2007 = vadd.f32 %v1804, %v1965
      %v2008 = vadd.f32 %v1805, %v1970
      %v2009 = vadd.f32 %v1806, %v1973
      %v2010 = vadd.f32 %v1807, %v1978
      %v2011 = vadd.f32 %v1808, %v1981
      %v2012 = vadd.f32 %v1809, %v1986
      %v2013 = vadd.f32 %v1810, %v1989
      %v2014 = vadd.f32 %v1811, %v1994
      %v2015 = vadd.f32 %v1812, %v1997
      %v2016 = vld [vmem:[%s1813 + $0x1] sm:$0xff]
      %v2017 = vld [vmem:[%s1813 + $0x9] sm:$0xff]
      %v2018 = vld [vmem:[%s1813 + $0x19] sm:$0xff]
      %v2019 = vld [vmem:[%s1813 + $0x21] sm:$0xff]
      %v2020 = vld [vmem:[%s1813 + $0x31] sm:$0xff]
      %v2021 = vld [vmem:[%s1813 + $0x39] sm:$0xff]
      %v2022 = vld [vmem:[%s1813 + $0x49] sm:$0xff]
      %v2023 = vld [vmem:[%s1813 + $0x51] sm:$0xff]
      %v2024 = vld [vmem:[%s1813 + $0x61] sm:$0xff]
      %v2025 = vld [vmem:[%s1813 + $0x69] sm:$0xff]
      %v2026 = vld [vmem:[%s1813 + $0x79] sm:$0xff]
      %v2027 = vld [vmem:[%s1813 + $0x81] sm:$0xff]
      %v2028 = vld [vmem:[%s1813 + $0x91] sm:$0xff]
      %v2029 = vld [vmem:[%s1813 + $0x99] sm:$0xff]
      %v2030 = vld [vmem:[%s1813 + $0xa9] sm:$0xff]
      %v2031 = vld [vmem:[%s1813 + $0xb1] sm:$0xff]
      %v2032 = vpack.c.bf16 %v2017, %v2016
      %v2033 = vpack.c.bf16 %v2019, %v2018
      %v2034 = vpack.c.bf16 %v2021, %v2020
      %v2035 = vpack.c.bf16 %v2023, %v2022
      %v2036 = vpack.c.bf16 %v2025, %v2024
      %v2037 = vpack.c.bf16 %v2027, %v2026
      %v2038 = vpack.c.bf16 %v2029, %v2028
      %v2039 = vpack.c.bf16 %v2031, %v2030
      %s2040 = scalar_lea.vmem %s5, 448
      %v2041 = vld [vmem:[%s2040] sm:$0xf]
      %v2042 = vld [vmem:[%s2040 + $0x4] sm:$0xf]
      %v2043 = vld [vmem:[%s2040 + $0x8] sm:$0xf]
      %v2044 = vld [vmem:[%s2040 + $0xc] sm:$0xf]
      %v2045 = vld [vmem:[%s2040 + $0x10] sm:$0xf]
      %v2046 = vld [vmem:[%s2040 + $0x14] sm:$0xf]
      %v2047 = vld [vmem:[%s2040 + $0x18] sm:$0xf]
      %v2048 = vld [vmem:[%s2040 + $0x1c] sm:$0xf]
      %v2049 = vld [vmem:[%s2040 + $0x20] sm:$0xf]
      %v2050 = vld [vmem:[%s2040 + $0x24] sm:$0xf]
      %v2051 = vld [vmem:[%s2040 + $0x28] sm:$0xf]
      %v2052 = vld [vmem:[%s2040 + $0x2c] sm:$0xf]
      %v2053 = vld [vmem:[%s2040 + $0x30] sm:$0xf]
      %v2054 = vld [vmem:[%s2040 + $0x34] sm:$0xf]
      %v2055 = vld [vmem:[%s2040 + $0x38] sm:$0xf]
      %v2056 = vld [vmem:[%s2040 + $0x3c] sm:$0xf]
      %v2073 = vunpack.c.l.b16 %v2041
      %v2074 = vunpack.c.l.b16 %v2042
      %v2075 = vunpack.c.l.b16 %v2043
      %v2076 = vunpack.c.l.b16 %v2044
      %v2077 = vunpack.c.l.b16 %v2045
      %v2078 = vunpack.c.l.b16 %v2046
      %v2079 = vunpack.c.l.b16 %v2047
      %v2080 = vunpack.c.l.b16 %v2048
      %v2081 = vunpack.c.l.b16 %v2049
      %v2082 = vunpack.c.l.b16 %v2050
      %v2083 = vunpack.c.l.b16 %v2051
      %v2084 = vunpack.c.l.b16 %v2052
      %v2085 = vunpack.c.l.b16 %v2053
      %v2086 = vunpack.c.l.b16 %v2054
      %v2087 = vunpack.c.l.b16 %v2055
      %v2088 = vunpack.c.l.b16 %v2056
      %v2089 = vpack.c.b16 %v2074, %v2073
      %v2090 = vpack.c.b16 %v2076, %v2075
      %v2091 = vpack.c.b16 %v2078, %v2077
      %v2092 = vpack.c.b16 %v2080, %v2079
      %v2093 = vpack.c.b16 %v2082, %v2081
      %v2094 = vpack.c.b16 %v2084, %v2083
      %v2095 = vpack.c.b16 %v2086, %v2085
      %v2096 = vpack.c.b16 %v2088, %v2087
      %2105 = vmatprep.subr.bf16.mxu0 0
      %2106 = vmatpush1.bf16.msra.mxu0 %v2096
      %2107 = vmatprep.subr.bf16.mxu0 0
      %2108 = vmatpush1.bf16.msra.mxu0 %v2095
      %2109 = vmatprep.subr.bf16.mxu0 0
      %2110 = vmatpush1.bf16.msra.mxu0 %v2094
      %2111 = vmatprep.subr.bf16.mxu0 0
      %2112 = vmatpush1.bf16.msra.mxu0 %v2093
      %2113 = vmatprep.subr.bf16.mxu0 0
      %2114 = vmatpush1.bf16.msra.mxu0 %v2092
      %2115 = vmatprep.subr.bf16.mxu0 0
      %2116 = vmatpush1.bf16.msra.mxu0 %v2091
      %2117 = vmatprep.subr.bf16.mxu0 0
      %2118 = vmatpush1.bf16.msra.mxu0 %v2090
      %2119 = vmatprep.subr.bf16.mxu0 0
      %2120 = vmatpush1.bf16.msra.mxu0 %v2089
      %2121 = vmatprep.subr.bf16.mxu0 0
      %2122 = vmatpush2.bf16.msra.mxu0 0
      %2123 = vmatprep.subr.bf16.mxu0 0
      %2124 = vmatpush2.bf16.msra.mxu0 0
      %2125 = vmatprep.subr.bf16.mxu0 0
      %2126 = vmatpush2.bf16.msra.mxu0 0
      %2127 = vmatprep.subr.bf16.mxu0 0
      %2128 = vmatpush2.bf16.msra.mxu0 0
      %2129 = vmatprep.subr.bf16.mxu0 0
      %2130 = vmatpush2.bf16.msra.mxu0 0
      %2131 = vmatprep.subr.bf16.mxu0 0
      %2132 = vmatpush2.bf16.msra.mxu0 0
      %2133 = vmatprep.subr.bf16.mxu0 0
      %2134 = vmatpush2.bf16.msra.mxu0 0
      %2135 = vmatprep.subr.bf16.mxu0 0
      %2136 = vmatpush2.bf16.msra.mxu0 0
      %2137 = vmatprep.mubr.bf16.mxu0 0
      %2138 = vmatmul.mubr.bf16.gmra.mxu0 %v2032
      %v2139 = vpop.f32.mrf.mxu0
      %v2140 = vadd.f32 0.0, %v2139
      %v2141 = vpop.f32.mrf.mxu0
      %v2142 = vpop.f32.mrf.mxu0
      %v2143 = vadd.f32 0.0, %v2142
      %v2144 = vpop.f32.mrf.mxu0
      %2145 = vmatprep.mubr.bf16.mxu0 0
      %2146 = vmatmul.mubr.bf16.gmra.mxu0 %v2033
      %v2147 = vpop.f32.mrf.mxu0
      %v2148 = vadd.f32 0.0, %v2147
      %v2149 = vpop.f32.mrf.mxu0
      %v2150 = vpop.f32.mrf.mxu0
      %v2151 = vadd.f32 0.0, %v2150
      %v2152 = vpop.f32.mrf.mxu0
      %2153 = vmatprep.mubr.bf16.mxu0 0
      %2154 = vmatmul.mubr.bf16.gmra.mxu0 %v2034
      %v2155 = vpop.f32.mrf.mxu0
      %v2156 = vadd.f32 0.0, %v2155
      %v2157 = vpop.f32.mrf.mxu0
      %v2158 = vpop.f32.mrf.mxu0
      %v2159 = vadd.f32 0.0, %v2158
      %v2160 = vpop.f32.mrf.mxu0
      %2161 = vmatprep.mubr.bf16.mxu0 0
      %2162 = vmatmul.mubr.bf16.gmra.mxu0 %v2035
      %v2163 = vpop.f32.mrf.mxu0
      %v2164 = vadd.f32 0.0, %v2163
      %v2165 = vpop.f32.mrf.mxu0
      %v2166 = vpop.f32.mrf.mxu0
      %v2167 = vadd.f32 0.0, %v2166
      %v2168 = vpop.f32.mrf.mxu0
      %2169 = vmatprep.mubr.bf16.mxu0 0
      %2170 = vmatmul.mubr.bf16.gmra.mxu0 %v2036
      %v2171 = vpop.f32.mrf.mxu0
      %v2172 = vadd.f32 0.0, %v2171
      %v2173 = vpop.f32.mrf.mxu0
      %v2174 = vpop.f32.mrf.mxu0
      %v2175 = vadd.f32 0.0, %v2174
      %v2176 = vpop.f32.mrf.mxu0
      %2177 = vmatprep.mubr.bf16.mxu0 0
      %2178 = vmatmul.mubr.bf16.gmra.mxu0 %v2037
      %v2179 = vpop.f32.mrf.mxu0
      %v2180 = vadd.f32 0.0, %v2179
      %v2181 = vpop.f32.mrf.mxu0
      %v2182 = vpop.f32.mrf.mxu0
      %v2183 = vadd.f32 0.0, %v2182
      %v2184 = vpop.f32.mrf.mxu0
      %2185 = vmatprep.mubr.bf16.mxu0 0
      %2186 = vmatmul.mubr.bf16.gmra.mxu0 %v2038
      %v2187 = vpop.f32.mrf.mxu0
      %v2188 = vadd.f32 0.0, %v2187
      %v2189 = vpop.f32.mrf.mxu0
      %v2190 = vpop.f32.mrf.mxu0
      %v2191 = vadd.f32 0.0, %v2190
      %v2192 = vpop.f32.mrf.mxu0
      %2193 = vmatprep.mubr.bf16.mxu0 0
      %2194 = vmatmul.mubr.bf16.gmra.mxu0 %v2039
      %v2195 = vpop.f32.mrf.mxu0
      %v2196 = vadd.f32 0.0, %v2195
      %v2197 = vpop.f32.mrf.mxu0
      %v2198 = vpop.f32.mrf.mxu0
      %v2199 = vadd.f32 0.0, %v2198
      %v2200 = vpop.f32.mrf.mxu0
      %2201 = vdwg.mxu0
      %v2202 = vadd.f32 %v2000, %v2140
      %v2203 = vadd.f32 %v2001, %v2143
      %v2204 = vadd.f32 %v2002, %v2148
      %v2205 = vadd.f32 %v2003, %v2151
      %v2206 = vadd.f32 %v2004, %v2156
      %v2207 = vadd.f32 %v2005, %v2159
      %v2208 = vadd.f32 %v2006, %v2164
      %v2209 = vadd.f32 %v2007, %v2167
      %v2210 = vadd.f32 %v2008, %v2172
      %v2211 = vadd.f32 %v2009, %v2175
      %v2212 = vadd.f32 %v2010, %v2180
      %v2213 = vadd.f32 %v2011, %v2183
      %v2214 = vadd.f32 %v2012, %v2188
      %v2215 = vadd.f32 %v2013, %v2191
      %v2216 = vadd.f32 %v2014, %v2196
      %v2217 = vadd.f32 %v2015, %v2199
      %v2218 = vld [vmem:[%s1813 + $0x2] sm:$0xff]
      %v2219 = vld [vmem:[%s1813 + $0xa] sm:$0xff]
      %v2220 = vld [vmem:[%s1813 + $0x1a] sm:$0xff]
      %v2221 = vld [vmem:[%s1813 + $0x22] sm:$0xff]
      %v2222 = vld [vmem:[%s1813 + $0x32] sm:$0xff]
      %v2223 = vld [vmem:[%s1813 + $0x3a] sm:$0xff]
      %v2224 = vld [vmem:[%s1813 + $0x4a] sm:$0xff]
      %v2225 = vld [vmem:[%s1813 + $0x52] sm:$0xff]
      %v2226 = vld [vmem:[%s1813 + $0x62] sm:$0xff]
      %v2227 = vld [vmem:[%s1813 + $0x6a] sm:$0xff]
      %v2228 = vld [vmem:[%s1813 + $0x7a] sm:$0xff]
      %v2229 = vld [vmem:[%s1813 + $0x82] sm:$0xff]
      %v2230 = vld [vmem:[%s1813 + $0x92] sm:$0xff]
      %v2231 = vld [vmem:[%s1813 + $0x9a] sm:$0xff]
      %v2232 = vld [vmem:[%s1813 + $0xaa] sm:$0xff]
      %v2233 = vld [vmem:[%s1813 + $0xb2] sm:$0xff]
      %v2234 = vpack.c.bf16 %v2219, %v2218
      %v2235 = vpack.c.bf16 %v2221, %v2220
      %v2236 = vpack.c.bf16 %v2223, %v2222
      %v2237 = vpack.c.bf16 %v2225, %v2224
      %v2238 = vpack.c.bf16 %v2227, %v2226
      %v2239 = vpack.c.bf16 %v2229, %v2228
      %v2240 = vpack.c.bf16 %v2231, %v2230
      %v2241 = vpack.c.bf16 %v2233, %v2232
      %s2242 = scalar_lea.vmem %s5, 512
      %v2243 = vld [vmem:[%s2242] sm:$0xf]
      %v2244 = vld [vmem:[%s2242 + $0x4] sm:$0xf]
      %v2245 = vld [vmem:[%s2242 + $0x8] sm:$0xf]
      %v2246 = vld [vmem:[%s2242 + $0xc] sm:$0xf]
      %v2247 = vld [vmem:[%s2242 + $0x10] sm:$0xf]
      %v2248 = vld [vmem:[%s2242 + $0x14] sm:$0xf]
      %v2249 = vld [vmem:[%s2242 + $0x18] sm:$0xf]
      %v2250 = vld [vmem:[%s2242 + $0x1c] sm:$0xf]
      %v2251 = vld [vmem:[%s2242 + $0x20] sm:$0xf]
      %v2252 = vld [vmem:[%s2242 + $0x24] sm:$0xf]
      %v2253 = vld [vmem:[%s2242 + $0x28] sm:$0xf]
      %v2254 = vld [vmem:[%s2242 + $0x2c] sm:$0xf]
      %v2255 = vld [vmem:[%s2242 + $0x30] sm:$0xf]
      %v2256 = vld [vmem:[%s2242 + $0x34] sm:$0xf]
      %v2257 = vld [vmem:[%s2242 + $0x38] sm:$0xf]
      %v2258 = vld [vmem:[%s2242 + $0x3c] sm:$0xf]
      %v2275 = vunpack.c.l.b16 %v2243
      %v2276 = vunpack.c.l.b16 %v2244
      %v2277 = vunpack.c.l.b16 %v2245
      %v2278 = vunpack.c.l.b16 %v2246
      %v2279 = vunpack.c.l.b16 %v2247
      %v2280 = vunpack.c.l.b16 %v2248
      %v2281 = vunpack.c.l.b16 %v2249
      %v2282 = vunpack.c.l.b16 %v2250
      %v2283 = vunpack.c.l.b16 %v2251
      %v2284 = vunpack.c.l.b16 %v2252
      %v2285 = vunpack.c.l.b16 %v2253
      %v2286 = vunpack.c.l.b16 %v2254
      %v2287 = vunpack.c.l.b16 %v2255
      %v2288 = vunpack.c.l.b16 %v2256
      %v2289 = vunpack.c.l.b16 %v2257
      %v2290 = vunpack.c.l.b16 %v2258
      %v2291 = vpack.c.b16 %v2276, %v2275
      %v2292 = vpack.c.b16 %v2278, %v2277
      %v2293 = vpack.c.b16 %v2280, %v2279
      %v2294 = vpack.c.b16 %v2282, %v2281
      %v2295 = vpack.c.b16 %v2284, %v2283
      %v2296 = vpack.c.b16 %v2286, %v2285
      %v2297 = vpack.c.b16 %v2288, %v2287
      %v2298 = vpack.c.b16 %v2290, %v2289
      %2307 = vmatprep.subr.bf16.mxu0 0
      %2308 = vmatpush1.bf16.msra.mxu0 %v2298
      %2309 = vmatprep.subr.bf16.mxu0 0
      %2310 = vmatpush1.bf16.msra.mxu0 %v2297
      %2311 = vmatprep.subr.bf16.mxu0 0
      %2312 = vmatpush1.bf16.msra.mxu0 %v2296
      %2313 = vmatprep.subr.bf16.mxu0 0
      %2314 = vmatpush1.bf16.msra.mxu0 %v2295
      %2315 = vmatprep.subr.bf16.mxu0 0
      %2316 = vmatpush1.bf16.msra.mxu0 %v2294
      %2317 = vmatprep.subr.bf16.mxu0 0
      %2318 = vmatpush1.bf16.msra.mxu0 %v2293
      %2319 = vmatprep.subr.bf16.mxu0 0
      %2320 = vmatpush1.bf16.msra.mxu0 %v2292
      %2321 = vmatprep.subr.bf16.mxu0 0
      %2322 = vmatpush1.bf16.msra.mxu0 %v2291
      %2323 = vmatprep.subr.bf16.mxu0 0
      %2324 = vmatpush2.bf16.msra.mxu0 0
      %2325 = vmatprep.subr.bf16.mxu0 0
      %2326 = vmatpush2.bf16.msra.mxu0 0
      %2327 = vmatprep.subr.bf16.mxu0 0
      %2328 = vmatpush2.bf16.msra.mxu0 0
      %2329 = vmatprep.subr.bf16.mxu0 0
      %2330 = vmatpush2.bf16.msra.mxu0 0
      %2331 = vmatprep.subr.bf16.mxu0 0
      %2332 = vmatpush2.bf16.msra.mxu0 0
      %2333 = vmatprep.subr.bf16.mxu0 0
      %2334 = vmatpush2.bf16.msra.mxu0 0
      %2335 = vmatprep.subr.bf16.mxu0 0
      %2336 = vmatpush2.bf16.msra.mxu0 0
      %2337 = vmatprep.subr.bf16.mxu0 0
      %2338 = vmatpush2.bf16.msra.mxu0 0
      %2339 = vmatprep.mubr.bf16.mxu0 0
      %2340 = vmatmul.mubr.bf16.gmra.mxu0 %v2234
      %v2341 = vpop.f32.mrf.mxu0
      %v2342 = vadd.f32 0.0, %v2341
      %v2343 = vpop.f32.mrf.mxu0
      %v2344 = vpop.f32.mrf.mxu0
      %v2345 = vadd.f32 0.0, %v2344
      %v2346 = vpop.f32.mrf.mxu0
      %2347 = vmatprep.mubr.bf16.mxu0 0
      %2348 = vmatmul.mubr.bf16.gmra.mxu0 %v2235
      %v2349 = vpop.f32.mrf.mxu0
      %v2350 = vadd.f32 0.0, %v2349
      %v2351 = vpop.f32.mrf.mxu0
      %v2352 = vpop.f32.mrf.mxu0
      %v2353 = vadd.f32 0.0, %v2352
      %v2354 = vpop.f32.mrf.mxu0
      %2355 = vmatprep.mubr.bf16.mxu0 0
      %2356 = vmatmul.mubr.bf16.gmra.mxu0 %v2236
      %v2357 = vpop.f32.mrf.mxu0
      %v2358 = vadd.f32 0.0, %v2357
      %v2359 = vpop.f32.mrf.mxu0
      %v2360 = vpop.f32.mrf.mxu0
      %v2361 = vadd.f32 0.0, %v2360
      %v2362 = vpop.f32.mrf.mxu0
      %2363 = vmatprep.mubr.bf16.mxu0 0
      %2364 = vmatmul.mubr.bf16.gmra.mxu0 %v2237
      %v2365 = vpop.f32.mrf.mxu0
      %v2366 = vadd.f32 0.0, %v2365
      %v2367 = vpop.f32.mrf.mxu0
      %v2368 = vpop.f32.mrf.mxu0
      %v2369 = vadd.f32 0.0, %v2368
      %v2370 = vpop.f32.mrf.mxu0
      %2371 = vmatprep.mubr.bf16.mxu0 0
      %2372 = vmatmul.mubr.bf16.gmra.mxu0 %v2238
      %v2373 = vpop.f32.mrf.mxu0
      %v2374 = vadd.f32 0.0, %v2373
      %v2375 = vpop.f32.mrf.mxu0
      %v2376 = vpop.f32.mrf.mxu0
      %v2377 = vadd.f32 0.0, %v2376
      %v2378 = vpop.f32.mrf.mxu0
      %2379 = vmatprep.mubr.bf16.mxu0 0
      %2380 = vmatmul.mubr.bf16.gmra.mxu0 %v2239
      %v2381 = vpop.f32.mrf.mxu0
      %v2382 = vadd.f32 0.0, %v2381
      %v2383 = vpop.f32.mrf.mxu0
      %v2384 = vpop.f32.mrf.mxu0
      %v2385 = vadd.f32 0.0, %v2384
      %v2386 = vpop.f32.mrf.mxu0
      %2387 = vmatprep.mubr.bf16.mxu0 0
      %2388 = vmatmul.mubr.bf16.gmra.mxu0 %v2240
      %v2389 = vpop.f32.mrf.mxu0
      %v2390 = vadd.f32 0.0, %v2389
      %v2391 = vpop.f32.mrf.mxu0
      %v2392 = vpop.f32.mrf.mxu0
      %v2393 = vadd.f32 0.0, %v2392
      %v2394 = vpop.f32.mrf.mxu0
      %2395 = vmatprep.mubr.bf16.mxu0 0
      %2396 = vmatmul.mubr.bf16.gmra.mxu0 %v2241
      %v2397 = vpop.f32.mrf.mxu0
      %v2398 = vadd.f32 0.0, %v2397
      %v2399 = vpop.f32.mrf.mxu0
      %v2400 = vpop.f32.mrf.mxu0
      %v2401 = vadd.f32 0.0, %v2400
      %v2402 = vpop.f32.mrf.mxu0
      %2403 = vdwg.mxu0
      %v2404 = vadd.f32 %v2202, %v2342
      %v2405 = vadd.f32 %v2203, %v2345
      %v2406 = vadd.f32 %v2204, %v2350
      %v2407 = vadd.f32 %v2205, %v2353
      %v2408 = vadd.f32 %v2206, %v2358
      %v2409 = vadd.f32 %v2207, %v2361
      %v2410 = vadd.f32 %v2208, %v2366
      %v2411 = vadd.f32 %v2209, %v2369
      %v2412 = vadd.f32 %v2210, %v2374
      %v2413 = vadd.f32 %v2211, %v2377
      %v2414 = vadd.f32 %v2212, %v2382
      %v2415 = vadd.f32 %v2213, %v2385
      %v2416 = vadd.f32 %v2214, %v2390
      %v2417 = vadd.f32 %v2215, %v2393
      %v2418 = vadd.f32 %v2216, %v2398
      %v2419 = vadd.f32 %v2217, %v2401
      %v2420 = vadd.f32 %v2404, %v2405
      %v2421 = vadd.f32 %v2420, %v2406
      %v2422 = vadd.f32 %v2421, %v2407
      %v2423 = vadd.f32 %v2422, %v2408
      %v2424 = vadd.f32 %v2423, %v2409
      %v2425 = vadd.f32 %v2424, %v2410
      %v2426 = vadd.f32 %v2425, %v2411
      %v2427 = vadd.f32 %v2426, %v2412
      %v2428 = vadd.f32 %v2427, %v2413
      %v2429 = vadd.f32 %v2428, %v2414
      %v2430 = vadd.f32 %v2429, %v2415
      %v2431 = vadd.f32 %v2430, %v2416
      %v2432 = vadd.f32 %v2431, %v2417
      %v2433 = vadd.f32 %v2432, %v2418
      %v2434 = vadd.f32 %v2433, %v2419
      %v2435 = vrot.slane %v2434, 4
      %v2436 = vadd.f32 %v2434, %v2435
      %v2437 = vrot.slane %v2436, 2
      %v2438 = vadd.f32 %v2436, %v2437
      %v2439 = vrot.slane %v2438, 1
      %v2440 = vadd.f32 %v2438, %v2439
      %v2441 = vmul.f32 %v2404, %v2404
      %v2442 = vmul.f32 %v2405, %v2405
      %v2443 = vmul.f32 %v2406, %v2406
      %v2444 = vmul.f32 %v2407, %v2407
      %v2445 = vmul.f32 %v2408, %v2408
      %v2446 = vmul.f32 %v2409, %v2409
      %v2447 = vmul.f32 %v2410, %v2410
      %v2448 = vmul.f32 %v2411, %v2411
      %v2449 = vmul.f32 %v2412, %v2412
      %v2450 = vmul.f32 %v2413, %v2413
      %v2451 = vmul.f32 %v2414, %v2414
      %v2452 = vmul.f32 %v2415, %v2415
      %v2453 = vmul.f32 %v2416, %v2416
      %v2454 = vmul.f32 %v2417, %v2417
      %v2455 = vmul.f32 %v2418, %v2418
      %v2456 = vmul.f32 %v2419, %v2419
      %v2457 = vadd.f32 %v2441, %v2442
      %v2458 = vadd.f32 %v2457, %v2443
      %v2459 = vadd.f32 %v2458, %v2444
      %v2460 = vadd.f32 %v2459, %v2445
      %v2461 = vadd.f32 %v2460, %v2446
      %v2462 = vadd.f32 %v2461, %v2447
      %v2463 = vadd.f32 %v2462, %v2448
      %v2464 = vadd.f32 %v2463, %v2449
      %v2465 = vadd.f32 %v2464, %v2450
      %v2466 = vadd.f32 %v2465, %v2451
      %v2467 = vadd.f32 %v2466, %v2452
      %v2468 = vadd.f32 %v2467, %v2453
      %v2469 = vadd.f32 %v2468, %v2454
      %v2470 = vadd.f32 %v2469, %v2455
      %v2471 = vadd.f32 %v2470, %v2456
      %v2472 = vrot.slane %v2471, 4
      %v2473 = vadd.f32 %v2471, %v2472
      %v2474 = vrot.slane %v2473, 2
      %v2475 = vadd.f32 %v2473, %v2474
      %v2476 = vrot.slane %v2475, 1
      %v2477 = vadd.f32 %v2475, %v2476
      %vm2478 = vcmask 1040384
      %v2479 = vsel %vm2478, %v2440, %v2477
      %2480 = vst [vmem:[%s464] sm:$0x3] %v2479
      %v2481 = vpack.c.bf16 %v2405, %v2404
      %v2482 = vpack.c.bf16 %v2407, %v2406
      %v2483 = vpack.c.bf16 %v2409, %v2408
      %v2484 = vpack.c.bf16 %v2411, %v2410
      %v2485 = vpack.c.bf16 %v2413, %v2412
      %v2486 = vpack.c.bf16 %v2415, %v2414
      %v2487 = vpack.c.bf16 %v2417, %v2416
      %v2488 = vpack.c.bf16 %v2419, %v2418
      %v2497 = vunpack.c.l.b16 %v2481
      %v2498 = vunpack.c.h.b16 %v2481
      %v2499 = vunpack.c.l.b16 %v2482
      %v2500 = vunpack.c.h.b16 %v2482
      %v2501 = vunpack.c.l.b16 %v2483
      %v2502 = vunpack.c.h.b16 %v2483
      %v2503 = vunpack.c.l.b16 %v2484
      %v2504 = vunpack.c.h.b16 %v2484
      %v2505 = vunpack.c.l.b16 %v2485
      %v2506 = vunpack.c.h.b16 %v2485
      %v2507 = vunpack.c.l.b16 %v2486
      %v2508 = vunpack.c.h.b16 %v2486
      %v2509 = vunpack.c.l.b16 %v2487
      %v2510 = vunpack.c.h.b16 %v2487
      %v2511 = vunpack.c.l.b16 %v2488
      %v2512 = vunpack.c.h.b16 %v2488
      %v2513 = vpack.c.b16 %v2497, %v2497
      %v2514 = vpack.c.b16 %v2498, %v2498
      %v2515 = vpack.c.b16 %v2499, %v2499
      %v2516 = vpack.c.b16 %v2500, %v2500
      %v2517 = vpack.c.b16 %v2501, %v2501
      %v2518 = vpack.c.b16 %v2502, %v2502
      %v2519 = vpack.c.b16 %v2503, %v2503
      %v2520 = vpack.c.b16 %v2504, %v2504
      %v2521 = vpack.c.b16 %v2505, %v2505
      %v2522 = vpack.c.b16 %v2506, %v2506
      %v2523 = vpack.c.b16 %v2507, %v2507
      %v2524 = vpack.c.b16 %v2508, %v2508
      %v2525 = vpack.c.b16 %v2509, %v2509
      %v2526 = vpack.c.b16 %v2510, %v2510
      %v2527 = vpack.c.b16 %v2511, %v2511
      %v2528 = vpack.c.b16 %v2512, %v2512
      %2545 = vst [vmem:[%s455] sm:$0xf] %v2513
      %2546 = vst [vmem:[%s455 + $0x4] sm:$0xf] %v2514
      %2547 = vst [vmem:[%s455 + $0x8] sm:$0xf] %v2515
      %2548 = vst [vmem:[%s455 + $0xc] sm:$0xf] %v2516
      %2549 = vst [vmem:[%s455 + $0x10] sm:$0xf] %v2517
      %2550 = vst [vmem:[%s455 + $0x14] sm:$0xf] %v2518
      %2551 = vst [vmem:[%s455 + $0x18] sm:$0xf] %v2519
      %2552 = vst [vmem:[%s455 + $0x1c] sm:$0xf] %v2520
      %2553 = vst [vmem:[%s455 + $0x20] sm:$0xf] %v2521
      %2554 = vst [vmem:[%s455 + $0x24] sm:$0xf] %v2522
      %2555 = vst [vmem:[%s455 + $0x28] sm:$0xf] %v2523
      %2556 = vst [vmem:[%s455 + $0x2c] sm:$0xf] %v2524
      %2557 = vst [vmem:[%s455 + $0x30] sm:$0xf] %v2525
      %2558 = vst [vmem:[%s455 + $0x34] sm:$0xf] %v2526
      %2559 = vst [vmem:[%s455 + $0x38] sm:$0xf] %v2527
      %2560 = vst [vmem:[%s455 + $0x3c] sm:$0xf] %v2528
      %s2561 = smul.u32 %s23, 2
      %s2562 = sadd.s32 %s2561, %s24
      %s2563 = smul.u32 16, %s2562
      %p2564 = scmp.lt.s32.totalorder %s2563, 63
      %s2565 = scalar_select %p2564, %s2563, 63
      %s2566 = smul.addr %s2565, 4
      %s2567 = scalar_lea.vmem %s6, %s2566
      %s2568 = smul.u32 %s23, 2
      %s2569 = sadd.s32 %s2568, %s24
      %p2570 = scmp.lt.s32.totalorder %s2569, 3
      %s2571 = scalar_select %p2570, %s2569, 3
      %s2572 = smul.addr %s2571, 2
      %s2573 = scalar_lea.vmem %s7, %s2572
      // Predicated region
      $region45: #{_bottleneck_forward.5} parent=43 // pred_check
        %p2574 = pneg %p222
      $region46: #{_bottleneck_forward.5} parent=43 // pred_check_branch
        %2576 = sbr.rel (%p2574) target = $region48
      $region47: #{_bottleneck_forward.5} parent=43 // pred_region
        %s2577 = smul.u32 %s23, 2
        %s2578 = sadd.s32 %s2577, %s24
        %s2579 = smul.u32 16, %s2578
      $region48: #{_bottleneck_forward.5} parent=43 // pred_fallthru
        _
      // Predicated region
      $region49: #{_bottleneck_forward.5} parent=43 // pred_check
        %p2580 = pneg %p252
      $region50: #{_bottleneck_forward.5} parent=43 // pred_check_branch
        %2582 = sbr.rel (%p2580) target = $region52
      $region51: #{_bottleneck_forward.5} parent=43 // pred_region
        %s2583 = smul.u32 %s23, 2
        %s2584 = sadd.s32 %s2583, %s24
      $region52: #{_bottleneck_forward.5} parent=43 // pred_fallthru
        _
    $region44: #{_bottleneck_forward.5} parent=5 // pred_fallthru
      _
    %p2585 = scmp.le.s32.totalorder 2, %s14
    // Predicated region
    $region53: #{_bottleneck_forward.5} parent=5 // pred_check
      %p2586 = pneg %p2585
    $region54: #{_bottleneck_forward.5} parent=5 // pred_check_branch
      %2588 = sbr.rel (%p2586) target = $region56
    $region55: #{_bottleneck_forward.5} parent=5 // pred_region
      %s2589 = ssub.s32 %s14, 2
      // Predicated region
      $region57: #{_bottleneck_forward.5} parent=55 // pred_check
        %p2590 = pneg %p228
      $region58: #{_bottleneck_forward.5} parent=55 // pred_check_branch
        %2592 = sbr.rel (%p2590) target = $region60
      $region59: #{_bottleneck_forward.5} parent=55 // pred_region
        %s2593 = smul.u32 %s25, 2
        %s2594 = sadd.s32 %s2593, %s26
        %s2595 = smul.u32 16, %s2594
        %p2596 = scmp.lt.s32.totalorder %s2595, 63
        %s2597 = scalar_select %p2596, %s2595, 63
        %s2598 = smul.addr %s2597, 4
        %s2599 = scalar_lea.vmem %s6, %s2598
      $region60: #{_bottleneck_forward.5} parent=55 // pred_fallthru
        _
      // Predicated region
      $region61: #{_bottleneck_forward.5} parent=55 // pred_check
        %p2600 = pneg %p258
      $region62: #{_bottleneck_forward.5} parent=55 // pred_check_branch
        %2602 = sbr.rel (%p2600) target = $region64
      $region63: #{_bottleneck_forward.5} parent=55 // pred_region
        %s2603 = smul.u32 %s25, 2
        %s2604 = sadd.s32 %s2603, %s26
        %p2605 = scmp.lt.s32.totalorder %s2604, 3
        %s2606 = scalar_select %p2605, %s2604, 3
        %s2607 = smul.addr %s2606, 2
        %s2608 = scalar_lea.vmem %s7, %s2607
      $region64: #{_bottleneck_forward.5} parent=55 // pred_fallthru
        _
    $region56: #{_bottleneck_forward.5} parent=5 // pred_fallthru
      _
  $region6: #{_bottleneck_forward.5} parent=0 // loop_footer
    %s18 = sadd.s32 1, %s14
  $region7: #{_bottleneck_forward.5} parent=0 // loop_footer_branch
    %13 = sbr.rel target = $region3
  $region8: #{_bottleneck_forward.5} parent=0 // loop_exit
    _

</llo_original>
